<compile_context>
chip_gen: v5e
topology: v5e:2x2
jax: 0.10.0
libtpu: 0.0.40
codegen_flags: <defaults>
</compile_context>

<pallas_src>
import jax
import jax.numpy as jnp
from jax import lax
from jax.experimental import pallas as pl
from jax.experimental.pallas import tpu as pltpu

EMBEDDING_DIM = 64
HIDDEN_SIZE = 32
VOCAB_SIZE = 100          # synthetic vocab (original derives it from vocab_to_int)
CLF_HIDDEN = 128


# --------------------------------------------------------------------------- #
# Kernel
# --------------------------------------------------------------------------- #
def lstm_attn_kernel(ids_ref, gtab_ref, whh_ref, wlin_ref, blin_ref,
                     walc_ref, walh_ref, balign_ref,
                     wc1_ref, bc1_ref, wc2_ref, bc2_ref,
                     out_ref, attw_ref, outs_scr):
    T, _, Bt = ids_ref.shape
    H = HIDDEN_SIZE
    VPAD = gtab_ref.shape[1]

    gtab = gtab_ref[...]          # (4H, VPAD) bf16, VMEM-resident, hoisted
    whh = whh_ref[...]            # (4H, H)    bf16, hoisted

    # Loop-invariant iota for the one-hot gather (hoisted: broadcast_in_dim is
    # not CSE'd by JAX).
    vocab_iota = lax.broadcasted_iota(jnp.int32, (VPAD, Bt), 0)

    # ---- LSTM recurrence, feature-major (PyTorch gate order i,f,g,o) -------
    def step(t, carry):
        h, c = carry                                              # (H, Bt) f32
        ids_row = ids_ref[t]                                      # (1, Bt) i32
        onehot = (vocab_iota == ids_row).astype(jnp.bfloat16)     # (VPAD, Bt)
        # Fused embedding lookup + input projection (+ folded biases): one
        # bf16 MXU pass.  Independent of h/c, so the scheduler overlaps it
        # with the previous step's gate math under unrolling.
        gx = jnp.dot(gtab, onehot,
                     preferred_element_type=jnp.float32)          # (4H, Bt)
        gates = gx + jnp.dot(whh, h.astype(jnp.bfloat16),
                             preferred_element_type=jnp.float32)  # (4H, Bt)
        # Sublane (row) slices, 8-aligned -> no cross-lane relayout.
        i_g = jax.nn.sigmoid(gates[0:H])
        f_g = jax.nn.sigmoid(gates[H:2 * H])
        g_g = jnp.tanh(gates[2 * H:3 * H])
        o_g = jax.nn.sigmoid(gates[3 * H:4 * H])
        c = f_g * c + i_g * g_g
        h = o_g * jnp.tanh(c)
        outs_scr[t] = h                    # leading-dim store: pure addressing
        return h, c

    if T <= 32:
        unroll = True                      # full unroll: max LLO visibility
    else:
        unroll = max(u for u in (8, 4, 2, 1) if T % u == 0)

    h0 = jnp.zeros((H, Bt), jnp.float32)
    c0 = jnp.zeros((H, Bt), jnp.float32)
    h_n, _ = lax.fori_loop(0, T, step, (h0, c0), unroll=unroll)   # (H, Bt)

    outs = outs_scr[...]                                          # (T, H, Bt)

    # ---- ConcatAttention (feature-major) ------------------------------------
    # scores[t,b] = outs[t,:,b] . (wlin^T h_n)[:,b] + blin . h_n[:,b]
    u = jnp.dot(wlin_ref[...], h_n.astype(jnp.bfloat16),
                preferred_element_type=jnp.float32)               # (H, Bt)
    bias = jnp.sum(blin_ref[...] * h_n, axis=0, keepdims=True)    # (1, Bt)
    scores = jnp.sum(outs * u[None, :, :], axis=1) + bias         # (T, Bt)

    m = jnp.max(scores, axis=0, keepdims=True)
    p = jnp.exp(scores - m)
    # approx reciprocal (EUP slot): rows sum to 1 within ~1e-3 (documented).
    attw = p * pl.reciprocal(jnp.sum(p, axis=0, keepdims=True), approx=True)

    cntxt = jnp.sum(outs * attw[:, None, :], axis=0)              # (H, Bt)

    # concat((cntxt, h_n)) @ walign^T  == walign[:, :H] @ cntxt + walign[:, H:] @ h_n
    att_hidden = jnp.tanh(
        jnp.dot(walc_ref[...], cntxt.astype(jnp.bfloat16),
                preferred_element_type=jnp.float32)
        + jnp.dot(walh_ref[...], h_n.astype(jnp.bfloat16),
                  preferred_element_type=jnp.float32)
        + balign_ref[...])                                        # (H, Bt)

    # ---- classifier head (Dropout == identity at inference) ----------------
    y1 = jnp.tanh(jnp.dot(wc1_ref[...], att_hidden.astype(jnp.bfloat16),
                          preferred_element_type=jnp.float32)
                  + bc1_ref[...])                                 # (128, Bt)
    # (1,128)x(128,Bt) head done as a VPU multiply + sublane reduce
    # (no wasted M=1 MXU pass).
    out_ref[...] = (jnp.sum(y1 * wc2_ref[...], axis=0, keepdims=True)
                    + bc2_ref[...])                               # (1, Bt)
    attw_ref[...] = attw                                          # (T, Bt)


# --------------------------------------------------------------------------- #
# Wrapper
# --------------------------------------------------------------------------- #
def _pick_bt(B, T):
    """Batch tile: lane-dense (multiple of 128) if possible, budgeted by T."""
    H = HIDDEN_SIZE
    budget = 12 * 1024 * 1024          # leaves headroom on v5e scoped / v7x 64 MiB

    def est(bt):
        lanes = max(bt, 128)           # lane padding
        return (T * H * lanes * 4                      # outs scratch (f32)
                + 2 * T * bt * 4                       # ids double-buffer (i32)
                + 8 * 4 * H * lanes * 4                # per-step gates/onehot temps
                + 2 * (T + 1) * lanes * 4              # out / attw blocks
                + 256 * 1024)                          # weights + slack

    cands = [bt for bt in (256, 128) if B % bt == 0 and B // bt >= 2]
    fitting = [bt for bt in cands if est(bt) <= budget]
    for min_steps in (4, 2):           # prefer >=4 grid steps (v7x 2 TCs + pipelining)
        for bt in fitting:
            if B // bt >= min_steps:
                return bt
    if cands:
        return cands[-1]
    return B                            # tiny batches (e.g. the test): one tile


def prepare_kernel_params(p):
    """One-time transform from PyTorch-layout params to kernel layout."""
    H = HIDDEN_SIZE
    vpad = ((VOCAB_SIZE + 127) // 128) * 128
    # Fused embedding + input projection table: G[v] = emb[v] @ W_ih^T + b_ih + b_hh
    g = p["emb"] @ p["wih_pt"].T + p["b_ih"] + p["b_hh"]          # (VOCAB, 4H) f32
    g = jnp.pad(g, ((0, vpad - VOCAB_SIZE), (0, 0)))
    return dict(
        gtab=g.T.astype(jnp.bfloat16),                            # (4H, VPAD)
        whh=p["whh_pt"].astype(jnp.bfloat16),                     # (4H, H)
        wlin_t=p["wlin_pt"].T.astype(jnp.bfloat16),               # (H, H)
        blin=p["blin"][:, None],                                  # (H, 1)  f32
        walign_c=p["walign_pt"][:, :H].astype(jnp.bfloat16),      # (H, H)
        walign_h=p["walign_pt"][:, H:].astype(jnp.bfloat16),      # (H, H)
        balign=p["balign"][:, None],                              # (H, 1)  f32
        wc1=p["wc1_pt"].astype(jnp.bfloat16),                     # (128, H)
        bc1=p["bc1"][:, None],                                    # (128, 1) f32
        wc2=p["wc2_pt"].T,                                        # (128, 1) f32
        bc2=p["bc2"][:, None],                                    # (1, 1)   f32
    )


def lstm_concat_attention(x, kp):
    """x: (B, T) int32 token ids; kp: prepare_kernel_params(...) output."""
    B, T = x.shape
    Bt = _pick_bt(B, T)
    grid = (B // Bt,)

    # Time-major ids, with a size-1 middle dim so the kernel indexes the
    # untiled leading (time) axis.
    ids = x.astype(jnp.int32).T.reshape(T, 1, B)

    weights = (kp["gtab"], kp["whh"], kp["wlin_t"], kp["blin"],
               kp["walign_c"], kp["walign_h"], kp["balign"],
               kp["wc1"], kp["bc1"], kp["wc2"], kp["bc2"])

    def full(shape):
        # Whole-array block, constant index map -> stays VMEM-resident.
        return pl.BlockSpec(shape, lambda i, _n=len(shape): (0,) * _n)

    in_specs = ([pl.BlockSpec((T, 1, Bt), lambda i: (0, 0, i))]   # token ids tile
                + [full(w.shape) for w in weights])
    out_specs = (pl.BlockSpec((1, Bt), lambda i: (0, i)),         # logits (feature-major)
                 pl.BlockSpec((T, Bt), lambda i: (0, i)))         # attn weights

    out_fm, attw_fm = pl.pallas_call(
        lstm_attn_kernel,
        out_shape=(jax.ShapeDtypeStruct((1, B), jnp.float32),
                   jax.ShapeDtypeStruct((T, B), jnp.float32)),
        grid_spec=pltpu.PrefetchScalarGridSpec(
            num_scalar_prefetch=0,
            grid=grid,
            in_specs=in_specs,
            out_specs=out_specs,
            scratch_shapes=[pltpu.VMEM((T, HIDDEN_SIZE, Bt), jnp.float32)]),
        compiler_params=pltpu.CompilerParams(
            dimension_semantics=("parallel",),          # 2 TCs on v7x
            vmem_limit_bytes=32 * 1024 * 1024),
    )(ids, *weights)

    # Layout plumbing back to the PyTorch convention.
    return out_fm.T, attw_fm.T                                    # (B,1), (B,T)


# --------------------------------------------------------------------------- #
# Params + pure-JAX reference (PyTorch layout)
# --------------------------------------------------------------------------- #
def init_params(key):
    H, E = HIDDEN_SIZE, EMBEDDING_DIM
    s = 0.1
    ks = jax.random.split(key, 12)
    return dict(
        emb=jax.random.normal(ks[0], (VOCAB_SIZE, E), jnp.float32),
        wih_pt=s * jax.random.normal(ks[1], (4 * H, E), jnp.float32),
        whh_pt=s * jax.random.normal(ks[2], (4 * H, H), jnp.float32),
        b_ih=s * jax.random.normal(ks[3], (4 * H,), jnp.float32),
        b_hh=s * jax.random.normal(ks[4], (4 * H,), jnp.float32),
        wlin_pt=s * jax.random.normal(ks[5], (H, H), jnp.float32),
        blin=s * jax.random.normal(ks[6], (H,), jnp.float32),
        walign_pt=s * jax.random.normal(ks[7], (H, 2 * H), jnp.float32),
        balign=s * jax.random.normal(ks[8], (H,), jnp.float32),
        wc1_pt=s * jax.random.normal(ks[9], (CLF_HIDDEN, H), jnp.float32),
        bc1=s * jax.random.normal(ks[10], (CLF_HIDDEN,), jnp.float32),
        wc2_pt=s * jax.random.normal(ks[11], (1, CLF_HIDDEN), jnp.float32),
        bc2=jnp.zeros((1,), jnp.float32),
    )


def reference(x, p):
    """Pure-JAX mirror of the PyTorch forward (for validation)."""
    H = HIDDEN_SIZE
    emb = p["emb"][x]                                    # (B, T, E)
    B = emb.shape[0]
    b = p["b_ih"] + p["b_hh"]

    def step(carry, x_t):
        h, c = carry
        gates = x_t @ p["wih_pt"].T + h @ p["whh_pt"].T + b
        i = jax.nn.sigmoid(gates[:, 0:H])
        f = jax.nn.sigmoid(gates[:, H:2 * H])
        g = jnp.tanh(gates[:, 2 * H:3 * H])
        o = jax.nn.sigmoid(gates[:, 3 * H:4 * H])
        c = f * c + i * g
        h = o * jnp.tanh(c)
        return (h, c), h

    (h_n, _), outs_t = lax.scan(
        step, (jnp.zeros((B, H)), jnp.zeros((B, H))), jnp.swapaxes(emb, 0, 1))
    outs = jnp.swapaxes(outs_t, 0, 1)                    # (B, T, H)
    att = outs @ p["wlin_pt"].T + p["blin"]
    scores = jnp.einsum("btk,bk->bt", att, h_n)
    attw = jax.nn.softmax(scores, axis=1)
    cntxt = jnp.einsum("bth,bt->bh", outs, attw)
    concat = jnp.concatenate([cntxt, h_n], axis=-1)
    att_hidden = jnp.tanh(concat @ p["walign_pt"].T + p["balign"])
    y1 = jnp.tanh(att_hidden @ p["wc1_pt"].T + p["bc1"])
    out = y1 @ p["wc2_pt"].T + p["bc2"]
    return out, attw


if __name__ == "__main__":
    key = jax.random.PRNGKey(0)
    kp_key, kx_key = jax.random.split(key)
    params = init_params(kp_key)
    kernel_params = prepare_kernel_params(params)

    B, T = 2, 8
    x = jax.random.randint(kx_key, (B, T), 0, VOCAB_SIZE, dtype=jnp.int32)

    out, attw = jax.block_until_ready(lstm_concat_attention(x, kernel_params))
    ref_out, ref_attw = reference(x, params)

    assert out.shape == (B, 1) and attw.shape == (B, T)
    assert jnp.allclose(out, ref_out, atol=5e-2, rtol=5e-2)
    assert jnp.allclose(attw, ref_attw, atol=5e-2, rtol=5e-2)
    assert jnp.allclose(jnp.sum(attw, axis=1), 1.0, atol=1e-2)
    print("KERNEL_OK")
</pallas_src>

<mosaic_0001>
module attributes {stable_mosaic.version = 11 : i64} {
  func.func @lstm_attn_kernel(%arg0: i32, %arg1: memref<8x1x2xi32, #tpu.memory_space<vmem>>, %arg2: memref<128x128xbf16, #tpu.memory_space<vmem>>, %arg3: memref<128x32xbf16, #tpu.memory_space<vmem>>, %arg4: memref<32x32xbf16, #tpu.memory_space<vmem>>, %arg5: memref<32x1xf32, #tpu.memory_space<vmem>>, %arg6: memref<32x32xbf16, #tpu.memory_space<vmem>>, %arg7: memref<32x32xbf16, #tpu.memory_space<vmem>>, %arg8: memref<32x1xf32, #tpu.memory_space<vmem>>, %arg9: memref<128x32xbf16, #tpu.memory_space<vmem>>, %arg10: memref<128x1xf32, #tpu.memory_space<vmem>>, %arg11: memref<128x1xf32, #tpu.memory_space<vmem>>, %arg12: memref<1x1xf32, #tpu.memory_space<vmem>>, %arg13: memref<1x2xf32, #tpu.memory_space<vmem>>, %arg14: memref<8x2xf32, #tpu.memory_space<vmem>>, %arg15: memref<8x32x2xf32, #tpu.memory_space<vmem>>) attributes {dimension_semantics = [#tpu.dimension_semantics<parallel>], iteration_bounds = array<i64: 1>, scalar_prefetch = 0 : i64, scratch_operands = 1 : i64, tpu.core_type = #tpu.core_type<tc>, window_params = [{transform_indices = @transform_0, window_bounds = array<i64: 8, 1, 2>}, {pipeline_mode = #tpu.pipeline_mode<synchronous>, transform_indices = @transform_1, window_bounds = array<i64: 128, 128>}, {pipeline_mode = #tpu.pipeline_mode<synchronous>, transform_indices = @transform_2, window_bounds = array<i64: 128, 32>}, {pipeline_mode = #tpu.pipeline_mode<synchronous>, transform_indices = @transform_3, window_bounds = array<i64: 32, 32>}, {pipeline_mode = #tpu.pipeline_mode<synchronous>, transform_indices = @transform_4, window_bounds = array<i64: 32, 1>}, {pipeline_mode = #tpu.pipeline_mode<synchronous>, transform_indices = @transform_5, window_bounds = array<i64: 32, 32>}, {pipeline_mode = #tpu.pipeline_mode<synchronous>, transform_indices = @transform_6, window_bounds = array<i64: 32, 32>}, {pipeline_mode = #tpu.pipeline_mode<synchronous>, transform_indices = @transform_7, window_bounds = array<i64: 32, 1>}, {pipeline_mode = #tpu.pipeline_mode<synchronous>, transform_indices = @transform_8, window_bounds = array<i64: 128, 32>}, {pipeline_mode = #tpu.pipeline_mode<synchronous>, transform_indices = @transform_9, window_bounds = array<i64: 128, 1>}, {pipeline_mode = #tpu.pipeline_mode<synchronous>, transform_indices = @transform_10, window_bounds = array<i64: 128, 1>}, {pipeline_mode = #tpu.pipeline_mode<synchronous>, transform_indices = @transform_11, window_bounds = array<i64: 1, 1>}, {transform_indices = @transform_12, window_bounds = array<i64: 1, 2>}, {transform_indices = @transform_13, window_bounds = array<i64: 8, 2>}]} {
    %c0 = arith.constant 0 : index
    %c0_0 = arith.constant 0 : index
    %0 = vector.load %arg2[%c0, %c0_0] : memref<128x128xbf16, #tpu.memory_space<vmem>>, vector<128x128xbf16>
    %c0_1 = arith.constant 0 : index
    %c0_2 = arith.constant 0 : index
    %1 = vector.load %arg3[%c0_1, %c0_2] : memref<128x32xbf16, #tpu.memory_space<vmem>>, vector<128x32xbf16>
    %2 = tpu.iota {dimensions = array<i32: 0>} : vector<128x2xi32>
    %cst = arith.constant 0.000000e+00 : f32
    %3 = vector.broadcast %cst : f32 to vector<32x2xf32>
    %cst_3 = arith.constant 0.000000e+00 : f32
    %4 = vector.broadcast %cst_3 : f32 to vector<32x2xf32>
    %c0_i32 = arith.constant 0 : i32
    %5 = arith.index_cast %c0_i32 : i32 to index
    %c0_4 = arith.constant 0 : index
    %c0_5 = arith.constant 0 : index
    %6 = vector.load %arg1[%5, %c0_4, %c0_5] : memref<8x1x2xi32, #tpu.memory_space<vmem>>, vector<1x1x2xi32>
    %7 = vector.shape_cast %6 : vector<1x1x2xi32> to vector<1x2xi32>
    %8 = vector.broadcast %7 : vector<1x2xi32> to vector<128x2xi32>
    %9 = arith.cmpi eq, %2, %8 : vector<128x2xi32>
    %10 = arith.extui %9 : vector<128x2xi1> to vector<128x2xi32>
    %11 = arith.sitofp %10 : vector<128x2xi32> to vector<128x2xf32>
    %12 = arith.truncf %11 : vector<128x2xf32> to vector<128x2xbf16>
    %cst_6 = arith.constant dense<0.000000e+00> : vector<128x2xf32>
    %13 = tpu.matmul %0, %12, %cst_6 {dimension_numbers = #tpu.dot_dimension_numbers<[1], [0], [0], [1], [0, 0, 1, 1], [], []>} : vector<128x128xbf16>, vector<128x2xbf16>, vector<128x2xf32> -> vector<128x2xf32>
    %14 = arith.truncf %3 : vector<32x2xf32> to vector<32x2xbf16>
    %cst_7 = arith.constant dense<0.000000e+00> : vector<128x2xf32>
    %15 = tpu.matmul %1, %14, %cst_7 {dimension_numbers = #tpu.dot_dimension_numbers<[1], [0], [0], [1], [0, 0, 1, 1], [], []>} : vector<128x32xbf16>, vector<32x2xbf16>, vector<128x2xf32> -> vector<128x2xf32>
    %16 = arith.addf %13, %15 : vector<128x2xf32>
    %17 = vector.extract_strided_slice %16 {offsets = [0, 0], sizes = [32, 2], strides = [1, 1]} : vector<128x2xf32> to vector<32x2xf32>
    %18 = arith.negf %17 : vector<32x2xf32>
    %19 = math.exp %18 : vector<32x2xf32>
    %cst_8 = arith.constant 1.000000e+00 : f32
    %20 = vector.broadcast %cst_8 : f32 to vector<32x2xf32>
    %21 = arith.addf %20, %19 : vector<32x2xf32>
    %22 = arith.divf %20, %21 : vector<32x2xf32>
    %23 = vector.extract_strided_slice %16 {offsets = [32, 0], sizes = [32, 2], strides = [1, 1]} : vector<128x2xf32> to vector<32x2xf32>
    %24 = arith.negf %23 : vector<32x2xf32>
    %25 = math.exp %24 : vector<32x2xf32>
    %cst_9 = arith.constant 1.000000e+00 : f32
    %26 = vector.broadcast %cst_9 : f32 to vector<32x2xf32>
    %27 = arith.addf %26, %25 : vector<32x2xf32>
    %28 = arith.divf %26, %27 : vector<32x2xf32>
    %29 = vector.extract_strided_slice %16 {offsets = [64, 0], sizes = [32, 2], strides = [1, 1]} : vector<128x2xf32> to vector<32x2xf32>
    %30 = math.tanh %29 : vector<32x2xf32>
    %31 = vector.extract_strided_slice %16 {offsets = [96, 0], sizes = [32, 2], strides = [1, 1]} : vector<128x2xf32> to vector<32x2xf32>
    %32 = arith.negf %31 : vector<32x2xf32>
    %33 = math.exp %32 : vector<32x2xf32>
    %cst_10 = arith.constant 1.000000e+00 : f32
    %34 = vector.broadcast %cst_10 : f32 to vector<32x2xf32>
    %35 = arith.addf %34, %33 : vector<32x2xf32>
    %36 = arith.divf %34, %35 : vector<32x2xf32>
    %37 = arith.mulf %28, %4 : vector<32x2xf32>
    %38 = arith.mulf %22, %30 : vector<32x2xf32>
    %39 = arith.addf %37, %38 : vector<32x2xf32>
    %40 = math.tanh %39 : vector<32x2xf32>
    %41 = arith.mulf %36, %40 : vector<32x2xf32>
    %42 = arith.index_cast %c0_i32 : i32 to index
    %c0_11 = arith.constant 0 : index
    %c0_12 = arith.constant 0 : index
    %43 = vector.load %arg15[%42, %c0_11, %c0_12] : memref<8x32x2xf32, #tpu.memory_space<vmem>>, vector<1x32x2xf32>
    %44 = vector.shape_cast %43 : vector<1x32x2xf32> to vector<32x2xf32>
    %45 = vector.shape_cast %41 : vector<32x2xf32> to vector<1x32x2xf32>
    tpu.vector_store %arg15[%42, %c0_11, %c0_12], %45 {strides = array<i32>} : memref<8x32x2xf32, #tpu.memory_space<vmem>>, vector<1x32x2xf32>,
    %c1_i32 = arith.constant 1 : i32
    %46 = arith.index_cast %c1_i32 : i32 to index
    %c0_13 = arith.constant 0 : index
    %c0_14 = arith.constant 0 : index
    %47 = vector.load %arg1[%46, %c0_13, %c0_14] : memref<8x1x2xi32, #tpu.memory_space<vmem>>, vector<1x1x2xi32>
    %48 = vector.shape_cast %47 : vector<1x1x2xi32> to vector<1x2xi32>
    %49 = vector.broadcast %48 : vector<1x2xi32> to vector<128x2xi32>
    %50 = arith.cmpi eq, %2, %49 : vector<128x2xi32>
    %51 = arith.extui %50 : vector<128x2xi1> to vector<128x2xi32>
    %52 = arith.sitofp %51 : vector<128x2xi32> to vector<128x2xf32>
    %53 = arith.truncf %52 : vector<128x2xf32> to vector<128x2xbf16>
    %cst_15 = arith.constant dense<0.000000e+00> : vector<128x2xf32>
    %54 = tpu.matmul %0, %53, %cst_15 {dimension_numbers = #tpu.dot_dimension_numbers<[1], [0], [0], [1], [0, 0, 1, 1], [], []>} : vector<128x128xbf16>, vector<128x2xbf16>, vector<128x2xf32> -> vector<128x2xf32>
    %55 = arith.truncf %41 : vector<32x2xf32> to vector<32x2xbf16>
    %cst_16 = arith.constant dense<0.000000e+00> : vector<128x2xf32>
    %56 = tpu.matmul %1, %55, %cst_16 {dimension_numbers = #tpu.dot_dimension_numbers<[1], [0], [0], [1], [0, 0, 1, 1], [], []>} : vector<128x32xbf16>, vector<32x2xbf16>, vector<128x2xf32> -> vector<128x2xf32>
    %57 = arith.addf %54, %56 : vector<128x2xf32>
    %58 = vector.extract_strided_slice %57 {offsets = [0, 0], sizes = [32, 2], strides = [1, 1]} : vector<128x2xf32> to vector<32x2xf32>
    %59 = arith.negf %58 : vector<32x2xf32>
    %60 = math.exp %59 : vector<32x2xf32>
    %cst_17 = arith.constant 1.000000e+00 : f32
    %61 = vector.broadcast %cst_17 : f32 to vector<32x2xf32>
    %62 = arith.addf %61, %60 : vector<32x2xf32>
    %63 = arith.divf %61, %62 : vector<32x2xf32>
    %64 = vector.extract_strided_slice %57 {offsets = [32, 0], sizes = [32, 2], strides = [1, 1]} : vector<128x2xf32> to vector<32x2xf32>
    %65 = arith.negf %64 : vector<32x2xf32>
    %66 = math.exp %65 : vector<32x2xf32>
    %cst_18 = arith.constant 1.000000e+00 : f32
    %67 = vector.broadcast %cst_18 : f32 to vector<32x2xf32>
    %68 = arith.addf %67, %66 : vector<32x2xf32>
    %69 = arith.divf %67, %68 : vector<32x2xf32>
    %70 = vector.extract_strided_slice %57 {offsets = [64, 0], sizes = [32, 2], strides = [1, 1]} : vector<128x2xf32> to vector<32x2xf32>
    %71 = math.tanh %70 : vector<32x2xf32>
    %72 = vector.extract_strided_slice %57 {offsets = [96, 0], sizes = [32, 2], strides = [1, 1]} : vector<128x2xf32> to vector<32x2xf32>
    %73 = arith.negf %72 : vector<32x2xf32>
    %74 = math.exp %73 : vector<32x2xf32>
    %cst_19 = arith.constant 1.000000e+00 : f32
    %75 = vector.broadcast %cst_19 : f32 to vector<32x2xf32>
    %76 = arith.addf %75, %74 : vector<32x2xf32>
    %77 = arith.divf %75, %76 : vector<32x2xf32>
    %78 = arith.mulf %69, %39 : vector<32x2xf32>
    %79 = arith.mulf %63, %71 : vector<32x2xf32>
    %80 = arith.addf %78, %79 : vector<32x2xf32>
    %81 = math.tanh %80 : vector<32x2xf32>
    %82 = arith.mulf %77, %81 : vector<32x2xf32>
    %83 = arith.index_cast %c1_i32 : i32 to index
    %c0_20 = arith.constant 0 : index
    %c0_21 = arith.constant 0 : index
    %84 = vector.load %arg15[%83, %c0_20, %c0_21] : memref<8x32x2xf32, #tpu.memory_space<vmem>>, vector<1x32x2xf32>
    %85 = vector.shape_cast %84 : vector<1x32x2xf32> to vector<32x2xf32>
    %86 = vector.shape_cast %82 : vector<32x2xf32> to vector<1x32x2xf32>
    tpu.vector_store %arg15[%83, %c0_20, %c0_21], %86 {strides = array<i32>} : memref<8x32x2xf32, #tpu.memory_space<vmem>>, vector<1x32x2xf32>,
    %c2_i32 = arith.constant 2 : i32
    %87 = arith.index_cast %c2_i32 : i32 to index
    %c0_22 = arith.constant 0 : index
    %c0_23 = arith.constant 0 : index
    %88 = vector.load %arg1[%87, %c0_22, %c0_23] : memref<8x1x2xi32, #tpu.memory_space<vmem>>, vector<1x1x2xi32>
    %89 = vector.shape_cast %88 : vector<1x1x2xi32> to vector<1x2xi32>
    %90 = vector.broadcast %89 : vector<1x2xi32> to vector<128x2xi32>
    %91 = arith.cmpi eq, %2, %90 : vector<128x2xi32>
    %92 = arith.extui %91 : vector<128x2xi1> to vector<128x2xi32>
    %93 = arith.sitofp %92 : vector<128x2xi32> to vector<128x2xf32>
    %94 = arith.truncf %93 : vector<128x2xf32> to vector<128x2xbf16>
    %cst_24 = arith.constant dense<0.000000e+00> : vector<128x2xf32>
    %95 = tpu.matmul %0, %94, %cst_24 {dimension_numbers = #tpu.dot_dimension_numbers<[1], [0], [0], [1], [0, 0, 1, 1], [], []>} : vector<128x128xbf16>, vector<128x2xbf16>, vector<128x2xf32> -> vector<128x2xf32>
    %96 = arith.truncf %82 : vector<32x2xf32> to vector<32x2xbf16>
    %cst_25 = arith.constant dense<0.000000e+00> : vector<128x2xf32>
    %97 = tpu.matmul %1, %96, %cst_25 {dimension_numbers = #tpu.dot_dimension_numbers<[1], [0], [0], [1], [0, 0, 1, 1], [], []>} : vector<128x32xbf16>, vector<32x2xbf16>, vector<128x2xf32> -> vector<128x2xf32>
    %98 = arith.addf %95, %97 : vector<128x2xf32>
    %99 = vector.extract_strided_slice %98 {offsets = [0, 0], sizes = [32, 2], strides = [1, 1]} : vector<128x2xf32> to vector<32x2xf32>
    %100 = arith.negf %99 : vector<32x2xf32>
    %101 = math.exp %100 : vector<32x2xf32>
    %cst_26 = arith.constant 1.000000e+00 : f32
    %102 = vector.broadcast %cst_26 : f32 to vector<32x2xf32>
    %103 = arith.addf %102, %101 : vector<32x2xf32>
    %104 = arith.divf %102, %103 : vector<32x2xf32>
    %105 = vector.extract_strided_slice %98 {offsets = [32, 0], sizes = [32, 2], strides = [1, 1]} : vector<128x2xf32> to vector<32x2xf32>
    %106 = arith.negf %105 : vector<32x2xf32>
    %107 = math.exp %106 : vector<32x2xf32>
    %cst_27 = arith.constant 1.000000e+00 : f32
    %108 = vector.broadcast %cst_27 : f32 to vector<32x2xf32>
    %109 = arith.addf %108, %107 : vector<32x2xf32>
    %110 = arith.divf %108, %109 : vector<32x2xf32>
    %111 = vector.extract_strided_slice %98 {offsets = [64, 0], sizes = [32, 2], strides = [1, 1]} : vector<128x2xf32> to vector<32x2xf32>
    %112 = math.tanh %111 : vector<32x2xf32>
    %113 = vector.extract_strided_slice %98 {offsets = [96, 0], sizes = [32, 2], strides = [1, 1]} : vector<128x2xf32> to vector<32x2xf32>
    %114 = arith.negf %113 : vector<32x2xf32>
    %115 = math.exp %114 : vector<32x2xf32>
    %cst_28 = arith.constant 1.000000e+00 : f32
    %116 = vector.broadcast %cst_28 : f32 to vector<32x2xf32>
    %117 = arith.addf %116, %115 : vector<32x2xf32>
    %118 = arith.divf %116, %117 : vector<32x2xf32>
    %119 = arith.mulf %110, %80 : vector<32x2xf32>
    %120 = arith.mulf %104, %112 : vector<32x2xf32>
    %121 = arith.addf %119, %120 : vector<32x2xf32>
    %122 = math.tanh %121 : vector<32x2xf32>
    %123 = arith.mulf %118, %122 : vector<32x2xf32>
    %124 = arith.index_cast %c2_i32 : i32 to index
    %c0_29 = arith.constant 0 : index
    %c0_30 = arith.constant 0 : index
    %125 = vector.load %arg15[%124, %c0_29, %c0_30] : memref<8x32x2xf32, #tpu.memory_space<vmem>>, vector<1x32x2xf32>
    %126 = vector.shape_cast %125 : vector<1x32x2xf32> to vector<32x2xf32>
    %127 = vector.shape_cast %123 : vector<32x2xf32> to vector<1x32x2xf32>
    tpu.vector_store %arg15[%124, %c0_29, %c0_30], %127 {strides = array<i32>} : memref<8x32x2xf32, #tpu.memory_space<vmem>>, vector<1x32x2xf32>,
    %c3_i32 = arith.constant 3 : i32
    %128 = arith.index_cast %c3_i32 : i32 to index
    %c0_31 = arith.constant 0 : index
    %c0_32 = arith.constant 0 : index
    %129 = vector.load %arg1[%128, %c0_31, %c0_32] : memref<8x1x2xi32, #tpu.memory_space<vmem>>, vector<1x1x2xi32>
    %130 = vector.shape_cast %129 : vector<1x1x2xi32> to vector<1x2xi32>
    %131 = vector.broadcast %130 : vector<1x2xi32> to vector<128x2xi32>
    %132 = arith.cmpi eq, %2, %131 : vector<128x2xi32>
    %133 = arith.extui %132 : vector<128x2xi1> to vector<128x2xi32>
    %134 = arith.sitofp %133 : vector<128x2xi32> to vector<128x2xf32>
    %135 = arith.truncf %134 : vector<128x2xf32> to vector<128x2xbf16>
    %cst_33 = arith.constant dense<0.000000e+00> : vector<128x2xf32>
    %136 = tpu.matmul %0, %135, %cst_33 {dimension_numbers = #tpu.dot_dimension_numbers<[1], [0], [0], [1], [0, 0, 1, 1], [], []>} : vector<128x128xbf16>, vector<128x2xbf16>, vector<128x2xf32> -> vector<128x2xf32>
    %137 = arith.truncf %123 : vector<32x2xf32> to vector<32x2xbf16>
    %cst_34 = arith.constant dense<0.000000e+00> : vector<128x2xf32>
    %138 = tpu.matmul %1, %137, %cst_34 {dimension_numbers = #tpu.dot_dimension_numbers<[1], [0], [0], [1], [0, 0, 1, 1], [], []>} : vector<128x32xbf16>, vector<32x2xbf16>, vector<128x2xf32> -> vector<128x2xf32>
    %139 = arith.addf %136, %138 : vector<128x2xf32>
    %140 = vector.extract_strided_slice %139 {offsets = [0, 0], sizes = [32, 2], strides = [1, 1]} : vector<128x2xf32> to vector<32x2xf32>
    %141 = arith.negf %140 : vector<32x2xf32>
    %142 = math.exp %141 : vector<32x2xf32>
    %cst_35 = arith.constant 1.000000e+00 : f32
    %143 = vector.broadcast %cst_35 : f32 to vector<32x2xf32>
    %144 = arith.addf %143, %142 : vector<32x2xf32>
    %145 = arith.divf %143, %144 : vector<32x2xf32>
    %146 = vector.extract_strided_slice %139 {offsets = [32, 0], sizes = [32, 2], strides = [1, 1]} : vector<128x2xf32> to vector<32x2xf32>
    %147 = arith.negf %146 : vector<32x2xf32>
    %148 = math.exp %147 : vector<32x2xf32>
    %cst_36 = arith.constant 1.000000e+00 : f32
    %149 = vector.broadcast %cst_36 : f32 to vector<32x2xf32>
    %150 = arith.addf %149, %148 : vector<32x2xf32>
    %151 = arith.divf %149, %150 : vector<32x2xf32>
    %152 = vector.extract_strided_slice %139 {offsets = [64, 0], sizes = [32, 2], strides = [1, 1]} : vector<128x2xf32> to vector<32x2xf32>
    %153 = math.tanh %152 : vector<32x2xf32>
    %154 = vector.extract_strided_slice %139 {offsets = [96, 0], sizes = [32, 2], strides = [1, 1]} : vector<128x2xf32> to vector<32x2xf32>
    %155 = arith.negf %154 : vector<32x2xf32>
    %156 = math.exp %155 : vector<32x2xf32>
    %cst_37 = arith.constant 1.000000e+00 : f32
    %157 = vector.broadcast %cst_37 : f32 to vector<32x2xf32>
    %158 = arith.addf %157, %156 : vector<32x2xf32>
    %159 = arith.divf %157, %158 : vector<32x2xf32>
    %160 = arith.mulf %151, %121 : vector<32x2xf32>
    %161 = arith.mulf %145, %153 : vector<32x2xf32>
    %162 = arith.addf %160, %161 : vector<32x2xf32>
    %163 = math.tanh %162 : vector<32x2xf32>
    %164 = arith.mulf %159, %163 : vector<32x2xf32>
    %165 = arith.index_cast %c3_i32 : i32 to index
    %c0_38 = arith.constant 0 : index
    %c0_39 = arith.constant 0 : index
    %166 = vector.load %arg15[%165, %c0_38, %c0_39] : memref<8x32x2xf32, #tpu.memory_space<vmem>>, vector<1x32x2xf32>
    %167 = vector.shape_cast %166 : vector<1x32x2xf32> to vector<32x2xf32>
    %168 = vector.shape_cast %164 : vector<32x2xf32> to vector<1x32x2xf32>
    tpu.vector_store %arg15[%165, %c0_38, %c0_39], %168 {strides = array<i32>} : memref<8x32x2xf32, #tpu.memory_space<vmem>>, vector<1x32x2xf32>,
    %c4_i32 = arith.constant 4 : i32
    %169 = arith.index_cast %c4_i32 : i32 to index
    %c0_40 = arith.constant 0 : index
    %c0_41 = arith.constant 0 : index
    %170 = vector.load %arg1[%169, %c0_40, %c0_41] : memref<8x1x2xi32, #tpu.memory_space<vmem>>, vector<1x1x2xi32>
    %171 = vector.shape_cast %170 : vector<1x1x2xi32> to vector<1x2xi32>
    %172 = vector.broadcast %171 : vector<1x2xi32> to vector<128x2xi32>
    %173 = arith.cmpi eq, %2, %172 : vector<128x2xi32>
    %174 = arith.extui %173 : vector<128x2xi1> to vector<128x2xi32>
    %175 = arith.sitofp %174 : vector<128x2xi32> to vector<128x2xf32>
    %176 = arith.truncf %175 : vector<128x2xf32> to vector<128x2xbf16>
    %cst_42 = arith.constant dense<0.000000e+00> : vector<128x2xf32>
    %177 = tpu.matmul %0, %176, %cst_42 {dimension_numbers = #tpu.dot_dimension_numbers<[1], [0], [0], [1], [0, 0, 1, 1], [], []>} : vector<128x128xbf16>, vector<128x2xbf16>, vector<128x2xf32> -> vector<128x2xf32>
    %178 = arith.truncf %164 : vector<32x2xf32> to vector<32x2xbf16>
    %cst_43 = arith.constant dense<0.000000e+00> : vector<128x2xf32>
    %179 = tpu.matmul %1, %178, %cst_43 {dimension_numbers = #tpu.dot_dimension_numbers<[1], [0], [0], [1], [0, 0, 1, 1], [], []>} : vector<128x32xbf16>, vector<32x2xbf16>, vector<128x2xf32> -> vector<128x2xf32>
    %180 = arith.addf %177, %179 : vector<128x2xf32>
    %181 = vector.extract_strided_slice %180 {offsets = [0, 0], sizes = [32, 2], strides = [1, 1]} : vector<128x2xf32> to vector<32x2xf32>
    %182 = arith.negf %181 : vector<32x2xf32>
    %183 = math.exp %182 : vector<32x2xf32>
    %cst_44 = arith.constant 1.000000e+00 : f32
    %184 = vector.broadcast %cst_44 : f32 to vector<32x2xf32>
    %185 = arith.addf %184, %183 : vector<32x2xf32>
    %186 = arith.divf %184, %185 : vector<32x2xf32>
    %187 = vector.extract_strided_slice %180 {offsets = [32, 0], sizes = [32, 2], strides = [1, 1]} : vector<128x2xf32> to vector<32x2xf32>
    %188 = arith.negf %187 : vector<32x2xf32>
    %189 = math.exp %188 : vector<32x2xf32>
    %cst_45 = arith.constant 1.000000e+00 : f32
    %190 = vector.broadcast %cst_45 : f32 to vector<32x2xf32>
    %191 = arith.addf %190, %189 : vector<32x2xf32>
    %192 = arith.divf %190, %191 : vector<32x2xf32>
    %193 = vector.extract_strided_slice %180 {offsets = [64, 0], sizes = [32, 2], strides = [1, 1]} : vector<128x2xf32> to vector<32x2xf32>
    %194 = math.tanh %193 : vector<32x2xf32>
    %195 = vector.extract_strided_slice %180 {offsets = [96, 0], sizes = [32, 2], strides = [1, 1]} : vector<128x2xf32> to vector<32x2xf32>
    %196 = arith.negf %195 : vector<32x2xf32>
    %197 = math.exp %196 : vector<32x2xf32>
    %cst_46 = arith.constant 1.000000e+00 : f32
    %198 = vector.broadcast %cst_46 : f32 to vector<32x2xf32>
    %199 = arith.addf %198, %197 : vector<32x2xf32>
    %200 = arith.divf %198, %199 : vector<32x2xf32>
    %201 = arith.mulf %192, %162 : vector<32x2xf32>
    %202 = arith.mulf %186, %194 : vector<32x2xf32>
    %203 = arith.addf %201, %202 : vector<32x2xf32>
    %204 = math.tanh %203 : vector<32x2xf32>
    %205 = arith.mulf %200, %204 : vector<32x2xf32>
    %206 = arith.index_cast %c4_i32 : i32 to index
    %c0_47 = arith.constant 0 : index
    %c0_48 = arith.constant 0 : index
    %207 = vector.load %arg15[%206, %c0_47, %c0_48] : memref<8x32x2xf32, #tpu.memory_space<vmem>>, vector<1x32x2xf32>
    %208 = vector.shape_cast %207 : vector<1x32x2xf32> to vector<32x2xf32>
    %209 = vector.shape_cast %205 : vector<32x2xf32> to vector<1x32x2xf32>
    tpu.vector_store %arg15[%206, %c0_47, %c0_48], %209 {strides = array<i32>} : memref<8x32x2xf32, #tpu.memory_space<vmem>>, vector<1x32x2xf32>,
    %c5_i32 = arith.constant 5 : i32
    %210 = arith.index_cast %c5_i32 : i32 to index
    %c0_49 = arith.constant 0 : index
    %c0_50 = arith.constant 0 : index
    %211 = vector.load %arg1[%210, %c0_49, %c0_50] : memref<8x1x2xi32, #tpu.memory_space<vmem>>, vector<1x1x2xi32>
    %212 = vector.shape_cast %211 : vector<1x1x2xi32> to vector<1x2xi32>
    %213 = vector.broadcast %212 : vector<1x2xi32> to vector<128x2xi32>
    %214 = arith.cmpi eq, %2, %213 : vector<128x2xi32>
    %215 = arith.extui %214 : vector<128x2xi1> to vector<128x2xi32>
    %216 = arith.sitofp %215 : vector<128x2xi32> to vector<128x2xf32>
    %217 = arith.truncf %216 : vector<128x2xf32> to vector<128x2xbf16>
    %cst_51 = arith.constant dense<0.000000e+00> : vector<128x2xf32>
    %218 = tpu.matmul %0, %217, %cst_51 {dimension_numbers = #tpu.dot_dimension_numbers<[1], [0], [0], [1], [0, 0, 1, 1], [], []>} : vector<128x128xbf16>, vector<128x2xbf16>, vector<128x2xf32> -> vector<128x2xf32>
    %219 = arith.truncf %205 : vector<32x2xf32> to vector<32x2xbf16>
    %cst_52 = arith.constant dense<0.000000e+00> : vector<128x2xf32>
    %220 = tpu.matmul %1, %219, %cst_52 {dimension_numbers = #tpu.dot_dimension_numbers<[1], [0], [0], [1], [0, 0, 1, 1], [], []>} : vector<128x32xbf16>, vector<32x2xbf16>, vector<128x2xf32> -> vector<128x2xf32>
    %221 = arith.addf %218, %220 : vector<128x2xf32>
    %222 = vector.extract_strided_slice %221 {offsets = [0, 0], sizes = [32, 2], strides = [1, 1]} : vector<128x2xf32> to vector<32x2xf32>
    %223 = arith.negf %222 : vector<32x2xf32>
    %224 = math.exp %223 : vector<32x2xf32>
    %cst_53 = arith.constant 1.000000e+00 : f32
    %225 = vector.broadcast %cst_53 : f32 to vector<32x2xf32>
    %226 = arith.addf %225, %224 : vector<32x2xf32>
    %227 = arith.divf %225, %226 : vector<32x2xf32>
    %228 = vector.extract_strided_slice %221 {offsets = [32, 0], sizes = [32, 2], strides = [1, 1]} : vector<128x2xf32> to vector<32x2xf32>
    %229 = arith.negf %228 : vector<32x2xf32>
    %230 = math.exp %229 : vector<32x2xf32>
    %cst_54 = arith.constant 1.000000e+00 : f32
    %231 = vector.broadcast %cst_54 : f32 to vector<32x2xf32>
    %232 = arith.addf %231, %230 : vector<32x2xf32>
    %233 = arith.divf %231, %232 : vector<32x2xf32>
    %234 = vector.extract_strided_slice %221 {offsets = [64, 0], sizes = [32, 2], strides = [1, 1]} : vector<128x2xf32> to vector<32x2xf32>
    %235 = math.tanh %234 : vector<32x2xf32>
    %236 = vector.extract_strided_slice %221 {offsets = [96, 0], sizes = [32, 2], strides = [1, 1]} : vector<128x2xf32> to vector<32x2xf32>
    %237 = arith.negf %236 : vector<32x2xf32>
    %238 = math.exp %237 : vector<32x2xf32>
    %cst_55 = arith.constant 1.000000e+00 : f32
    %239 = vector.broadcast %cst_55 : f32 to vector<32x2xf32>
    %240 = arith.addf %239, %238 : vector<32x2xf32>
    %241 = arith.divf %239, %240 : vector<32x2xf32>
    %242 = arith.mulf %233, %203 : vector<32x2xf32>
    %243 = arith.mulf %227, %235 : vector<32x2xf32>
    %244 = arith.addf %242, %243 : vector<32x2xf32>
    %245 = math.tanh %244 : vector<32x2xf32>
    %246 = arith.mulf %241, %245 : vector<32x2xf32>
    %247 = arith.index_cast %c5_i32 : i32 to index
    %c0_56 = arith.constant 0 : index
    %c0_57 = arith.constant 0 : index
    %248 = vector.load %arg15[%247, %c0_56, %c0_57] : memref<8x32x2xf32, #tpu.memory_space<vmem>>, vector<1x32x2xf32>
    %249 = vector.shape_cast %248 : vector<1x32x2xf32> to vector<32x2xf32>
    %250 = vector.shape_cast %246 : vector<32x2xf32> to vector<1x32x2xf32>
    tpu.vector_store %arg15[%247, %c0_56, %c0_57], %250 {strides = array<i32>} : memref<8x32x2xf32, #tpu.memory_space<vmem>>, vector<1x32x2xf32>,
    %c6_i32 = arith.constant 6 : i32
    %251 = arith.index_cast %c6_i32 : i32 to index
    %c0_58 = arith.constant 0 : index
    %c0_59 = arith.constant 0 : index
    %252 = vector.load %arg1[%251, %c0_58, %c0_59] : memref<8x1x2xi32, #tpu.memory_space<vmem>>, vector<1x1x2xi32>
    %253 = vector.shape_cast %252 : vector<1x1x2xi32> to vector<1x2xi32>
    %254 = vector.broadcast %253 : vector<1x2xi32> to vector<128x2xi32>
    %255 = arith.cmpi eq, %2, %254 : vector<128x2xi32>
    %256 = arith.extui %255 : vector<128x2xi1> to vector<128x2xi32>
    %257 = arith.sitofp %256 : vector<128x2xi32> to vector<128x2xf32>
    %258 = arith.truncf %257 : vector<128x2xf32> to vector<128x2xbf16>
    %cst_60 = arith.constant dense<0.000000e+00> : vector<128x2xf32>
    %259 = tpu.matmul %0, %258, %cst_60 {dimension_numbers = #tpu.dot_dimension_numbers<[1], [0], [0], [1], [0, 0, 1, 1], [], []>} : vector<128x128xbf16>, vector<128x2xbf16>, vector<128x2xf32> -> vector<128x2xf32>
    %260 = arith.truncf %246 : vector<32x2xf32> to vector<32x2xbf16>
    %cst_61 = arith.constant dense<0.000000e+00> : vector<128x2xf32>
    %261 = tpu.matmul %1, %260, %cst_61 {dimension_numbers = #tpu.dot_dimension_numbers<[1], [0], [0], [1], [0, 0, 1, 1], [], []>} : vector<128x32xbf16>, vector<32x2xbf16>, vector<128x2xf32> -> vector<128x2xf32>
    %262 = arith.addf %259, %261 : vector<128x2xf32>
    %263 = vector.extract_strided_slice %262 {offsets = [0, 0], sizes = [32, 2], strides = [1, 1]} : vector<128x2xf32> to vector<32x2xf32>
    %264 = arith.negf %263 : vector<32x2xf32>
    %265 = math.exp %264 : vector<32x2xf32>
    %cst_62 = arith.constant 1.000000e+00 : f32
    %266 = vector.broadcast %cst_62 : f32 to vector<32x2xf32>
    %267 = arith.addf %266, %265 : vector<32x2xf32>
    %268 = arith.divf %266, %267 : vector<32x2xf32>
    %269 = vector.extract_strided_slice %262 {offsets = [32, 0], sizes = [32, 2], strides = [1, 1]} : vector<128x2xf32> to vector<32x2xf32>
    %270 = arith.negf %269 : vector<32x2xf32>
    %271 = math.exp %270 : vector<32x2xf32>
    %cst_63 = arith.constant 1.000000e+00 : f32
    %272 = vector.broadcast %cst_63 : f32 to vector<32x2xf32>
    %273 = arith.addf %272, %271 : vector<32x2xf32>
    %274 = arith.divf %272, %273 : vector<32x2xf32>
    %275 = vector.extract_strided_slice %262 {offsets = [64, 0], sizes = [32, 2], strides = [1, 1]} : vector<128x2xf32> to vector<32x2xf32>
    %276 = math.tanh %275 : vector<32x2xf32>
    %277 = vector.extract_strided_slice %262 {offsets = [96, 0], sizes = [32, 2], strides = [1, 1]} : vector<128x2xf32> to vector<32x2xf32>
    %278 = arith.negf %277 : vector<32x2xf32>
    %279 = math.exp %278 : vector<32x2xf32>
    %cst_64 = arith.constant 1.000000e+00 : f32
    %280 = vector.broadcast %cst_64 : f32 to vector<32x2xf32>
    %281 = arith.addf %280, %279 : vector<32x2xf32>
    %282 = arith.divf %280, %281 : vector<32x2xf32>
    %283 = arith.mulf %274, %244 : vector<32x2xf32>
    %284 = arith.mulf %268, %276 : vector<32x2xf32>
    %285 = arith.addf %283, %284 : vector<32x2xf32>
    %286 = math.tanh %285 : vector<32x2xf32>
    %287 = arith.mulf %282, %286 : vector<32x2xf32>
    %288 = arith.index_cast %c6_i32 : i32 to index
    %c0_65 = arith.constant 0 : index
    %c0_66 = arith.constant 0 : index
    %289 = vector.load %arg15[%288, %c0_65, %c0_66] : memref<8x32x2xf32, #tpu.memory_space<vmem>>, vector<1x32x2xf32>
    %290 = vector.shape_cast %289 : vector<1x32x2xf32> to vector<32x2xf32>
    %291 = vector.shape_cast %287 : vector<32x2xf32> to vector<1x32x2xf32>
    tpu.vector_store %arg15[%288, %c0_65, %c0_66], %291 {strides = array<i32>} : memref<8x32x2xf32, #tpu.memory_space<vmem>>, vector<1x32x2xf32>,
    %c7_i32 = arith.constant 7 : i32
    %292 = arith.index_cast %c7_i32 : i32 to index
    %c0_67 = arith.constant 0 : index
    %c0_68 = arith.constant 0 : index
    %293 = vector.load %arg1[%292, %c0_67, %c0_68] : memref<8x1x2xi32, #tpu.memory_space<vmem>>, vector<1x1x2xi32>
    %294 = vector.shape_cast %293 : vector<1x1x2xi32> to vector<1x2xi32>
    %295 = vector.broadcast %294 : vector<1x2xi32> to vector<128x2xi32>
    %296 = arith.cmpi eq, %2, %295 : vector<128x2xi32>
    %297 = arith.extui %296 : vector<128x2xi1> to vector<128x2xi32>
    %298 = arith.sitofp %297 : vector<128x2xi32> to vector<128x2xf32>
    %299 = arith.truncf %298 : vector<128x2xf32> to vector<128x2xbf16>
    %cst_69 = arith.constant dense<0.000000e+00> : vector<128x2xf32>
    %300 = tpu.matmul %0, %299, %cst_69 {dimension_numbers = #tpu.dot_dimension_numbers<[1], [0], [0], [1], [0, 0, 1, 1], [], []>} : vector<128x128xbf16>, vector<128x2xbf16>, vector<128x2xf32> -> vector<128x2xf32>
    %301 = arith.truncf %287 : vector<32x2xf32> to vector<32x2xbf16>
    %cst_70 = arith.constant dense<0.000000e+00> : vector<128x2xf32>
    %302 = tpu.matmul %1, %301, %cst_70 {dimension_numbers = #tpu.dot_dimension_numbers<[1], [0], [0], [1], [0, 0, 1, 1], [], []>} : vector<128x32xbf16>, vector<32x2xbf16>, vector<128x2xf32> -> vector<128x2xf32>
    %303 = arith.addf %300, %302 : vector<128x2xf32>
    %304 = vector.extract_strided_slice %303 {offsets = [0, 0], sizes = [32, 2], strides = [1, 1]} : vector<128x2xf32> to vector<32x2xf32>
    %305 = arith.negf %304 : vector<32x2xf32>
    %306 = math.exp %305 : vector<32x2xf32>
    %cst_71 = arith.constant 1.000000e+00 : f32
    %307 = vector.broadcast %cst_71 : f32 to vector<32x2xf32>
    %308 = arith.addf %307, %306 : vector<32x2xf32>
    %309 = arith.divf %307, %308 : vector<32x2xf32>
    %310 = vector.extract_strided_slice %303 {offsets = [32, 0], sizes = [32, 2], strides = [1, 1]} : vector<128x2xf32> to vector<32x2xf32>
    %311 = arith.negf %310 : vector<32x2xf32>
    %312 = math.exp %311 : vector<32x2xf32>
    %cst_72 = arith.constant 1.000000e+00 : f32
    %313 = vector.broadcast %cst_72 : f32 to vector<32x2xf32>
    %314 = arith.addf %313, %312 : vector<32x2xf32>
    %315 = arith.divf %313, %314 : vector<32x2xf32>
    %316 = vector.extract_strided_slice %303 {offsets = [64, 0], sizes = [32, 2], strides = [1, 1]} : vector<128x2xf32> to vector<32x2xf32>
    %317 = math.tanh %316 : vector<32x2xf32>
    %318 = vector.extract_strided_slice %303 {offsets = [96, 0], sizes = [32, 2], strides = [1, 1]} : vector<128x2xf32> to vector<32x2xf32>
    %319 = arith.negf %318 : vector<32x2xf32>
    %320 = math.exp %319 : vector<32x2xf32>
    %cst_73 = arith.constant 1.000000e+00 : f32
    %321 = vector.broadcast %cst_73 : f32 to vector<32x2xf32>
    %322 = arith.addf %321, %320 : vector<32x2xf32>
    %323 = arith.divf %321, %322 : vector<32x2xf32>
    %324 = arith.mulf %315, %285 : vector<32x2xf32>
    %325 = arith.mulf %309, %317 : vector<32x2xf32>
    %326 = arith.addf %324, %325 : vector<32x2xf32>
    %327 = math.tanh %326 : vector<32x2xf32>
    %328 = arith.mulf %323, %327 : vector<32x2xf32>
    %329 = arith.index_cast %c7_i32 : i32 to index
    %c0_74 = arith.constant 0 : index
    %c0_75 = arith.constant 0 : index
    %330 = vector.load %arg15[%329, %c0_74, %c0_75] : memref<8x32x2xf32, #tpu.memory_space<vmem>>, vector<1x32x2xf32>
    %331 = vector.shape_cast %330 : vector<1x32x2xf32> to vector<32x2xf32>
    %332 = vector.shape_cast %328 : vector<32x2xf32> to vector<1x32x2xf32>
    tpu.vector_store %arg15[%329, %c0_74, %c0_75], %332 {strides = array<i32>} : memref<8x32x2xf32, #tpu.memory_space<vmem>>, vector<1x32x2xf32>,
    %c8_i32 = arith.constant 8 : i32
    %c0_76 = arith.constant 0 : index
    %c0_77 = arith.constant 0 : index
    %c0_78 = arith.constant 0 : index
    %333 = vector.load %arg15[%c0_76, %c0_77, %c0_78] : memref<8x32x2xf32, #tpu.memory_space<vmem>>, vector<8x32x2xf32>
    %c0_79 = arith.constant 0 : index
    %c0_80 = arith.constant 0 : index
    %334 = vector.load %arg4[%c0_79, %c0_80] : memref<32x32xbf16, #tpu.memory_space<vmem>>, vector<32x32xbf16>
    %335 = arith.truncf %328 : vector<32x2xf32> to vector<32x2xbf16>
    %cst_81 = arith.constant dense<0.000000e+00> : vector<32x2xf32>
    %336 = tpu.matmul %334, %335, %cst_81 {dimension_numbers = #tpu.dot_dimension_numbers<[1], [0], [0], [1], [0, 0, 1, 1], [], []>} : vector<32x32xbf16>, vector<32x2xbf16>, vector<32x2xf32> -> vector<32x2xf32>
    %c0_82 = arith.constant 0 : index
    %c0_83 = arith.constant 0 : index
    %337 = vector.load %arg5[%c0_82, %c0_83] : memref<32x1xf32, #tpu.memory_space<vmem>>, vector<32x1xf32>
    %338 = vector.broadcast %337 : vector<32x1xf32> to vector<32x2xf32>
    %339 = arith.mulf %338, %328 : vector<32x2xf32>
    %cst_84 = arith.constant dense<0.000000e+00> : vector<2xf32>
    %340 = vector.multi_reduction <add>, %339, %cst_84 [0] : vector<32x2xf32> to vector<2xf32>
    %341 = vector.shape_cast %340 : vector<2xf32> to vector<1x2xf32>
    %342 = vector.shape_cast %336 : vector<32x2xf32> to vector<1x32x2xf32>
    %343 = vector.broadcast %342 : vector<1x32x2xf32> to vector<8x32x2xf32>
    %344 = arith.mulf %333, %343 : vector<8x32x2xf32>
    %cst_85 = arith.constant dense<0.000000e+00> : vector<8x2xf32>
    %345 = vector.multi_reduction <add>, %344, %cst_85 [1] : vector<8x32x2xf32> to vector<8x2xf32>
    %346 = vector.broadcast %341 : vector<1x2xf32> to vector<8x2xf32>
    %347 = arith.addf %345, %346 : vector<8x2xf32>
    %cst_86 = arith.constant dense<0xFF800000> : vector<2xf32>
    %348 = vector.multi_reduction <maximumf>, %347, %cst_86 [0] : vector<8x2xf32> to vector<2xf32>
    %349 = vector.shape_cast %348 : vector<2xf32> to vector<1x2xf32>
    %350 = vector.broadcast %349 : vector<1x2xf32> to vector<8x2xf32>
    %351 = arith.subf %347, %350 : vector<8x2xf32>
    %352 = math.exp %351 : vector<8x2xf32>
    %cst_87 = arith.constant dense<0.000000e+00> : vector<2xf32>
    %353 = vector.multi_reduction <add>, %352, %cst_87 [0] : vector<8x2xf32> to vector<2xf32>
    %354 = vector.shape_cast %353 : vector<2xf32> to vector<1x2xf32>
    %355 = tpu.reciprocal %354 {approx = true} : vector<1x2xf32> -> vector<1x2xf32>
    %356 = vector.broadcast %355 : vector<1x2xf32> to vector<8x2xf32>
    %357 = arith.mulf %352, %356 : vector<8x2xf32>
    %358 = vector.shape_cast %357 : vector<8x2xf32> to vector<8x1x2xf32>
    %359 = vector.broadcast %358 : vector<8x1x2xf32> to vector<8x32x2xf32>
    %360 = arith.mulf %333, %359 : vector<8x32x2xf32>
    %cst_88 = arith.constant dense<0.000000e+00> : vector<32x2xf32>
    %361 = vector.multi_reduction <add>, %360, %cst_88 [0] : vector<8x32x2xf32> to vector<32x2xf32>
    %c0_89 = arith.constant 0 : index
    %c0_90 = arith.constant 0 : index
    %362 = vector.load %arg6[%c0_89, %c0_90] : memref<32x32xbf16, #tpu.memory_space<vmem>>, vector<32x32xbf16>
    %363 = arith.truncf %361 : vector<32x2xf32> to vector<32x2xbf16>
    %cst_91 = arith.constant dense<0.000000e+00> : vector<32x2xf32>
    %364 = tpu.matmul %362, %363, %cst_91 {dimension_numbers = #tpu.dot_dimension_numbers<[1], [0], [0], [1], [0, 0, 1, 1], [], []>} : vector<32x32xbf16>, vector<32x2xbf16>, vector<32x2xf32> -> vector<32x2xf32>
    %c0_92 = arith.constant 0 : index
    %c0_93 = arith.constant 0 : index
    %365 = vector.load %arg7[%c0_92, %c0_93] : memref<32x32xbf16, #tpu.memory_space<vmem>>, vector<32x32xbf16>
    %366 = arith.truncf %328 : vector<32x2xf32> to vector<32x2xbf16>
    %cst_94 = arith.constant dense<0.000000e+00> : vector<32x2xf32>
    %367 = tpu.matmul %365, %366, %cst_94 {dimension_numbers = #tpu.dot_dimension_numbers<[1], [0], [0], [1], [0, 0, 1, 1], [], []>} : vector<32x32xbf16>, vector<32x2xbf16>, vector<32x2xf32> -> vector<32x2xf32>
    %368 = arith.addf %364, %367 : vector<32x2xf32>
    %c0_95 = arith.constant 0 : index
    %c0_96 = arith.constant 0 : index
    %369 = vector.load %arg8[%c0_95, %c0_96] : memref<32x1xf32, #tpu.memory_space<vmem>>, vector<32x1xf32>
    %370 = vector.broadcast %369 : vector<32x1xf32> to vector<32x2xf32>
    %371 = arith.addf %368, %370 : vector<32x2xf32>
    %372 = math.tanh %371 : vector<32x2xf32>
    %c0_97 = arith.constant 0 : index
    %c0_98 = arith.constant 0 : index
    %373 = vector.load %arg9[%c0_97, %c0_98] : memref<128x32xbf16, #tpu.memory_space<vmem>>, vector<128x32xbf16>
    %374 = arith.truncf %372 : vector<32x2xf32> to vector<32x2xbf16>
    %cst_99 = arith.constant dense<0.000000e+00> : vector<128x2xf32>
    %375 = tpu.matmul %373, %374, %cst_99 {dimension_numbers = #tpu.dot_dimension_numbers<[1], [0], [0], [1], [0, 0, 1, 1], [], []>} : vector<128x32xbf16>, vector<32x2xbf16>, vector<128x2xf32> -> vector<128x2xf32>
    %c0_100 = arith.constant 0 : index
    %c0_101 = arith.constant 0 : index
    %376 = vector.load %arg10[%c0_100, %c0_101] : memref<128x1xf32, #tpu.memory_space<vmem>>, vector<128x1xf32>
    %377 = vector.broadcast %376 : vector<128x1xf32> to vector<128x2xf32>
    %378 = arith.addf %375, %377 : vector<128x2xf32>
    %379 = math.tanh %378 : vector<128x2xf32>
    %c0_102 = arith.constant 0 : index
    %c0_103 = arith.constant 0 : index
    %380 = vector.load %arg11[%c0_102, %c0_103] : memref<128x1xf32, #tpu.memory_space<vmem>>, vector<128x1xf32>
    %381 = vector.broadcast %380 : vector<128x1xf32> to vector<128x2xf32>
    %382 = arith.mulf %379, %381 : vector<128x2xf32>
    %cst_104 = arith.constant dense<0.000000e+00> : vector<2xf32>
    %383 = vector.multi_reduction <add>, %382, %cst_104 [0] : vector<128x2xf32> to vector<2xf32>
    %384 = vector.shape_cast %383 : vector<2xf32> to vector<1x2xf32>
    %c0_105 = arith.constant 0 : index
    %c0_106 = arith.constant 0 : index
    %385 = vector.load %arg12[%c0_105, %c0_106] : memref<1x1xf32, #tpu.memory_space<vmem>>, vector<1x1xf32>
    %386 = vector.broadcast %385 : vector<1x1xf32> to vector<1x2xf32>
    %387 = arith.addf %384, %386 : vector<1x2xf32>
    %c0_107 = arith.constant 0 : index
    %c0_108 = arith.constant 0 : index
    %388 = vector.load %arg13[%c0_107, %c0_108] : memref<1x2xf32, #tpu.memory_space<vmem>>, vector<1x2xf32>
    tpu.vector_store %arg13[%c0_107, %c0_108], %387 {strides = array<i32>} : memref<1x2xf32, #tpu.memory_space<vmem>>, vector<1x2xf32>,
    %c0_109 = arith.constant 0 : index
    %c0_110 = arith.constant 0 : index
    %389 = vector.load %arg14[%c0_109, %c0_110] : memref<8x2xf32, #tpu.memory_space<vmem>>, vector<8x2xf32>
    tpu.vector_store %arg14[%c0_109, %c0_110], %357 {strides = array<i32>} : memref<8x2xf32, #tpu.memory_space<vmem>>, vector<8x2xf32>,
    return
  }
  func.func @transform_0(%arg0: i32) -> (i32, i32, i32) {
    %c0_i32 = arith.constant 0 : i32
    %c0_i32_0 = arith.constant 0 : i32
    %c0_i32_1 = arith.constant 0 : i32
    return %c0_i32, %c0_i32_0, %arg0 : i32, i32, i32
  }
  func.func @transform_1(%arg0: i32) -> (i32, i32) {
    %c0_i32 = arith.constant 0 : i32
    %c0_i32_0 = arith.constant 0 : i32
    %c0_i32_1 = arith.constant 0 : i32
    return %c0_i32, %c0_i32_0 : i32, i32
  }
  func.func @transform_2(%arg0: i32) -> (i32, i32) {
    %c0_i32 = arith.constant 0 : i32
    %c0_i32_0 = arith.constant 0 : i32
    %c0_i32_1 = arith.constant 0 : i32
    return %c0_i32, %c0_i32_0 : i32, i32
  }
  func.func @transform_3(%arg0: i32) -> (i32, i32) {
    %c0_i32 = arith.constant 0 : i32
    %c0_i32_0 = arith.constant 0 : i32
    %c0_i32_1 = arith.constant 0 : i32
    return %c0_i32, %c0_i32_0 : i32, i32
  }
  func.func @transform_4(%arg0: i32) -> (i32, i32) {
    %c0_i32 = arith.constant 0 : i32
    %c0_i32_0 = arith.constant 0 : i32
    %c0_i32_1 = arith.constant 0 : i32
    return %c0_i32, %c0_i32_0 : i32, i32
  }
  func.func @transform_5(%arg0: i32) -> (i32, i32) {
    %c0_i32 = arith.constant 0 : i32
    %c0_i32_0 = arith.constant 0 : i32
    %c0_i32_1 = arith.constant 0 : i32
    return %c0_i32, %c0_i32_0 : i32, i32
  }
  func.func @transform_6(%arg0: i32) -> (i32, i32) {
    %c0_i32 = arith.constant 0 : i32
    %c0_i32_0 = arith.constant 0 : i32
    %c0_i32_1 = arith.constant 0 : i32
    return %c0_i32, %c0_i32_0 : i32, i32
  }
  func.func @transform_7(%arg0: i32) -> (i32, i32) {
    %c0_i32 = arith.constant 0 : i32
    %c0_i32_0 = arith.constant 0 : i32
    %c0_i32_1 = arith.constant 0 : i32
    return %c0_i32, %c0_i32_0 : i32, i32
  }
  func.func @transform_8(%arg0: i32) -> (i32, i32) {
    %c0_i32 = arith.constant 0 : i32
    %c0_i32_0 = arith.constant 0 : i32
    %c0_i32_1 = arith.constant 0 : i32
    return %c0_i32, %c0_i32_0 : i32, i32
  }
  func.func @transform_9(%arg0: i32) -> (i32, i32) {
    %c0_i32 = arith.constant 0 : i32
    %c0_i32_0 = arith.constant 0 : i32
    %c0_i32_1 = arith.constant 0 : i32
    return %c0_i32, %c0_i32_0 : i32, i32
  }
  func.func @transform_10(%arg0: i32) -> (i32, i32) {
    %c0_i32 = arith.constant 0 : i32
    %c0_i32_0 = arith.constant 0 : i32
    %c0_i32_1 = arith.constant 0 : i32
    return %c0_i32, %c0_i32_0 : i32, i32
  }
  func.func @transform_11(%arg0: i32) -> (i32, i32) {
    %c0_i32 = arith.constant 0 : i32
    %c0_i32_0 = arith.constant 0 : i32
    %c0_i32_1 = arith.constant 0 : i32
    return %c0_i32, %c0_i32_0 : i32, i32
  }
  func.func @transform_12(%arg0: i32) -> (i32, i32) {
    %c0_i32 = arith.constant 0 : i32
    %c0_i32_0 = arith.constant 0 : i32
    return %c0_i32, %arg0 : i32, i32
  }
  func.func @transform_13(%arg0: i32) -> (i32, i32) {
    %c0_i32 = arith.constant 0 : i32
    %c0_i32_0 = arith.constant 0 : i32
    return %c0_i32, %arg0 : i32, i32
  }
}

</mosaic_0001>

<llo_original>
// kernel: tpu_custom_call.1
$region0: #{tpu_custom_call.1}
  #allocation0 [shape = 'u32[]', space=smem, size = 0x4, offset = 0x4, fixed_abs, tag = 'smem constant byte address 0x4 - core index']
  #allocation1 [shape = 'u32[72,128]{1,0:T(1,128)}', space=vmem, size = 0x9000, scoped, tag = 'internal scratch']
  #allocation2 [shape = 'f32[8,32,2]{2,1,0:T(8,128)}', space=vmem, size = 0x20000, scoped, tag = 'scratch operand']
  #allocation3 [shape = 'f32[1,1]{1,0:T(1,128)S(1)}', space=vmem, size = 0x200, scoped, tag = 'scoped memory for tpu_custom_call.1']
  %s0 = inlined_call_operand.vmem [shape: s32[8,1,2], index: 0, kind: input, shape index: {}]
  %s1 = inlined_call_operand.vmem [shape: bf16[128,128], index: 1, kind: input, shape index: {}]
  %s2 = inlined_call_operand.vmem [shape: bf16[128,32], index: 2, kind: input, shape index: {}]
  %s3 = inlined_call_operand.vmem [shape: bf16[32,32], index: 3, kind: input, shape index: {}]
  %s4 = inlined_call_operand.vmem [shape: f32[32,1], index: 4, kind: input, shape index: {}]
  %s5 = inlined_call_operand.vmem [shape: bf16[32,32], index: 5, kind: input, shape index: {}]
  %s6 = inlined_call_operand.vmem [shape: bf16[32,32], index: 6, kind: input, shape index: {}]
  %s7 = inlined_call_operand.vmem [shape: f32[32,1], index: 7, kind: input, shape index: {}]
  %s8 = inlined_call_operand.vmem [shape: bf16[128,32], index: 8, kind: input, shape index: {}]
  %s9 = inlined_call_operand.vmem [shape: f32[128,1], index: 9, kind: input, shape index: {}]
  %s10 = inlined_call_operand.vmem [shape: f32[128,1], index: 10, kind: input, shape index: {}]
  %s11 = inlined_call_operand.<no memory space> [shape: f32[1,1], index: 11, kind: input, shape index: {}]
  %s12 = inlined_call_operand.hbm [shape: f32[1,2], index: 12, kind: output, shape index: {0}]
  %s13 = inlined_call_operand.vmem [shape: f32[8,2], index: 13, kind: output, shape index: {1}]
  %14 = xla_tuple %s12, %s13
  %s15 = sld [smem:[#allocation0]]
  $region66: #{tpu_custom_call.1} parent=0
    _
  %s17 = ssub.s32 1, %s15
  %s18 = scalar_select 0, %s17, %s15
  %v19 = vstv %s11
  %20 = vst [vmem:[#allocation3] sm:$0x1] %v19
  $region1: #{tpu_custom_call.1} parent=0
    #allocation4 [shape = 'u8[512]{0}', space=vmem, size = 0x400, scoped, tag = 'output window, operand 0, single buffered']
    #allocation5 [shape = 's32[1]{0}', space=sflag, size = 0x4, scoped, tag = 'scoped memory for tpu_custom_call.1']
    %21 = vsyncpa [#allocation5], 0
    // Predicated region
    $region2: #{tpu_custom_call.1} parent=1 // pred_check
      _
    $region3: #{tpu_custom_call.1} parent=1 // pred_check_branch
      %23 = sbr.rel (0) target = $region5
    $region4: #{tpu_custom_call.1} parent=1 // pred_region
      _
    $region5: #{tpu_custom_call.1} parent=1 // pred_fallthru
      _
    // Predicated region
    $region6: #{tpu_custom_call.1} parent=1 // pred_check
      _
    $region7: #{tpu_custom_call.1} parent=1 // pred_check_branch
      %25 = sbr.rel (0) target = $region9
    $region8: #{tpu_custom_call.1} parent=1 // pred_region
      _
    $region9: #{tpu_custom_call.1} parent=1 // pred_fallthru
      _
    // Predicated region
    $region10: #{tpu_custom_call.1} parent=1 // pred_check
      _
    $region11: #{tpu_custom_call.1} parent=1 // pred_check_branch
      %27 = sbr.rel (0) target = $region13
    $region12: #{tpu_custom_call.1} parent=1 // pred_region
      _
    $region13: #{tpu_custom_call.1} parent=1 // pred_fallthru
      _
    // Predicated region
    $region14: #{tpu_custom_call.1} parent=1 // pred_check
      _
    $region15: #{tpu_custom_call.1} parent=1 // pred_check_branch
      %29 = sbr.rel (0) target = $region17
    $region16: #{tpu_custom_call.1} parent=1 // pred_region
      _
    $region17: #{tpu_custom_call.1} parent=1 // pred_fallthru
      _
    // Predicated region
    $region18: #{tpu_custom_call.1} parent=1 // pred_check
      _
    $region19: #{tpu_custom_call.1} parent=1 // pred_check_branch
      %31 = sbr.rel (0) target = $region21
    $region20: #{tpu_custom_call.1} parent=1 // pred_region
      _
    $region21: #{tpu_custom_call.1} parent=1 // pred_fallthru
      _
    // Predicated region
    $region22: #{tpu_custom_call.1} parent=1 // pred_check
      _
    $region23: #{tpu_custom_call.1} parent=1 // pred_check_branch
      %33 = sbr.rel (0) target = $region25
    $region24: #{tpu_custom_call.1} parent=1 // pred_region
      _
    $region25: #{tpu_custom_call.1} parent=1 // pred_fallthru
      _
    // Predicated region
    $region26: #{tpu_custom_call.1} parent=1 // pred_check
      _
    $region27: #{tpu_custom_call.1} parent=1 // pred_check_branch
      %35 = sbr.rel (0) target = $region29
    $region28: #{tpu_custom_call.1} parent=1 // pred_region
      _
    $region29: #{tpu_custom_call.1} parent=1 // pred_fallthru
      _
    // Predicated region
    $region30: #{tpu_custom_call.1} parent=1 // pred_check
      _
    $region31: #{tpu_custom_call.1} parent=1 // pred_check_branch
      %37 = sbr.rel (0) target = $region33
    $region32: #{tpu_custom_call.1} parent=1 // pred_region
      _
    $region33: #{tpu_custom_call.1} parent=1 // pred_fallthru
      _
    // Predicated region
    $region34: #{tpu_custom_call.1} parent=1 // pred_check
      _
    $region35: #{tpu_custom_call.1} parent=1 // pred_check_branch
      %39 = sbr.rel (0) target = $region37
    $region36: #{tpu_custom_call.1} parent=1 // pred_region
      _
    $region37: #{tpu_custom_call.1} parent=1 // pred_fallthru
      _
    // Predicated region
    $region38: #{tpu_custom_call.1} parent=1 // pred_check
      _
    $region39: #{tpu_custom_call.1} parent=1 // pred_check_branch
      %41 = sbr.rel (0) target = $region41
    $region40: #{tpu_custom_call.1} parent=1 // pred_region
      _
    $region41: #{tpu_custom_call.1} parent=1 // pred_fallthru
      _
    // Predicated region
    $region42: #{tpu_custom_call.1} parent=1 // pred_check
      _
    $region43: #{tpu_custom_call.1} parent=1 // pred_check_branch
      %43 = sbr.rel (0) target = $region45
    $region44: #{tpu_custom_call.1} parent=1 // pred_region
      _
    $region45: #{tpu_custom_call.1} parent=1 // pred_fallthru
      _
    // Predicated region
    $region46: #{tpu_custom_call.1} parent=1 // pred_check
      _
    $region47: #{tpu_custom_call.1} parent=1 // pred_check_branch
      %45 = sbr.rel (0) target = $region49
    $region48: #{tpu_custom_call.1} parent=1 // pred_region
      _
    $region49: #{tpu_custom_call.1} parent=1 // pred_fallthru
      _
    %v47 = vld [vmem:[%s1] sm:$0xf]
    %v48 = vld [vmem:[%s1 + $0x4] sm:$0xf]
    %v49 = vld [vmem:[%s1 + $0x8] sm:$0xf]
    %v50 = vld [vmem:[%s1 + $0xc] sm:$0xf]
    %v51 = vld [vmem:[%s1 + $0x10] sm:$0xf]
    %v52 = vld [vmem:[%s1 + $0x14] sm:$0xf]
    %v53 = vld [vmem:[%s1 + $0x18] sm:$0xf]
    %v54 = vld [vmem:[%s1 + $0x1c] sm:$0xf]
    %v55 = vld [vmem:[%s1 + $0x20] sm:$0xf]
    %v56 = vld [vmem:[%s1 + $0x24] sm:$0xf]
    %v57 = vld [vmem:[%s1 + $0x28] sm:$0xf]
    %v58 = vld [vmem:[%s1 + $0x2c] sm:$0xf]
    %v59 = vld [vmem:[%s1 + $0x30] sm:$0xf]
    %v60 = vld [vmem:[%s1 + $0x34] sm:$0xf]
    %v61 = vld [vmem:[%s1 + $0x38] sm:$0xf]
    %v62 = vld [vmem:[%s1 + $0x3c] sm:$0xf]
    %v63 = vld [vmem:[%s2] sm:$0xf]
    %v64 = vld [vmem:[%s2 + $0x4] sm:$0xf]
    %v65 = vld [vmem:[%s2 + $0x8] sm:$0xf]
    %v66 = vld [vmem:[%s2 + $0xc] sm:$0xf]
    %v67 = vld [vmem:[%s2 + $0x10] sm:$0xf]
    %v68 = vld [vmem:[%s2 + $0x14] sm:$0xf]
    %v69 = vld [vmem:[%s2 + $0x18] sm:$0xf]
    %v70 = vld [vmem:[%s2 + $0x1c] sm:$0xf]
    %v71 = vld [vmem:[%s2 + $0x20] sm:$0xf]
    %v72 = vld [vmem:[%s2 + $0x24] sm:$0xf]
    %v73 = vld [vmem:[%s2 + $0x28] sm:$0xf]
    %v74 = vld [vmem:[%s2 + $0x2c] sm:$0xf]
    %v75 = vld [vmem:[%s2 + $0x30] sm:$0xf]
    %v76 = vld [vmem:[%s2 + $0x34] sm:$0xf]
    %v77 = vld [vmem:[%s2 + $0x38] sm:$0xf]
    %v78 = vld [vmem:[%s2 + $0x3c] sm:$0xf]
    %v79 = vlaneseq
    %v80 = vshrl.u32 %v79, 7
    %v81 = vadd.s32 %v80, 8
    %v82 = vadd.s32 %v80, 16
    %v83 = vadd.s32 %v80, 24
    %v84 = vadd.s32 %v80, 32
    %v85 = vadd.s32 %v80, 40
    %v86 = vadd.s32 %v80, 48
    %v87 = vadd.s32 %v80, 56
    %v88 = vadd.s32 %v80, 64
    %v89 = vadd.s32 %v80, 72
    %v90 = vadd.s32 %v80, 80
    %v91 = vadd.s32 %v80, 88
    %v92 = vadd.s32 %v80, 96
    %v93 = vadd.s32 %v80, 104
    %v94 = vadd.s32 %v80, 112
    %v95 = vadd.s32 %v80, 120
    %v96 = vld [vmem:[%s0] sm:$0x1]
    %v97 = vperm.slane %v96, 0
    %vm98 = vcmp.eq.s32.totalorder %v80, %v97
    %vm99 = vcmp.eq.s32.totalorder %v81, %v97
    %vm100 = vcmp.eq.s32.totalorder %v82, %v97
    %vm101 = vcmp.eq.s32.totalorder %v83, %v97
    %vm102 = vcmp.eq.s32.totalorder %v84, %v97
    %vm103 = vcmp.eq.s32.totalorder %v85, %v97
    %vm104 = vcmp.eq.s32.totalorder %v86, %v97
    %vm105 = vcmp.eq.s32.totalorder %v87, %v97
    %vm106 = vcmp.eq.s32.totalorder %v88, %v97
    %vm107 = vcmp.eq.s32.totalorder %v89, %v97
    %vm108 = vcmp.eq.s32.totalorder %v90, %v97
    %vm109 = vcmp.eq.s32.totalorder %v91, %v97
    %vm110 = vcmp.eq.s32.totalorder %v92, %v97
    %vm111 = vcmp.eq.s32.totalorder %v93, %v97
    %vm112 = vcmp.eq.s32.totalorder %v94, %v97
    %vm113 = vcmp.eq.s32.totalorder %v95, %v97
    %v114 = vsel %vm98, 1, 0
    %v115 = vsel %vm99, 1, 0
    %v116 = vsel %vm100, 1, 0
    %v117 = vsel %vm101, 1, 0
    %v118 = vsel %vm102, 1, 0
    %v119 = vsel %vm103, 1, 0
    %v120 = vsel %vm104, 1, 0
    %v121 = vsel %vm105, 1, 0
    %v122 = vsel %vm106, 1, 0
    %v123 = vsel %vm107, 1, 0
    %v124 = vsel %vm108, 1, 0
    %v125 = vsel %vm109, 1, 0
    %v126 = vsel %vm110, 1, 0
    %v127 = vsel %vm111, 1, 0
    %v128 = vsel %vm112, 1, 0
    %v129 = vsel %vm113, 1, 0
    %v130 = vcvt.s32.f32 %v114
    %v131 = vcvt.s32.f32 %v115
    %v132 = vcvt.s32.f32 %v116
    %v133 = vcvt.s32.f32 %v117
    %v134 = vcvt.s32.f32 %v118
    %v135 = vcvt.s32.f32 %v119
    %v136 = vcvt.s32.f32 %v120
    %v137 = vcvt.s32.f32 %v121
    %v138 = vcvt.s32.f32 %v122
    %v139 = vcvt.s32.f32 %v123
    %v140 = vcvt.s32.f32 %v124
    %v141 = vcvt.s32.f32 %v125
    %v142 = vcvt.s32.f32 %v126
    %v143 = vcvt.s32.f32 %v127
    %v144 = vcvt.s32.f32 %v128
    %v145 = vcvt.s32.f32 %v129
    %v146 = vpack.c.bf16 %v131, %v130
    %v147 = vpack.c.bf16 %v133, %v132
    %v148 = vpack.c.bf16 %v135, %v134
    %v149 = vpack.c.bf16 %v137, %v136
    %v150 = vpack.c.bf16 %v139, %v138
    %v151 = vpack.c.bf16 %v141, %v140
    %v152 = vpack.c.bf16 %v143, %v142
    %v153 = vpack.c.bf16 %v145, %v144
    %v170 = vunpack.c.l.b16 %v63
    %v171 = vunpack.c.l.b16 %v64
    %v172 = vunpack.c.l.b16 %v65
    %v173 = vunpack.c.l.b16 %v66
    %v174 = vunpack.c.l.b16 %v67
    %v175 = vunpack.c.l.b16 %v68
    %v176 = vunpack.c.l.b16 %v69
    %v177 = vunpack.c.l.b16 %v70
    %v178 = vunpack.c.l.b16 %v71
    %v179 = vunpack.c.l.b16 %v72
    %v180 = vunpack.c.l.b16 %v73
    %v181 = vunpack.c.l.b16 %v74
    %v182 = vunpack.c.l.b16 %v75
    %v183 = vunpack.c.l.b16 %v76
    %v184 = vunpack.c.l.b16 %v77
    %v185 = vunpack.c.l.b16 %v78
    %v186 = vpack.c.b16 %v171, %v170
    %v187 = vpack.c.b16 %v173, %v172
    %v188 = vpack.c.b16 %v175, %v174
    %v189 = vpack.c.b16 %v177, %v176
    %v190 = vpack.c.b16 %v179, %v178
    %v191 = vpack.c.b16 %v181, %v180
    %v192 = vpack.c.b16 %v183, %v182
    %v193 = vpack.c.b16 %v185, %v184
    %vm194 = vcmask 261120
    %v196 = vsel %vm194, %v186, 0
    %v199 = vsel %vm194, %v187, 0
    %v202 = vsel %vm194, %v188, 0
    %v205 = vsel %vm194, %v189, 0
    %v208 = vsel %vm194, %v190, 0
    %v211 = vsel %vm194, %v191, 0
    %v214 = vsel %vm194, %v192, 0
    %v217 = vsel %vm194, %v193, 0
    %219 = vmatpush.bf16.msra.mxu0 0
    %220 = vmatpush.bf16.msra.mxu0 0
    %221 = vmatpush.bf16.msra.mxu0 0
    %222 = vmatpush.bf16.msra.mxu0 0
    %223 = vmatpush.bf16.msra.mxu0 0
    %224 = vmatpush.bf16.msra.mxu0 0
    %225 = vmatpush.bf16.msra.mxu0 0
    %226 = vmatpush.bf16.msra.mxu0 0
    %227 = vmatmul.bf16.gmra.mxu0 %v196
    %v228 = vpop.f32.mrf.mxu0
    %v229 = vadd.f32 0.0, %v228
    %v230 = vpop.f32.mrf.mxu0
    %v231 = vadd.f32 0.0, %v230
    %232 = vmatmul.bf16.gmra.mxu0 %v199
    %v233 = vpop.f32.mrf.mxu0
    %v234 = vadd.f32 0.0, %v233
    %v235 = vpop.f32.mrf.mxu0
    %v236 = vadd.f32 0.0, %v235
    %237 = vmatmul.bf16.gmra.mxu0 %v202
    %v238 = vpop.f32.mrf.mxu0
    %v239 = vadd.f32 0.0, %v238
    %v240 = vpop.f32.mrf.mxu0
    %v241 = vadd.f32 0.0, %v240
    %242 = vmatmul.bf16.gmra.mxu0 %v205
    %v243 = vpop.f32.mrf.mxu0
    %v244 = vadd.f32 0.0, %v243
    %v245 = vpop.f32.mrf.mxu0
    %v246 = vadd.f32 0.0, %v245
    %247 = vmatmul.bf16.gmra.mxu0 %v208
    %v248 = vpop.f32.mrf.mxu0
    %v249 = vadd.f32 0.0, %v248
    %v250 = vpop.f32.mrf.mxu0
    %v251 = vadd.f32 0.0, %v250
    %252 = vmatmul.bf16.gmra.mxu0 %v211
    %v253 = vpop.f32.mrf.mxu0
    %v254 = vadd.f32 0.0, %v253
    %v255 = vpop.f32.mrf.mxu0
    %v256 = vadd.f32 0.0, %v255
    %257 = vmatmul.bf16.gmra.mxu0 %v214
    %v258 = vpop.f32.mrf.mxu0
    %v259 = vadd.f32 0.0, %v258
    %v260 = vpop.f32.mrf.mxu0
    %v261 = vadd.f32 0.0, %v260
    %262 = vmatmul.bf16.gmra.mxu0 %v217
    %v263 = vpop.f32.mrf.mxu0
    %v264 = vadd.f32 0.0, %v263
    %v265 = vpop.f32.mrf.mxu0
    %v266 = vadd.f32 0.0, %v265
    %267 = vdwg.mxu0
    %v284 = vunpack.c.l.b16 %v47
    %v285 = vunpack.c.l.b16 %v48
    %v286 = vunpack.c.l.b16 %v49
    %v287 = vunpack.c.l.b16 %v50
    %v288 = vunpack.c.l.b16 %v51
    %v289 = vunpack.c.l.b16 %v52
    %v290 = vunpack.c.l.b16 %v53
    %v291 = vunpack.c.l.b16 %v54
    %v292 = vunpack.c.l.b16 %v55
    %v293 = vunpack.c.l.b16 %v56
    %v294 = vunpack.c.l.b16 %v57
    %v295 = vunpack.c.l.b16 %v58
    %v296 = vunpack.c.l.b16 %v59
    %v297 = vunpack.c.l.b16 %v60
    %v298 = vunpack.c.l.b16 %v61
    %v299 = vunpack.c.l.b16 %v62
    %v300 = vpack.c.b16 %v285, %v284
    %v301 = vpack.c.b16 %v287, %v286
    %v302 = vpack.c.b16 %v289, %v288
    %v303 = vpack.c.b16 %v291, %v290
    %v304 = vpack.c.b16 %v293, %v292
    %v305 = vpack.c.b16 %v295, %v294
    %v306 = vpack.c.b16 %v297, %v296
    %v307 = vpack.c.b16 %v299, %v298
    %316 = vmatpush.bf16.msra.mxu0 %v153
    %317 = vmatpush.bf16.msra.mxu0 %v152
    %318 = vmatpush.bf16.msra.mxu0 %v151
    %319 = vmatpush.bf16.msra.mxu0 %v150
    %320 = vmatpush.bf16.msra.mxu0 %v149
    %321 = vmatpush.bf16.msra.mxu0 %v148
    %322 = vmatpush.bf16.msra.mxu0 %v147
    %323 = vmatpush.bf16.msra.mxu0 %v146
    %324 = vmatmul.bf16.gmra.mxu0 %v300
    %v325 = vpop.f32.mrf.mxu0
    %v326 = vadd.f32 %v229, %v325
    %v327 = vpop.f32.mrf.mxu0
    %v328 = vadd.f32 %v231, %v327
    %329 = vmatmul.bf16.gmra.mxu0 %v301
    %v330 = vpop.f32.mrf.mxu0
    %v331 = vadd.f32 %v234, %v330
    %v332 = vpop.f32.mrf.mxu0
    %v333 = vadd.f32 %v236, %v332
    %334 = vmatmul.bf16.gmra.mxu0 %v302
    %v335 = vpop.f32.mrf.mxu0
    %v336 = vadd.f32 %v239, %v335
    %v337 = vpop.f32.mrf.mxu0
    %v338 = vadd.f32 %v241, %v337
    %339 = vmatmul.bf16.gmra.mxu0 %v303
    %v340 = vpop.f32.mrf.mxu0
    %v341 = vadd.f32 %v244, %v340
    %v342 = vpop.f32.mrf.mxu0
    %v343 = vadd.f32 %v246, %v342
    %344 = vmatmul.bf16.gmra.mxu0 %v304
    %v345 = vpop.f32.mrf.mxu0
    %v346 = vadd.f32 %v249, %v345
    %v347 = vpop.f32.mrf.mxu0
    %v348 = vadd.f32 %v251, %v347
    %349 = vmatmul.bf16.gmra.mxu0 %v305
    %v350 = vpop.f32.mrf.mxu0
    %v351 = vadd.f32 %v254, %v350
    %v352 = vpop.f32.mrf.mxu0
    %v353 = vadd.f32 %v256, %v352
    %354 = vmatmul.bf16.gmra.mxu0 %v306
    %v355 = vpop.f32.mrf.mxu0
    %v356 = vadd.f32 %v259, %v355
    %v357 = vpop.f32.mrf.mxu0
    %v358 = vadd.f32 %v261, %v357
    %359 = vmatmul.bf16.gmra.mxu0 %v307
    %v360 = vpop.f32.mrf.mxu0
    %v361 = vadd.f32 %v264, %v360
    %v362 = vpop.f32.mrf.mxu0
    %v363 = vadd.f32 %v266, %v362
    %364 = vdwg.mxu0
    %v365 = vxor.u32 %v326, 2147483648
    %v366 = vxor.u32 %v328, 2147483648
    %v367 = vxor.u32 %v331, 2147483648
    %v368 = vxor.u32 %v333, 2147483648
    %v369 = vmul.f32 %v365, 1.442695
    %v370 = vpow.pop %v369
    %v371 = vmul.f32 %v366, 1.442695
    %v372 = vpow.pop %v371
    %v373 = vmul.f32 %v367, 1.442695
    %v374 = vpow.pop %v373
    %v375 = vmul.f32 %v368, 1.442695
    %v376 = vpow.pop %v375
    %v377 = vadd.f32 %v370, 1.0
    %v378 = vadd.f32 %v372, 1.0
    %v379 = vadd.f32 %v374, 1.0
    %v380 = vadd.f32 %v376, 1.0
    %v381 = vrcp.pop %v377
    %v382 = vmul.f32 %v377, %v381
    %v383 = vsub.f32 1.0, %v382
    %v384 = vmul.f32 %v381, %v383
    %v385 = vadd.f32 %v381, %v384
    %vm386 = vweird.f32 %v377
    %vm387 = vweird.f32 %v381
    %vm388 = vmor %vm386, %vm387
    %v389 = vsel %vm388, %v381, %v385
    %v390 = vand.u32 2147483647, %v377
    %vm391 = vcmp.eq.f32.partialorder %v390, 8.507059e+37
    %v392 = vand.u32 %v377, 2147483648
    %v393 = vor.u32 1.1754944e-38, %v392
    %v394 = vsel %vm391, %v393, %v389
    %v395 = vmul.f32 1.0, %v394
    %v396 = vrcp.pop %v378
    %v397 = vmul.f32 %v378, %v396
    %v398 = vsub.f32 1.0, %v397
    %v399 = vmul.f32 %v396, %v398
    %v400 = vadd.f32 %v396, %v399
    %vm401 = vweird.f32 %v378
    %vm402 = vweird.f32 %v396
    %vm403 = vmor %vm401, %vm402
    %v404 = vsel %vm403, %v396, %v400
    %v405 = vand.u32 2147483647, %v378
    %vm406 = vcmp.eq.f32.partialorder %v405, 8.507059e+37
    %v407 = vand.u32 %v378, 2147483648
    %v408 = vor.u32 1.1754944e-38, %v407
    %v409 = vsel %vm406, %v408, %v404
    %v410 = vmul.f32 1.0, %v409
    %v411 = vrcp.pop %v379
    %v412 = vmul.f32 %v379, %v411
    %v413 = vsub.f32 1.0, %v412
    %v414 = vmul.f32 %v411, %v413
    %v415 = vadd.f32 %v411, %v414
    %vm416 = vweird.f32 %v379
    %vm417 = vweird.f32 %v411
    %vm418 = vmor %vm416, %vm417
    %v419 = vsel %vm418, %v411, %v415
    %v420 = vand.u32 2147483647, %v379
    %vm421 = vcmp.eq.f32.partialorder %v420, 8.507059e+37
    %v422 = vand.u32 %v379, 2147483648
    %v423 = vor.u32 1.1754944e-38, %v422
    %v424 = vsel %vm421, %v423, %v419
    %v425 = vmul.f32 1.0, %v424
    %v426 = vrcp.pop %v380
    %v427 = vmul.f32 %v380, %v426
    %v428 = vsub.f32 1.0, %v427
    %v429 = vmul.f32 %v426, %v428
    %v430 = vadd.f32 %v426, %v429
    %vm431 = vweird.f32 %v380
    %vm432 = vweird.f32 %v426
    %vm433 = vmor %vm431, %vm432
    %v434 = vsel %vm433, %v426, %v430
    %v435 = vand.u32 2147483647, %v380
    %vm436 = vcmp.eq.f32.partialorder %v435, 8.507059e+37
    %v437 = vand.u32 %v380, 2147483648
    %v438 = vor.u32 1.1754944e-38, %v437
    %v439 = vsel %vm436, %v438, %v434
    %v440 = vmul.f32 1.0, %v439
    %v441 = vxor.u32 %v336, 2147483648
    %v442 = vxor.u32 %v338, 2147483648
    %v443 = vxor.u32 %v341, 2147483648
    %v444 = vxor.u32 %v343, 2147483648
    %v445 = vmul.f32 %v441, 1.442695
    %v446 = vpow.pop %v445
    %v447 = vmul.f32 %v442, 1.442695
    %v448 = vpow.pop %v447
    %v449 = vmul.f32 %v443, 1.442695
    %v450 = vpow.pop %v449
    %v451 = vmul.f32 %v444, 1.442695
    %v452 = vpow.pop %v451
    %v453 = vadd.f32 %v446, 1.0
    %v454 = vadd.f32 %v448, 1.0
    %v455 = vadd.f32 %v450, 1.0
    %v456 = vadd.f32 %v452, 1.0
    %v457 = vrcp.pop %v453
    %v458 = vmul.f32 %v453, %v457
    %v459 = vsub.f32 1.0, %v458
    %v460 = vmul.f32 %v457, %v459
    %v461 = vadd.f32 %v457, %v460
    %vm462 = vweird.f32 %v453
    %vm463 = vweird.f32 %v457
    %vm464 = vmor %vm462, %vm463
    %v465 = vsel %vm464, %v457, %v461
    %v466 = vand.u32 2147483647, %v453
    %vm467 = vcmp.eq.f32.partialorder %v466, 8.507059e+37
    %v468 = vand.u32 %v453, 2147483648
    %v469 = vor.u32 1.1754944e-38, %v468
    %v470 = vsel %vm467, %v469, %v465
    %v471 = vmul.f32 1.0, %v470
    %v472 = vrcp.pop %v454
    %v473 = vmul.f32 %v454, %v472
    %v474 = vsub.f32 1.0, %v473
    %v475 = vmul.f32 %v472, %v474
    %v476 = vadd.f32 %v472, %v475
    %vm477 = vweird.f32 %v454
    %vm478 = vweird.f32 %v472
    %vm479 = vmor %vm477, %vm478
    %v480 = vsel %vm479, %v472, %v476
    %v481 = vand.u32 2147483647, %v454
    %vm482 = vcmp.eq.f32.partialorder %v481, 8.507059e+37
    %v483 = vand.u32 %v454, 2147483648
    %v484 = vor.u32 1.1754944e-38, %v483
    %v485 = vsel %vm482, %v484, %v480
    %v486 = vmul.f32 1.0, %v485
    %v487 = vrcp.pop %v455
    %v488 = vmul.f32 %v455, %v487
    %v489 = vsub.f32 1.0, %v488
    %v490 = vmul.f32 %v487, %v489
    %v491 = vadd.f32 %v487, %v490
    %vm492 = vweird.f32 %v455
    %vm493 = vweird.f32 %v487
    %vm494 = vmor %vm492, %vm493
    %v495 = vsel %vm494, %v487, %v491
    %v496 = vand.u32 2147483647, %v455
    %vm497 = vcmp.eq.f32.partialorder %v496, 8.507059e+37
    %v498 = vand.u32 %v455, 2147483648
    %v499 = vor.u32 1.1754944e-38, %v498
    %v500 = vsel %vm497, %v499, %v495
    %v501 = vmul.f32 1.0, %v500
    %v502 = vrcp.pop %v456
    %v503 = vmul.f32 %v456, %v502
    %v504 = vsub.f32 1.0, %v503
    %v505 = vmul.f32 %v502, %v504
    %v506 = vadd.f32 %v502, %v505
    %vm507 = vweird.f32 %v456
    %vm508 = vweird.f32 %v502
    %vm509 = vmor %vm507, %vm508
    %v510 = vsel %vm509, %v502, %v506
    %v511 = vand.u32 2147483647, %v456
    %vm512 = vcmp.eq.f32.partialorder %v511, 8.507059e+37
    %v513 = vand.u32 %v456, 2147483648
    %v514 = vor.u32 1.1754944e-38, %v513
    %v515 = vsel %vm512, %v514, %v510
    %v516 = vmul.f32 1.0, %v515
    %v517 = vtanh.pop %v346
    %v518 = vtanh.pop %v348
    %v519 = vtanh.pop %v351
    %v520 = vtanh.pop %v353
    %v521 = vxor.u32 %v356, 2147483648
    %v522 = vxor.u32 %v358, 2147483648
    %v523 = vxor.u32 %v361, 2147483648
    %v524 = vxor.u32 %v363, 2147483648
    %v525 = vmul.f32 %v521, 1.442695
    %v526 = vpow.pop %v525
    %v527 = vmul.f32 %v522, 1.442695
    %v528 = vpow.pop %v527
    %v529 = vmul.f32 %v523, 1.442695
    %v530 = vpow.pop %v529
    %v531 = vmul.f32 %v524, 1.442695
    %v532 = vpow.pop %v531
    %v533 = vadd.f32 %v526, 1.0
    %v534 = vadd.f32 %v528, 1.0
    %v535 = vadd.f32 %v530, 1.0
    %v536 = vadd.f32 %v532, 1.0
    %v537 = vrcp.pop %v533
    %v538 = vmul.f32 %v533, %v537
    %v539 = vsub.f32 1.0, %v538
    %v540 = vmul.f32 %v537, %v539
    %v541 = vadd.f32 %v537, %v540
    %vm542 = vweird.f32 %v533
    %vm543 = vweird.f32 %v537
    %vm544 = vmor %vm542, %vm543
    %v545 = vsel %vm544, %v537, %v541
    %v546 = vand.u32 2147483647, %v533
    %vm547 = vcmp.eq.f32.partialorder %v546, 8.507059e+37
    %v548 = vand.u32 %v533, 2147483648
    %v549 = vor.u32 1.1754944e-38, %v548
    %v550 = vsel %vm547, %v549, %v545
    %v551 = vmul.f32 1.0, %v550
    %v552 = vrcp.pop %v534
    %v553 = vmul.f32 %v534, %v552
    %v554 = vsub.f32 1.0, %v553
    %v555 = vmul.f32 %v552, %v554
    %v556 = vadd.f32 %v552, %v555
    %vm557 = vweird.f32 %v534
    %vm558 = vweird.f32 %v552
    %vm559 = vmor %vm557, %vm558
    %v560 = vsel %vm559, %v552, %v556
    %v561 = vand.u32 2147483647, %v534
    %vm562 = vcmp.eq.f32.partialorder %v561, 8.507059e+37
    %v563 = vand.u32 %v534, 2147483648
    %v564 = vor.u32 1.1754944e-38, %v563
    %v565 = vsel %vm562, %v564, %v560
    %v566 = vmul.f32 1.0, %v565
    %v567 = vrcp.pop %v535
    %v568 = vmul.f32 %v535, %v567
    %v569 = vsub.f32 1.0, %v568
    %v570 = vmul.f32 %v567, %v569
    %v571 = vadd.f32 %v567, %v570
    %vm572 = vweird.f32 %v535
    %vm573 = vweird.f32 %v567
    %vm574 = vmor %vm572, %vm573
    %v575 = vsel %vm574, %v567, %v571
    %v576 = vand.u32 2147483647, %v535
    %vm577 = vcmp.eq.f32.partialorder %v576, 8.507059e+37
    %v578 = vand.u32 %v535, 2147483648
    %v579 = vor.u32 1.1754944e-38, %v578
    %v580 = vsel %vm577, %v579, %v575
    %v581 = vmul.f32 1.0, %v580
    %v582 = vrcp.pop %v536
    %v583 = vmul.f32 %v536, %v582
    %v584 = vsub.f32 1.0, %v583
    %v585 = vmul.f32 %v582, %v584
    %v586 = vadd.f32 %v582, %v585
    %vm587 = vweird.f32 %v536
    %vm588 = vweird.f32 %v582
    %vm589 = vmor %vm587, %vm588
    %v590 = vsel %vm589, %v582, %v586
    %v591 = vand.u32 2147483647, %v536
    %vm592 = vcmp.eq.f32.partialorder %v591, 8.507059e+37
    %v593 = vand.u32 %v536, 2147483648
    %v594 = vor.u32 1.1754944e-38, %v593
    %v595 = vsel %vm592, %v594, %v590
    %v596 = vmul.f32 1.0, %v595
    %v597 = vmul.f32 %v471, 0.0
    %v598 = vmul.f32 %v486, 0.0
    %v599 = vmul.f32 %v501, 0.0
    %v600 = vmul.f32 %v516, 0.0
    %v601 = vmul.f32 %v395, %v517
    %v602 = vmul.f32 %v410, %v518
    %v603 = vmul.f32 %v425, %v519
    %v604 = vmul.f32 %v440, %v520
    %v605 = vadd.f32 %v597, %v601
    %v606 = vadd.f32 %v598, %v602
    %v607 = vadd.f32 %v599, %v603
    %v608 = vadd.f32 %v600, %v604
    %v609 = vtanh.pop %v605
    %v610 = vtanh.pop %v606
    %v611 = vtanh.pop %v607
    %v612 = vtanh.pop %v608
    %v613 = vmul.f32 %v551, %v609
    %v614 = vmul.f32 %v566, %v610
    %v615 = vmul.f32 %v581, %v611
    %v616 = vmul.f32 %v596, %v612
    %vm617 = vcmask 15360
    %618 = vst.msk [vmem:[#allocation2] sm:$0xff] %vm617, %v613
    %619 = vst.msk [vmem:[#allocation2 + $0x8] sm:$0xff] %vm617, %v614
    %620 = vst.msk [vmem:[#allocation2 + $0x10] sm:$0xff] %vm617, %v615
    %621 = vst.msk [vmem:[#allocation2 + $0x18] sm:$0xff] %vm617, %v616
    %s622 = scalar_lea.vmem %s0, 1
    %v623 = vld [vmem:[%s622] sm:$0x1]
    %v624 = vperm.slane %v623, 0
    %vm625 = vcmp.eq.s32.totalorder %v80, %v624
    %vm626 = vcmp.eq.s32.totalorder %v81, %v624
    %vm627 = vcmp.eq.s32.totalorder %v82, %v624
    %vm628 = vcmp.eq.s32.totalorder %v83, %v624
    %vm629 = vcmp.eq.s32.totalorder %v84, %v624
    %vm630 = vcmp.eq.s32.totalorder %v85, %v624
    %vm631 = vcmp.eq.s32.totalorder %v86, %v624
    %vm632 = vcmp.eq.s32.totalorder %v87, %v624
    %vm633 = vcmp.eq.s32.totalorder %v88, %v624
    %vm634 = vcmp.eq.s32.totalorder %v89, %v624
    %vm635 = vcmp.eq.s32.totalorder %v90, %v624
    %vm636 = vcmp.eq.s32.totalorder %v91, %v624
    %vm637 = vcmp.eq.s32.totalorder %v92, %v624
    %vm638 = vcmp.eq.s32.totalorder %v93, %v624
    %vm639 = vcmp.eq.s32.totalorder %v94, %v624
    %vm640 = vcmp.eq.s32.totalorder %v95, %v624
    %v641 = vsel %vm625, 1, 0
    %v642 = vsel %vm626, 1, 0
    %v643 = vsel %vm627, 1, 0
    %v644 = vsel %vm628, 1, 0
    %v645 = vsel %vm629, 1, 0
    %v646 = vsel %vm630, 1, 0
    %v647 = vsel %vm631, 1, 0
    %v648 = vsel %vm632, 1, 0
    %v649 = vsel %vm633, 1, 0
    %v650 = vsel %vm634, 1, 0
    %v651 = vsel %vm635, 1, 0
    %v652 = vsel %vm636, 1, 0
    %v653 = vsel %vm637, 1, 0
    %v654 = vsel %vm638, 1, 0
    %v655 = vsel %vm639, 1, 0
    %v656 = vsel %vm640, 1, 0
    %v657 = vcvt.s32.f32 %v641
    %v658 = vcvt.s32.f32 %v642
    %v659 = vcvt.s32.f32 %v643
    %v660 = vcvt.s32.f32 %v644
    %v661 = vcvt.s32.f32 %v645
    %v662 = vcvt.s32.f32 %v646
    %v663 = vcvt.s32.f32 %v647
    %v664 = vcvt.s32.f32 %v648
    %v665 = vcvt.s32.f32 %v649
    %v666 = vcvt.s32.f32 %v650
    %v667 = vcvt.s32.f32 %v651
    %v668 = vcvt.s32.f32 %v652
    %v669 = vcvt.s32.f32 %v653
    %v670 = vcvt.s32.f32 %v654
    %v671 = vcvt.s32.f32 %v655
    %v672 = vcvt.s32.f32 %v656
    %v673 = vpack.c.bf16 %v658, %v657
    %v674 = vpack.c.bf16 %v660, %v659
    %v675 = vpack.c.bf16 %v662, %v661
    %v676 = vpack.c.bf16 %v664, %v663
    %v677 = vpack.c.bf16 %v666, %v665
    %v678 = vpack.c.bf16 %v668, %v667
    %v679 = vpack.c.bf16 %v670, %v669
    %v680 = vpack.c.bf16 %v672, %v671
    %v681 = vpack.c.bf16 %v614, %v613
    %v682 = vpack.c.bf16 %v616, %v615
    %683 = vmatpush.bf16.msra.mxu0 0
    %684 = vmatpush.bf16.msra.mxu0 0
    %685 = vmatpush.bf16.msra.mxu0 0
    %686 = vmatpush.bf16.msra.mxu0 0
    %687 = vmatpush.bf16.msra.mxu0 0
    %688 = vmatpush.bf16.msra.mxu0 0
    %689 = vmatpush.bf16.msra.mxu0 %v682
    %690 = vmatpush.bf16.msra.mxu0 %v681
    %691 = vmatmul.bf16.gmra.mxu0 %v196
    %v692 = vpop.f32.mrf.mxu0
    %v693 = vadd.f32 0.0, %v692
    %v694 = vpop.f32.mrf.mxu0
    %v695 = vadd.f32 0.0, %v694
    %696 = vmatmul.bf16.gmra.mxu0 %v199
    %v697 = vpop.f32.mrf.mxu0
    %v698 = vadd.f32 0.0, %v697
    %v699 = vpop.f32.mrf.mxu0
    %v700 = vadd.f32 0.0, %v699
    %701 = vmatmul.bf16.gmra.mxu0 %v202
    %v702 = vpop.f32.mrf.mxu0
    %v703 = vadd.f32 0.0, %v702
    %v704 = vpop.f32.mrf.mxu0
    %v705 = vadd.f32 0.0, %v704
    %706 = vmatmul.bf16.gmra.mxu0 %v205
    %v707 = vpop.f32.mrf.mxu0
    %v708 = vadd.f32 0.0, %v707
    %v709 = vpop.f32.mrf.mxu0
    %v710 = vadd.f32 0.0, %v709
    %711 = vmatmul.bf16.gmra.mxu0 %v208
    %v712 = vpop.f32.mrf.mxu0
    %v713 = vadd.f32 0.0, %v712
    %v714 = vpop.f32.mrf.mxu0
    %v715 = vadd.f32 0.0, %v714
    %716 = vmatmul.bf16.gmra.mxu0 %v211
    %v717 = vpop.f32.mrf.mxu0
    %v718 = vadd.f32 0.0, %v717
    %v719 = vpop.f32.mrf.mxu0
    %v720 = vadd.f32 0.0, %v719
    %721 = vmatmul.bf16.gmra.mxu0 %v214
    %v722 = vpop.f32.mrf.mxu0
    %v723 = vadd.f32 0.0, %v722
    %v724 = vpop.f32.mrf.mxu0
    %v725 = vadd.f32 0.0, %v724
    %726 = vmatmul.bf16.gmra.mxu0 %v217
    %v727 = vpop.f32.mrf.mxu0
    %v728 = vadd.f32 0.0, %v727
    %v729 = vpop.f32.mrf.mxu0
    %v730 = vadd.f32 0.0, %v729
    %731 = vdwg.mxu0
    %732 = vmatpush.bf16.msra.mxu0 %v680
    %733 = vmatpush.bf16.msra.mxu0 %v679
    %734 = vmatpush.bf16.msra.mxu0 %v678
    %735 = vmatpush.bf16.msra.mxu0 %v677
    %736 = vmatpush.bf16.msra.mxu0 %v676
    %737 = vmatpush.bf16.msra.mxu0 %v675
    %738 = vmatpush.bf16.msra.mxu0 %v674
    %739 = vmatpush.bf16.msra.mxu0 %v673
    %740 = vmatmul.bf16.gmra.mxu0 %v300
    %v741 = vpop.f32.mrf.mxu0
    %v742 = vadd.f32 %v693, %v741
    %v743 = vpop.f32.mrf.mxu0
    %v744 = vadd.f32 %v695, %v743
    %745 = vmatmul.bf16.gmra.mxu0 %v301
    %v746 = vpop.f32.mrf.mxu0
    %v747 = vadd.f32 %v698, %v746
    %v748 = vpop.f32.mrf.mxu0
    %v749 = vadd.f32 %v700, %v748
    %750 = vmatmul.bf16.gmra.mxu0 %v302
    %v751 = vpop.f32.mrf.mxu0
    %v752 = vadd.f32 %v703, %v751
    %v753 = vpop.f32.mrf.mxu0
    %v754 = vadd.f32 %v705, %v753
    %755 = vmatmul.bf16.gmra.mxu0 %v303
    %v756 = vpop.f32.mrf.mxu0
    %v757 = vadd.f32 %v708, %v756
    %v758 = vpop.f32.mrf.mxu0
    %v759 = vadd.f32 %v710, %v758
    %760 = vmatmul.bf16.gmra.mxu0 %v304
    %v761 = vpop.f32.mrf.mxu0
    %v762 = vadd.f32 %v713, %v761
    %v763 = vpop.f32.mrf.mxu0
    %v764 = vadd.f32 %v715, %v763
    %765 = vmatmul.bf16.gmra.mxu0 %v305
    %v766 = vpop.f32.mrf.mxu0
    %v767 = vadd.f32 %v718, %v766
    %v768 = vpop.f32.mrf.mxu0
    %v769 = vadd.f32 %v720, %v768
    %770 = vmatmul.bf16.gmra.mxu0 %v306
    %v771 = vpop.f32.mrf.mxu0
    %v772 = vadd.f32 %v723, %v771
    %v773 = vpop.f32.mrf.mxu0
    %v774 = vadd.f32 %v725, %v773
    %775 = vmatmul.bf16.gmra.mxu0 %v307
    %v776 = vpop.f32.mrf.mxu0
    %v777 = vadd.f32 %v728, %v776
    %v778 = vpop.f32.mrf.mxu0
    %v779 = vadd.f32 %v730, %v778
    %780 = vdwg.mxu0
    %v781 = vxor.u32 %v742, 2147483648
    %v782 = vxor.u32 %v744, 2147483648
    %v783 = vxor.u32 %v747, 2147483648
    %v784 = vxor.u32 %v749, 2147483648
    %v785 = vmul.f32 %v781, 1.442695
    %v786 = vpow.pop %v785
    %v787 = vmul.f32 %v782, 1.442695
    %v788 = vpow.pop %v787
    %v789 = vmul.f32 %v783, 1.442695
    %v790 = vpow.pop %v789
    %v791 = vmul.f32 %v784, 1.442695
    %v792 = vpow.pop %v791
    %v793 = vadd.f32 %v786, 1.0
    %v794 = vadd.f32 %v788, 1.0
    %v795 = vadd.f32 %v790, 1.0
    %v796 = vadd.f32 %v792, 1.0
    %v797 = vrcp.pop %v793
    %v798 = vmul.f32 %v793, %v797
    %v799 = vsub.f32 1.0, %v798
    %v800 = vmul.f32 %v797, %v799
    %v801 = vadd.f32 %v797, %v800
    %vm802 = vweird.f32 %v793
    %vm803 = vweird.f32 %v797
    %vm804 = vmor %vm802, %vm803
    %v805 = vsel %vm804, %v797, %v801
    %v806 = vand.u32 2147483647, %v793
    %vm807 = vcmp.eq.f32.partialorder %v806, 8.507059e+37
    %v808 = vand.u32 %v793, 2147483648
    %v809 = vor.u32 1.1754944e-38, %v808
    %v810 = vsel %vm807, %v809, %v805
    %v811 = vmul.f32 1.0, %v810
    %v812 = vrcp.pop %v794
    %v813 = vmul.f32 %v794, %v812
    %v814 = vsub.f32 1.0, %v813
    %v815 = vmul.f32 %v812, %v814
    %v816 = vadd.f32 %v812, %v815
    %vm817 = vweird.f32 %v794
    %vm818 = vweird.f32 %v812
    %vm819 = vmor %vm817, %vm818
    %v820 = vsel %vm819, %v812, %v816
    %v821 = vand.u32 2147483647, %v794
    %vm822 = vcmp.eq.f32.partialorder %v821, 8.507059e+37
    %v823 = vand.u32 %v794, 2147483648
    %v824 = vor.u32 1.1754944e-38, %v823
    %v825 = vsel %vm822, %v824, %v820
    %v826 = vmul.f32 1.0, %v825
    %v827 = vrcp.pop %v795
    %v828 = vmul.f32 %v795, %v827
    %v829 = vsub.f32 1.0, %v828
    %v830 = vmul.f32 %v827, %v829
    %v831 = vadd.f32 %v827, %v830
    %vm832 = vweird.f32 %v795
    %vm833 = vweird.f32 %v827
    %vm834 = vmor %vm832, %vm833
    %v835 = vsel %vm834, %v827, %v831
    %v836 = vand.u32 2147483647, %v795
    %vm837 = vcmp.eq.f32.partialorder %v836, 8.507059e+37
    %v838 = vand.u32 %v795, 2147483648
    %v839 = vor.u32 1.1754944e-38, %v838
    %v840 = vsel %vm837, %v839, %v835
    %v841 = vmul.f32 1.0, %v840
    %v842 = vrcp.pop %v796
    %v843 = vmul.f32 %v796, %v842
    %v844 = vsub.f32 1.0, %v843
    %v845 = vmul.f32 %v842, %v844
    %v846 = vadd.f32 %v842, %v845
    %vm847 = vweird.f32 %v796
    %vm848 = vweird.f32 %v842
    %vm849 = vmor %vm847, %vm848
    %v850 = vsel %vm849, %v842, %v846
    %v851 = vand.u32 2147483647, %v796
    %vm852 = vcmp.eq.f32.partialorder %v851, 8.507059e+37
    %v853 = vand.u32 %v796, 2147483648
    %v854 = vor.u32 1.1754944e-38, %v853
    %v855 = vsel %vm852, %v854, %v850
    %v856 = vmul.f32 1.0, %v855
    %v857 = vxor.u32 %v752, 2147483648
    %v858 = vxor.u32 %v754, 2147483648
    %v859 = vxor.u32 %v757, 2147483648
    %v860 = vxor.u32 %v759, 2147483648
    %v861 = vmul.f32 %v857, 1.442695
    %v862 = vpow.pop %v861
    %v863 = vmul.f32 %v858, 1.442695
    %v864 = vpow.pop %v863
    %v865 = vmul.f32 %v859, 1.442695
    %v866 = vpow.pop %v865
    %v867 = vmul.f32 %v860, 1.442695
    %v868 = vpow.pop %v867
    %v869 = vadd.f32 %v862, 1.0
    %v870 = vadd.f32 %v864, 1.0
    %v871 = vadd.f32 %v866, 1.0
    %v872 = vadd.f32 %v868, 1.0
    %v873 = vrcp.pop %v869
    %v874 = vmul.f32 %v869, %v873
    %v875 = vsub.f32 1.0, %v874
    %v876 = vmul.f32 %v873, %v875
    %v877 = vadd.f32 %v873, %v876
    %vm878 = vweird.f32 %v869
    %vm879 = vweird.f32 %v873
    %vm880 = vmor %vm878, %vm879
    %v881 = vsel %vm880, %v873, %v877
    %v882 = vand.u32 2147483647, %v869
    %vm883 = vcmp.eq.f32.partialorder %v882, 8.507059e+37
    %v884 = vand.u32 %v869, 2147483648
    %v885 = vor.u32 1.1754944e-38, %v884
    %v886 = vsel %vm883, %v885, %v881
    %v887 = vmul.f32 1.0, %v886
    %v888 = vrcp.pop %v870
    %v889 = vmul.f32 %v870, %v888
    %v890 = vsub.f32 1.0, %v889
    %v891 = vmul.f32 %v888, %v890
    %v892 = vadd.f32 %v888, %v891
    %vm893 = vweird.f32 %v870
    %vm894 = vweird.f32 %v888
    %vm895 = vmor %vm893, %vm894
    %v896 = vsel %vm895, %v888, %v892
    %v897 = vand.u32 2147483647, %v870
    %vm898 = vcmp.eq.f32.partialorder %v897, 8.507059e+37
    %v899 = vand.u32 %v870, 2147483648
    %v900 = vor.u32 1.1754944e-38, %v899
    %v901 = vsel %vm898, %v900, %v896
    %v902 = vmul.f32 1.0, %v901
    %v903 = vrcp.pop %v871
    %v904 = vmul.f32 %v871, %v903
    %v905 = vsub.f32 1.0, %v904
    %v906 = vmul.f32 %v903, %v905
    %v907 = vadd.f32 %v903, %v906
    %vm908 = vweird.f32 %v871
    %vm909 = vweird.f32 %v903
    %vm910 = vmor %vm908, %vm909
    %v911 = vsel %vm910, %v903, %v907
    %v912 = vand.u32 2147483647, %v871
    %vm913 = vcmp.eq.f32.partialorder %v912, 8.507059e+37
    %v914 = vand.u32 %v871, 2147483648
    %v915 = vor.u32 1.1754944e-38, %v914
    %v916 = vsel %vm913, %v915, %v911
    %v917 = vmul.f32 1.0, %v916
    %v918 = vrcp.pop %v872
    %v919 = vmul.f32 %v872, %v918
    %v920 = vsub.f32 1.0, %v919
    %v921 = vmul.f32 %v918, %v920
    %v922 = vadd.f32 %v918, %v921
    %vm923 = vweird.f32 %v872
    %vm924 = vweird.f32 %v918
    %vm925 = vmor %vm923, %vm924
    %v926 = vsel %vm925, %v918, %v922
    %v927 = vand.u32 2147483647, %v872
    %vm928 = vcmp.eq.f32.partialorder %v927, 8.507059e+37
    %v929 = vand.u32 %v872, 2147483648
    %v930 = vor.u32 1.1754944e-38, %v929
    %v931 = vsel %vm928, %v930, %v926
    %v932 = vmul.f32 1.0, %v931
    %v933 = vtanh.pop %v762
    %v934 = vtanh.pop %v764
    %v935 = vtanh.pop %v767
    %v936 = vtanh.pop %v769
    %v937 = vxor.u32 %v772, 2147483648
    %v938 = vxor.u32 %v774, 2147483648
    %v939 = vxor.u32 %v777, 2147483648
    %v940 = vxor.u32 %v779, 2147483648
    %v941 = vmul.f32 %v937, 1.442695
    %v942 = vpow.pop %v941
    %v943 = vmul.f32 %v938, 1.442695
    %v944 = vpow.pop %v943
    %v945 = vmul.f32 %v939, 1.442695
    %v946 = vpow.pop %v945
    %v947 = vmul.f32 %v940, 1.442695
    %v948 = vpow.pop %v947
    %v949 = vadd.f32 %v942, 1.0
    %v950 = vadd.f32 %v944, 1.0
    %v951 = vadd.f32 %v946, 1.0
    %v952 = vadd.f32 %v948, 1.0
    %v953 = vrcp.pop %v949
    %v954 = vmul.f32 %v949, %v953
    %v955 = vsub.f32 1.0, %v954
    %v956 = vmul.f32 %v953, %v955
    %v957 = vadd.f32 %v953, %v956
    %vm958 = vweird.f32 %v949
    %vm959 = vweird.f32 %v953
    %vm960 = vmor %vm958, %vm959
    %v961 = vsel %vm960, %v953, %v957
    %v962 = vand.u32 2147483647, %v949
    %vm963 = vcmp.eq.f32.partialorder %v962, 8.507059e+37
    %v964 = vand.u32 %v949, 2147483648
    %v965 = vor.u32 1.1754944e-38, %v964
    %v966 = vsel %vm963, %v965, %v961
    %v967 = vmul.f32 1.0, %v966
    %v968 = vrcp.pop %v950
    %v969 = vmul.f32 %v950, %v968
    %v970 = vsub.f32 1.0, %v969
    %v971 = vmul.f32 %v968, %v970
    %v972 = vadd.f32 %v968, %v971
    %vm973 = vweird.f32 %v950
    %vm974 = vweird.f32 %v968
    %vm975 = vmor %vm973, %vm974
    %v976 = vsel %vm975, %v968, %v972
    %v977 = vand.u32 2147483647, %v950
    %vm978 = vcmp.eq.f32.partialorder %v977, 8.507059e+37
    %v979 = vand.u32 %v950, 2147483648
    %v980 = vor.u32 1.1754944e-38, %v979
    %v981 = vsel %vm978, %v980, %v976
    %v982 = vmul.f32 1.0, %v981
    %v983 = vrcp.pop %v951
    %v984 = vmul.f32 %v951, %v983
    %v985 = vsub.f32 1.0, %v984
    %v986 = vmul.f32 %v983, %v985
    %v987 = vadd.f32 %v983, %v986
    %vm988 = vweird.f32 %v951
    %vm989 = vweird.f32 %v983
    %vm990 = vmor %vm988, %vm989
    %v991 = vsel %vm990, %v983, %v987
    %v992 = vand.u32 2147483647, %v951
    %vm993 = vcmp.eq.f32.partialorder %v992, 8.507059e+37
    %v994 = vand.u32 %v951, 2147483648
    %v995 = vor.u32 1.1754944e-38, %v994
    %v996 = vsel %vm993, %v995, %v991
    %v997 = vmul.f32 1.0, %v996
    %v998 = vrcp.pop %v952
    %v999 = vmul.f32 %v952, %v998
    %v1000 = vsub.f32 1.0, %v999
    %v1001 = vmul.f32 %v998, %v1000
    %v1002 = vadd.f32 %v998, %v1001
    %vm1003 = vweird.f32 %v952
    %vm1004 = vweird.f32 %v998
    %vm1005 = vmor %vm1003, %vm1004
    %v1006 = vsel %vm1005, %v998, %v1002
    %v1007 = vand.u32 2147483647, %v952
    %vm1008 = vcmp.eq.f32.partialorder %v1007, 8.507059e+37
    %v1009 = vand.u32 %v952, 2147483648
    %v1010 = vor.u32 1.1754944e-38, %v1009
    %v1011 = vsel %vm1008, %v1010, %v1006
    %v1012 = vmul.f32 1.0, %v1011
    %v1013 = vmul.f32 %v887, %v605
    %v1014 = vmul.f32 %v902, %v606
    %v1015 = vmul.f32 %v917, %v607
    %v1016 = vmul.f32 %v932, %v608
    %v1017 = vmul.f32 %v811, %v933
    %v1018 = vmul.f32 %v826, %v934
    %v1019 = vmul.f32 %v841, %v935
    %v1020 = vmul.f32 %v856, %v936
    %v1021 = vadd.f32 %v1013, %v1017
    %v1022 = vadd.f32 %v1014, %v1018
    %v1023 = vadd.f32 %v1015, %v1019
    %v1024 = vadd.f32 %v1016, %v1020
    %v1025 = vtanh.pop %v1021
    %v1026 = vtanh.pop %v1022
    %v1027 = vtanh.pop %v1023
    %v1028 = vtanh.pop %v1024
    %v1029 = vmul.f32 %v967, %v1025
    %v1030 = vmul.f32 %v982, %v1026
    %v1031 = vmul.f32 %v997, %v1027
    %v1032 = vmul.f32 %v1012, %v1028
    %s1033 = scalar_lea.vmem [#allocation2], 32
    %1034 = vst.msk [vmem:[%s1033] sm:$0xff] %vm617, %v1029
    %1035 = vst.msk [vmem:[%s1033 + $0x8] sm:$0xff] %vm617, %v1030
    %1036 = vst.msk [vmem:[%s1033 + $0x10] sm:$0xff] %vm617, %v1031
    %1037 = vst.msk [vmem:[%s1033 + $0x18] sm:$0xff] %vm617, %v1032
    %s1038 = scalar_lea.vmem %s0, 2
    %v1039 = vld [vmem:[%s1038] sm:$0x1]
    %v1040 = vperm.slane %v1039, 0
    %vm1041 = vcmp.eq.s32.totalorder %v80, %v1040
    %vm1042 = vcmp.eq.s32.totalorder %v81, %v1040
    %vm1043 = vcmp.eq.s32.totalorder %v82, %v1040
    %vm1044 = vcmp.eq.s32.totalorder %v83, %v1040
    %vm1045 = vcmp.eq.s32.totalorder %v84, %v1040
    %vm1046 = vcmp.eq.s32.totalorder %v85, %v1040
    %vm1047 = vcmp.eq.s32.totalorder %v86, %v1040
    %vm1048 = vcmp.eq.s32.totalorder %v87, %v1040
    %vm1049 = vcmp.eq.s32.totalorder %v88, %v1040
    %vm1050 = vcmp.eq.s32.totalorder %v89, %v1040
    %vm1051 = vcmp.eq.s32.totalorder %v90, %v1040
    %vm1052 = vcmp.eq.s32.totalorder %v91, %v1040
    %vm1053 = vcmp.eq.s32.totalorder %v92, %v1040
    %vm1054 = vcmp.eq.s32.totalorder %v93, %v1040
    %vm1055 = vcmp.eq.s32.totalorder %v94, %v1040
    %vm1056 = vcmp.eq.s32.totalorder %v95, %v1040
    %v1057 = vsel %vm1041, 1, 0
    %v1058 = vsel %vm1042, 1, 0
    %v1059 = vsel %vm1043, 1, 0
    %v1060 = vsel %vm1044, 1, 0
    %v1061 = vsel %vm1045, 1, 0
    %v1062 = vsel %vm1046, 1, 0
    %v1063 = vsel %vm1047, 1, 0
    %v1064 = vsel %vm1048, 1, 0
    %v1065 = vsel %vm1049, 1, 0
    %v1066 = vsel %vm1050, 1, 0
    %v1067 = vsel %vm1051, 1, 0
    %v1068 = vsel %vm1052, 1, 0
    %v1069 = vsel %vm1053, 1, 0
    %v1070 = vsel %vm1054, 1, 0
    %v1071 = vsel %vm1055, 1, 0
    %v1072 = vsel %vm1056, 1, 0
    %v1073 = vcvt.s32.f32 %v1057
    %v1074 = vcvt.s32.f32 %v1058
    %v1075 = vcvt.s32.f32 %v1059
    %v1076 = vcvt.s32.f32 %v1060
    %v1077 = vcvt.s32.f32 %v1061
    %v1078 = vcvt.s32.f32 %v1062
    %v1079 = vcvt.s32.f32 %v1063
    %v1080 = vcvt.s32.f32 %v1064
    %v1081 = vcvt.s32.f32 %v1065
    %v1082 = vcvt.s32.f32 %v1066
    %v1083 = vcvt.s32.f32 %v1067
    %v1084 = vcvt.s32.f32 %v1068
    %v1085 = vcvt.s32.f32 %v1069
    %v1086 = vcvt.s32.f32 %v1070
    %v1087 = vcvt.s32.f32 %v1071
    %v1088 = vcvt.s32.f32 %v1072
    %v1089 = vpack.c.bf16 %v1074, %v1073
    %v1090 = vpack.c.bf16 %v1076, %v1075
    %v1091 = vpack.c.bf16 %v1078, %v1077
    %v1092 = vpack.c.bf16 %v1080, %v1079
    %v1093 = vpack.c.bf16 %v1082, %v1081
    %v1094 = vpack.c.bf16 %v1084, %v1083
    %v1095 = vpack.c.bf16 %v1086, %v1085
    %v1096 = vpack.c.bf16 %v1088, %v1087
    %v1097 = vpack.c.bf16 %v1030, %v1029
    %v1098 = vpack.c.bf16 %v1032, %v1031
    %1099 = vmatpush.bf16.msra.mxu0 0
    %1100 = vmatpush.bf16.msra.mxu0 0
    %1101 = vmatpush.bf16.msra.mxu0 0
    %1102 = vmatpush.bf16.msra.mxu0 0
    %1103 = vmatpush.bf16.msra.mxu0 0
    %1104 = vmatpush.bf16.msra.mxu0 0
    %1105 = vmatpush.bf16.msra.mxu0 %v1098
    %1106 = vmatpush.bf16.msra.mxu0 %v1097
    %1107 = vmatmul.bf16.gmra.mxu0 %v196
    %v1108 = vpop.f32.mrf.mxu0
    %v1109 = vadd.f32 0.0, %v1108
    %v1110 = vpop.f32.mrf.mxu0
    %v1111 = vadd.f32 0.0, %v1110
    %1112 = vmatmul.bf16.gmra.mxu0 %v199
    %v1113 = vpop.f32.mrf.mxu0
    %v1114 = vadd.f32 0.0, %v1113
    %v1115 = vpop.f32.mrf.mxu0
    %v1116 = vadd.f32 0.0, %v1115
    %1117 = vmatmul.bf16.gmra.mxu0 %v202
    %v1118 = vpop.f32.mrf.mxu0
    %v1119 = vadd.f32 0.0, %v1118
    %v1120 = vpop.f32.mrf.mxu0
    %v1121 = vadd.f32 0.0, %v1120
    %1122 = vmatmul.bf16.gmra.mxu0 %v205
    %v1123 = vpop.f32.mrf.mxu0
    %v1124 = vadd.f32 0.0, %v1123
    %v1125 = vpop.f32.mrf.mxu0
    %v1126 = vadd.f32 0.0, %v1125
    %1127 = vmatmul.bf16.gmra.mxu0 %v208
    %v1128 = vpop.f32.mrf.mxu0
    %v1129 = vadd.f32 0.0, %v1128
    %v1130 = vpop.f32.mrf.mxu0
    %v1131 = vadd.f32 0.0, %v1130
    %1132 = vmatmul.bf16.gmra.mxu0 %v211
    %v1133 = vpop.f32.mrf.mxu0
    %v1134 = vadd.f32 0.0, %v1133
    %v1135 = vpop.f32.mrf.mxu0
    %v1136 = vadd.f32 0.0, %v1135
    %1137 = vmatmul.bf16.gmra.mxu0 %v214
    %v1138 = vpop.f32.mrf.mxu0
    %v1139 = vadd.f32 0.0, %v1138
    %v1140 = vpop.f32.mrf.mxu0
    %v1141 = vadd.f32 0.0, %v1140
    %1142 = vmatmul.bf16.gmra.mxu0 %v217
    %v1143 = vpop.f32.mrf.mxu0
    %v1144 = vadd.f32 0.0, %v1143
    %v1145 = vpop.f32.mrf.mxu0
    %v1146 = vadd.f32 0.0, %v1145
    %1147 = vdwg.mxu0
    %1148 = vmatpush.bf16.msra.mxu0 %v1096
    %1149 = vmatpush.bf16.msra.mxu0 %v1095
    %1150 = vmatpush.bf16.msra.mxu0 %v1094
    %1151 = vmatpush.bf16.msra.mxu0 %v1093
    %1152 = vmatpush.bf16.msra.mxu0 %v1092
    %1153 = vmatpush.bf16.msra.mxu0 %v1091
    %1154 = vmatpush.bf16.msra.mxu0 %v1090
    %1155 = vmatpush.bf16.msra.mxu0 %v1089
    %1156 = vmatmul.bf16.gmra.mxu0 %v300
    %v1157 = vpop.f32.mrf.mxu0
    %v1158 = vadd.f32 %v1109, %v1157
    %v1159 = vpop.f32.mrf.mxu0
    %v1160 = vadd.f32 %v1111, %v1159
    %1161 = vmatmul.bf16.gmra.mxu0 %v301
    %v1162 = vpop.f32.mrf.mxu0
    %v1163 = vadd.f32 %v1114, %v1162
    %v1164 = vpop.f32.mrf.mxu0
    %v1165 = vadd.f32 %v1116, %v1164
    %1166 = vmatmul.bf16.gmra.mxu0 %v302
    %v1167 = vpop.f32.mrf.mxu0
    %v1168 = vadd.f32 %v1119, %v1167
    %v1169 = vpop.f32.mrf.mxu0
    %v1170 = vadd.f32 %v1121, %v1169
    %1171 = vmatmul.bf16.gmra.mxu0 %v303
    %v1172 = vpop.f32.mrf.mxu0
    %v1173 = vadd.f32 %v1124, %v1172
    %v1174 = vpop.f32.mrf.mxu0
    %v1175 = vadd.f32 %v1126, %v1174
    %1176 = vmatmul.bf16.gmra.mxu0 %v304
    %v1177 = vpop.f32.mrf.mxu0
    %v1178 = vadd.f32 %v1129, %v1177
    %v1179 = vpop.f32.mrf.mxu0
    %v1180 = vadd.f32 %v1131, %v1179
    %1181 = vmatmul.bf16.gmra.mxu0 %v305
    %v1182 = vpop.f32.mrf.mxu0
    %v1183 = vadd.f32 %v1134, %v1182
    %v1184 = vpop.f32.mrf.mxu0
    %v1185 = vadd.f32 %v1136, %v1184
    %1186 = vmatmul.bf16.gmra.mxu0 %v306
    %v1187 = vpop.f32.mrf.mxu0
    %v1188 = vadd.f32 %v1139, %v1187
    %v1189 = vpop.f32.mrf.mxu0
    %v1190 = vadd.f32 %v1141, %v1189
    %1191 = vmatmul.bf16.gmra.mxu0 %v307
    %v1192 = vpop.f32.mrf.mxu0
    %v1193 = vadd.f32 %v1144, %v1192
    %v1194 = vpop.f32.mrf.mxu0
    %v1195 = vadd.f32 %v1146, %v1194
    %1196 = vdwg.mxu0
    %v1197 = vxor.u32 %v1158, 2147483648
    %v1198 = vxor.u32 %v1160, 2147483648
    %v1199 = vxor.u32 %v1163, 2147483648
    %v1200 = vxor.u32 %v1165, 2147483648
    %v1201 = vmul.f32 %v1197, 1.442695
    %v1202 = vpow.pop %v1201
    %v1203 = vmul.f32 %v1198, 1.442695
    %v1204 = vpow.pop %v1203
    %v1205 = vmul.f32 %v1199, 1.442695
    %v1206 = vpow.pop %v1205
    %v1207 = vmul.f32 %v1200, 1.442695
    %v1208 = vpow.pop %v1207
    %v1209 = vadd.f32 %v1202, 1.0
    %v1210 = vadd.f32 %v1204, 1.0
    %v1211 = vadd.f32 %v1206, 1.0
    %v1212 = vadd.f32 %v1208, 1.0
    %v1213 = vrcp.pop %v1209
    %v1214 = vmul.f32 %v1209, %v1213
    %v1215 = vsub.f32 1.0, %v1214
    %v1216 = vmul.f32 %v1213, %v1215
    %v1217 = vadd.f32 %v1213, %v1216
    %vm1218 = vweird.f32 %v1209
    %vm1219 = vweird.f32 %v1213
    %vm1220 = vmor %vm1218, %vm1219
    %v1221 = vsel %vm1220, %v1213, %v1217
    %v1222 = vand.u32 2147483647, %v1209
    %vm1223 = vcmp.eq.f32.partialorder %v1222, 8.507059e+37
    %v1224 = vand.u32 %v1209, 2147483648
    %v1225 = vor.u32 1.1754944e-38, %v1224
    %v1226 = vsel %vm1223, %v1225, %v1221
    %v1227 = vmul.f32 1.0, %v1226
    %v1228 = vrcp.pop %v1210
    %v1229 = vmul.f32 %v1210, %v1228
    %v1230 = vsub.f32 1.0, %v1229
    %v1231 = vmul.f32 %v1228, %v1230
    %v1232 = vadd.f32 %v1228, %v1231
    %vm1233 = vweird.f32 %v1210
    %vm1234 = vweird.f32 %v1228
    %vm1235 = vmor %vm1233, %vm1234
    %v1236 = vsel %vm1235, %v1228, %v1232
    %v1237 = vand.u32 2147483647, %v1210
    %vm1238 = vcmp.eq.f32.partialorder %v1237, 8.507059e+37
    %v1239 = vand.u32 %v1210, 2147483648
    %v1240 = vor.u32 1.1754944e-38, %v1239
    %v1241 = vsel %vm1238, %v1240, %v1236
    %v1242 = vmul.f32 1.0, %v1241
    %v1243 = vrcp.pop %v1211
    %v1244 = vmul.f32 %v1211, %v1243
    %v1245 = vsub.f32 1.0, %v1244
    %v1246 = vmul.f32 %v1243, %v1245
    %v1247 = vadd.f32 %v1243, %v1246
    %vm1248 = vweird.f32 %v1211
    %vm1249 = vweird.f32 %v1243
    %vm1250 = vmor %vm1248, %vm1249
    %v1251 = vsel %vm1250, %v1243, %v1247
    %v1252 = vand.u32 2147483647, %v1211
    %vm1253 = vcmp.eq.f32.partialorder %v1252, 8.507059e+37
    %v1254 = vand.u32 %v1211, 2147483648
    %v1255 = vor.u32 1.1754944e-38, %v1254
    %v1256 = vsel %vm1253, %v1255, %v1251
    %v1257 = vmul.f32 1.0, %v1256
    %v1258 = vrcp.pop %v1212
    %v1259 = vmul.f32 %v1212, %v1258
    %v1260 = vsub.f32 1.0, %v1259
    %v1261 = vmul.f32 %v1258, %v1260
    %v1262 = vadd.f32 %v1258, %v1261
    %vm1263 = vweird.f32 %v1212
    %vm1264 = vweird.f32 %v1258
    %vm1265 = vmor %vm1263, %vm1264
    %v1266 = vsel %vm1265, %v1258, %v1262
    %v1267 = vand.u32 2147483647, %v1212
    %vm1268 = vcmp.eq.f32.partialorder %v1267, 8.507059e+37
    %v1269 = vand.u32 %v1212, 2147483648
    %v1270 = vor.u32 1.1754944e-38, %v1269
    %v1271 = vsel %vm1268, %v1270, %v1266
    %v1272 = vmul.f32 1.0, %v1271
    %v1273 = vxor.u32 %v1168, 2147483648
    %v1274 = vxor.u32 %v1170, 2147483648
    %v1275 = vxor.u32 %v1173, 2147483648
    %v1276 = vxor.u32 %v1175, 2147483648
    %v1277 = vmul.f32 %v1273, 1.442695
    %v1278 = vpow.pop %v1277
    %v1279 = vmul.f32 %v1274, 1.442695
    %v1280 = vpow.pop %v1279
    %v1281 = vmul.f32 %v1275, 1.442695
    %v1282 = vpow.pop %v1281
    %v1283 = vmul.f32 %v1276, 1.442695
    %v1284 = vpow.pop %v1283
    %v1285 = vadd.f32 %v1278, 1.0
    %v1286 = vadd.f32 %v1280, 1.0
    %v1287 = vadd.f32 %v1282, 1.0
    %v1288 = vadd.f32 %v1284, 1.0
    %v1289 = vrcp.pop %v1285
    %v1290 = vmul.f32 %v1285, %v1289
    %v1291 = vsub.f32 1.0, %v1290
    %v1292 = vmul.f32 %v1289, %v1291
    %v1293 = vadd.f32 %v1289, %v1292
    %vm1294 = vweird.f32 %v1285
    %vm1295 = vweird.f32 %v1289
    %vm1296 = vmor %vm1294, %vm1295
    %v1297 = vsel %vm1296, %v1289, %v1293
    %v1298 = vand.u32 2147483647, %v1285
    %vm1299 = vcmp.eq.f32.partialorder %v1298, 8.507059e+37
    %v1300 = vand.u32 %v1285, 2147483648
    %v1301 = vor.u32 1.1754944e-38, %v1300
    %v1302 = vsel %vm1299, %v1301, %v1297
    %v1303 = vmul.f32 1.0, %v1302
    %v1304 = vrcp.pop %v1286
    %v1305 = vmul.f32 %v1286, %v1304
    %v1306 = vsub.f32 1.0, %v1305
    %v1307 = vmul.f32 %v1304, %v1306
    %v1308 = vadd.f32 %v1304, %v1307
    %vm1309 = vweird.f32 %v1286
    %vm1310 = vweird.f32 %v1304
    %vm1311 = vmor %vm1309, %vm1310
    %v1312 = vsel %vm1311, %v1304, %v1308
    %v1313 = vand.u32 2147483647, %v1286
    %vm1314 = vcmp.eq.f32.partialorder %v1313, 8.507059e+37
    %v1315 = vand.u32 %v1286, 2147483648
    %v1316 = vor.u32 1.1754944e-38, %v1315
    %v1317 = vsel %vm1314, %v1316, %v1312
    %v1318 = vmul.f32 1.0, %v1317
    %v1319 = vrcp.pop %v1287
    %v1320 = vmul.f32 %v1287, %v1319
    %v1321 = vsub.f32 1.0, %v1320
    %v1322 = vmul.f32 %v1319, %v1321
    %v1323 = vadd.f32 %v1319, %v1322
    %vm1324 = vweird.f32 %v1287
    %vm1325 = vweird.f32 %v1319
    %vm1326 = vmor %vm1324, %vm1325
    %v1327 = vsel %vm1326, %v1319, %v1323
    %v1328 = vand.u32 2147483647, %v1287
    %vm1329 = vcmp.eq.f32.partialorder %v1328, 8.507059e+37
    %v1330 = vand.u32 %v1287, 2147483648
    %v1331 = vor.u32 1.1754944e-38, %v1330
    %v1332 = vsel %vm1329, %v1331, %v1327
    %v1333 = vmul.f32 1.0, %v1332
    %v1334 = vrcp.pop %v1288
    %v1335 = vmul.f32 %v1288, %v1334
    %v1336 = vsub.f32 1.0, %v1335
    %v1337 = vmul.f32 %v1334, %v1336
    %v1338 = vadd.f32 %v1334, %v1337
    %vm1339 = vweird.f32 %v1288
    %vm1340 = vweird.f32 %v1334
    %vm1341 = vmor %vm1339, %vm1340
    %v1342 = vsel %vm1341, %v1334, %v1338
    %v1343 = vand.u32 2147483647, %v1288
    %vm1344 = vcmp.eq.f32.partialorder %v1343, 8.507059e+37
    %v1345 = vand.u32 %v1288, 2147483648
    %v1346 = vor.u32 1.1754944e-38, %v1345
    %v1347 = vsel %vm1344, %v1346, %v1342
    %v1348 = vmul.f32 1.0, %v1347
    %v1349 = vtanh.pop %v1178
    %v1350 = vtanh.pop %v1180
    %v1351 = vtanh.pop %v1183
    %v1352 = vtanh.pop %v1185
    %v1353 = vxor.u32 %v1188, 2147483648
    %v1354 = vxor.u32 %v1190, 2147483648
    %v1355 = vxor.u32 %v1193, 2147483648
    %v1356 = vxor.u32 %v1195, 2147483648
    %v1357 = vmul.f32 %v1353, 1.442695
    %v1358 = vpow.pop %v1357
    %v1359 = vmul.f32 %v1354, 1.442695
    %v1360 = vpow.pop %v1359
    %v1361 = vmul.f32 %v1355, 1.442695
    %v1362 = vpow.pop %v1361
    %v1363 = vmul.f32 %v1356, 1.442695
    %v1364 = vpow.pop %v1363
    %v1365 = vadd.f32 %v1358, 1.0
    %v1366 = vadd.f32 %v1360, 1.0
    %v1367 = vadd.f32 %v1362, 1.0
    %v1368 = vadd.f32 %v1364, 1.0
    %v1369 = vrcp.pop %v1365
    %v1370 = vmul.f32 %v1365, %v1369
    %v1371 = vsub.f32 1.0, %v1370
    %v1372 = vmul.f32 %v1369, %v1371
    %v1373 = vadd.f32 %v1369, %v1372
    %vm1374 = vweird.f32 %v1365
    %vm1375 = vweird.f32 %v1369
    %vm1376 = vmor %vm1374, %vm1375
    %v1377 = vsel %vm1376, %v1369, %v1373
    %v1378 = vand.u32 2147483647, %v1365
    %vm1379 = vcmp.eq.f32.partialorder %v1378, 8.507059e+37
    %v1380 = vand.u32 %v1365, 2147483648
    %v1381 = vor.u32 1.1754944e-38, %v1380
    %v1382 = vsel %vm1379, %v1381, %v1377
    %v1383 = vmul.f32 1.0, %v1382
    %v1384 = vrcp.pop %v1366
    %v1385 = vmul.f32 %v1366, %v1384
    %v1386 = vsub.f32 1.0, %v1385
    %v1387 = vmul.f32 %v1384, %v1386
    %v1388 = vadd.f32 %v1384, %v1387
    %vm1389 = vweird.f32 %v1366
    %vm1390 = vweird.f32 %v1384
    %vm1391 = vmor %vm1389, %vm1390
    %v1392 = vsel %vm1391, %v1384, %v1388
    %v1393 = vand.u32 2147483647, %v1366
    %vm1394 = vcmp.eq.f32.partialorder %v1393, 8.507059e+37
    %v1395 = vand.u32 %v1366, 2147483648
    %v1396 = vor.u32 1.1754944e-38, %v1395
    %v1397 = vsel %vm1394, %v1396, %v1392
    %v1398 = vmul.f32 1.0, %v1397
    %v1399 = vrcp.pop %v1367
    %v1400 = vmul.f32 %v1367, %v1399
    %v1401 = vsub.f32 1.0, %v1400
    %v1402 = vmul.f32 %v1399, %v1401
    %v1403 = vadd.f32 %v1399, %v1402
    %vm1404 = vweird.f32 %v1367
    %vm1405 = vweird.f32 %v1399
    %vm1406 = vmor %vm1404, %vm1405
    %v1407 = vsel %vm1406, %v1399, %v1403
    %v1408 = vand.u32 2147483647, %v1367
    %vm1409 = vcmp.eq.f32.partialorder %v1408, 8.507059e+37
    %v1410 = vand.u32 %v1367, 2147483648
    %v1411 = vor.u32 1.1754944e-38, %v1410
    %v1412 = vsel %vm1409, %v1411, %v1407
    %v1413 = vmul.f32 1.0, %v1412
    %v1414 = vrcp.pop %v1368
    %v1415 = vmul.f32 %v1368, %v1414
    %v1416 = vsub.f32 1.0, %v1415
    %v1417 = vmul.f32 %v1414, %v1416
    %v1418 = vadd.f32 %v1414, %v1417
    %vm1419 = vweird.f32 %v1368
    %vm1420 = vweird.f32 %v1414
    %vm1421 = vmor %vm1419, %vm1420
    %v1422 = vsel %vm1421, %v1414, %v1418
    %v1423 = vand.u32 2147483647, %v1368
    %vm1424 = vcmp.eq.f32.partialorder %v1423, 8.507059e+37
    %v1425 = vand.u32 %v1368, 2147483648
    %v1426 = vor.u32 1.1754944e-38, %v1425
    %v1427 = vsel %vm1424, %v1426, %v1422
    %v1428 = vmul.f32 1.0, %v1427
    %v1429 = vmul.f32 %v1303, %v1021
    %v1430 = vmul.f32 %v1318, %v1022
    %v1431 = vmul.f32 %v1333, %v1023
    %v1432 = vmul.f32 %v1348, %v1024
    %v1433 = vmul.f32 %v1227, %v1349
    %v1434 = vmul.f32 %v1242, %v1350
    %v1435 = vmul.f32 %v1257, %v1351
    %v1436 = vmul.f32 %v1272, %v1352
    %v1437 = vadd.f32 %v1429, %v1433
    %v1438 = vadd.f32 %v1430, %v1434
    %v1439 = vadd.f32 %v1431, %v1435
    %v1440 = vadd.f32 %v1432, %v1436
    %v1441 = vtanh.pop %v1437
    %v1442 = vtanh.pop %v1438
    %v1443 = vtanh.pop %v1439
    %v1444 = vtanh.pop %v1440
    %v1445 = vmul.f32 %v1383, %v1441
    %v1446 = vmul.f32 %v1398, %v1442
    %v1447 = vmul.f32 %v1413, %v1443
    %v1448 = vmul.f32 %v1428, %v1444
    %s1449 = scalar_lea.vmem [#allocation2], 64
    %1450 = vst.msk [vmem:[%s1449] sm:$0xff] %vm617, %v1445
    %1451 = vst.msk [vmem:[%s1449 + $0x8] sm:$0xff] %vm617, %v1446
    %1452 = vst.msk [vmem:[%s1449 + $0x10] sm:$0xff] %vm617, %v1447
    %1453 = vst.msk [vmem:[%s1449 + $0x18] sm:$0xff] %vm617, %v1448
    %s1454 = scalar_lea.vmem %s0, 3
    %v1455 = vld [vmem:[%s1454] sm:$0x1]
    %v1456 = vperm.slane %v1455, 0
    %vm1457 = vcmp.eq.s32.totalorder %v80, %v1456
    %vm1458 = vcmp.eq.s32.totalorder %v81, %v1456
    %vm1459 = vcmp.eq.s32.totalorder %v82, %v1456
    %vm1460 = vcmp.eq.s32.totalorder %v83, %v1456
    %vm1461 = vcmp.eq.s32.totalorder %v84, %v1456
    %vm1462 = vcmp.eq.s32.totalorder %v85, %v1456
    %vm1463 = vcmp.eq.s32.totalorder %v86, %v1456
    %vm1464 = vcmp.eq.s32.totalorder %v87, %v1456
    %vm1465 = vcmp.eq.s32.totalorder %v88, %v1456
    %vm1466 = vcmp.eq.s32.totalorder %v89, %v1456
    %vm1467 = vcmp.eq.s32.totalorder %v90, %v1456
    %vm1468 = vcmp.eq.s32.totalorder %v91, %v1456
    %vm1469 = vcmp.eq.s32.totalorder %v92, %v1456
    %vm1470 = vcmp.eq.s32.totalorder %v93, %v1456
    %vm1471 = vcmp.eq.s32.totalorder %v94, %v1456
    %vm1472 = vcmp.eq.s32.totalorder %v95, %v1456
    %v1473 = vsel %vm1457, 1, 0
    %v1474 = vsel %vm1458, 1, 0
    %v1475 = vsel %vm1459, 1, 0
    %v1476 = vsel %vm1460, 1, 0
    %v1477 = vsel %vm1461, 1, 0
    %v1478 = vsel %vm1462, 1, 0
    %v1479 = vsel %vm1463, 1, 0
    %v1480 = vsel %vm1464, 1, 0
    %v1481 = vsel %vm1465, 1, 0
    %v1482 = vsel %vm1466, 1, 0
    %v1483 = vsel %vm1467, 1, 0
    %v1484 = vsel %vm1468, 1, 0
    %v1485 = vsel %vm1469, 1, 0
    %v1486 = vsel %vm1470, 1, 0
    %v1487 = vsel %vm1471, 1, 0
    %v1488 = vsel %vm1472, 1, 0
    %v1489 = vcvt.s32.f32 %v1473
    %v1490 = vcvt.s32.f32 %v1474
    %v1491 = vcvt.s32.f32 %v1475
    %v1492 = vcvt.s32.f32 %v1476
    %v1493 = vcvt.s32.f32 %v1477
    %v1494 = vcvt.s32.f32 %v1478
    %v1495 = vcvt.s32.f32 %v1479
    %v1496 = vcvt.s32.f32 %v1480
    %v1497 = vcvt.s32.f32 %v1481
    %v1498 = vcvt.s32.f32 %v1482
    %v1499 = vcvt.s32.f32 %v1483
    %v1500 = vcvt.s32.f32 %v1484
    %v1501 = vcvt.s32.f32 %v1485
    %v1502 = vcvt.s32.f32 %v1486
    %v1503 = vcvt.s32.f32 %v1487
    %v1504 = vcvt.s32.f32 %v1488
    %v1505 = vpack.c.bf16 %v1490, %v1489
    %v1506 = vpack.c.bf16 %v1492, %v1491
    %v1507 = vpack.c.bf16 %v1494, %v1493
    %v1508 = vpack.c.bf16 %v1496, %v1495
    %v1509 = vpack.c.bf16 %v1498, %v1497
    %v1510 = vpack.c.bf16 %v1500, %v1499
    %v1511 = vpack.c.bf16 %v1502, %v1501
    %v1512 = vpack.c.bf16 %v1504, %v1503
    %v1513 = vpack.c.bf16 %v1446, %v1445
    %v1514 = vpack.c.bf16 %v1448, %v1447
    %1515 = vmatpush.bf16.msra.mxu0 0
    %1516 = vmatpush.bf16.msra.mxu0 0
    %1517 = vmatpush.bf16.msra.mxu0 0
    %1518 = vmatpush.bf16.msra.mxu0 0
    %1519 = vmatpush.bf16.msra.mxu0 0
    %1520 = vmatpush.bf16.msra.mxu0 0
    %1521 = vmatpush.bf16.msra.mxu0 %v1514
    %1522 = vmatpush.bf16.msra.mxu0 %v1513
    %1523 = vmatmul.bf16.gmra.mxu0 %v196
    %v1524 = vpop.f32.mrf.mxu0
    %v1525 = vadd.f32 0.0, %v1524
    %v1526 = vpop.f32.mrf.mxu0
    %v1527 = vadd.f32 0.0, %v1526
    %1528 = vmatmul.bf16.gmra.mxu0 %v199
    %v1529 = vpop.f32.mrf.mxu0
    %v1530 = vadd.f32 0.0, %v1529
    %v1531 = vpop.f32.mrf.mxu0
    %v1532 = vadd.f32 0.0, %v1531
    %1533 = vmatmul.bf16.gmra.mxu0 %v202
    %v1534 = vpop.f32.mrf.mxu0
    %v1535 = vadd.f32 0.0, %v1534
    %v1536 = vpop.f32.mrf.mxu0
    %v1537 = vadd.f32 0.0, %v1536
    %1538 = vmatmul.bf16.gmra.mxu0 %v205
    %v1539 = vpop.f32.mrf.mxu0
    %v1540 = vadd.f32 0.0, %v1539
    %v1541 = vpop.f32.mrf.mxu0
    %v1542 = vadd.f32 0.0, %v1541
    %1543 = vmatmul.bf16.gmra.mxu0 %v208
    %v1544 = vpop.f32.mrf.mxu0
    %v1545 = vadd.f32 0.0, %v1544
    %v1546 = vpop.f32.mrf.mxu0
    %v1547 = vadd.f32 0.0, %v1546
    %1548 = vmatmul.bf16.gmra.mxu0 %v211
    %v1549 = vpop.f32.mrf.mxu0
    %v1550 = vadd.f32 0.0, %v1549
    %v1551 = vpop.f32.mrf.mxu0
    %v1552 = vadd.f32 0.0, %v1551
    %1553 = vmatmul.bf16.gmra.mxu0 %v214
    %v1554 = vpop.f32.mrf.mxu0
    %v1555 = vadd.f32 0.0, %v1554
    %v1556 = vpop.f32.mrf.mxu0
    %v1557 = vadd.f32 0.0, %v1556
    %1558 = vmatmul.bf16.gmra.mxu0 %v217
    %v1559 = vpop.f32.mrf.mxu0
    %v1560 = vadd.f32 0.0, %v1559
    %v1561 = vpop.f32.mrf.mxu0
    %v1562 = vadd.f32 0.0, %v1561
    %1563 = vdwg.mxu0
    %1564 = vmatpush.bf16.msra.mxu0 %v1512
    %1565 = vmatpush.bf16.msra.mxu0 %v1511
    %1566 = vmatpush.bf16.msra.mxu0 %v1510
    %1567 = vmatpush.bf16.msra.mxu0 %v1509
    %1568 = vmatpush.bf16.msra.mxu0 %v1508
    %1569 = vmatpush.bf16.msra.mxu0 %v1507
    %1570 = vmatpush.bf16.msra.mxu0 %v1506
    %1571 = vmatpush.bf16.msra.mxu0 %v1505
    %1572 = vmatmul.bf16.gmra.mxu0 %v300
    %v1573 = vpop.f32.mrf.mxu0
    %v1574 = vadd.f32 %v1525, %v1573
    %v1575 = vpop.f32.mrf.mxu0
    %v1576 = vadd.f32 %v1527, %v1575
    %1577 = vmatmul.bf16.gmra.mxu0 %v301
    %v1578 = vpop.f32.mrf.mxu0
    %v1579 = vadd.f32 %v1530, %v1578
    %v1580 = vpop.f32.mrf.mxu0
    %v1581 = vadd.f32 %v1532, %v1580
    %1582 = vmatmul.bf16.gmra.mxu0 %v302
    %v1583 = vpop.f32.mrf.mxu0
    %v1584 = vadd.f32 %v1535, %v1583
    %v1585 = vpop.f32.mrf.mxu0
    %v1586 = vadd.f32 %v1537, %v1585
    %1587 = vmatmul.bf16.gmra.mxu0 %v303
    %v1588 = vpop.f32.mrf.mxu0
    %v1589 = vadd.f32 %v1540, %v1588
    %v1590 = vpop.f32.mrf.mxu0
    %v1591 = vadd.f32 %v1542, %v1590
    %1592 = vmatmul.bf16.gmra.mxu0 %v304
    %v1593 = vpop.f32.mrf.mxu0
    %v1594 = vadd.f32 %v1545, %v1593
    %v1595 = vpop.f32.mrf.mxu0
    %v1596 = vadd.f32 %v1547, %v1595
    %1597 = vmatmul.bf16.gmra.mxu0 %v305
    %v1598 = vpop.f32.mrf.mxu0
    %v1599 = vadd.f32 %v1550, %v1598
    %v1600 = vpop.f32.mrf.mxu0
    %v1601 = vadd.f32 %v1552, %v1600
    %1602 = vmatmul.bf16.gmra.mxu0 %v306
    %v1603 = vpop.f32.mrf.mxu0
    %v1604 = vadd.f32 %v1555, %v1603
    %v1605 = vpop.f32.mrf.mxu0
    %v1606 = vadd.f32 %v1557, %v1605
    %1607 = vmatmul.bf16.gmra.mxu0 %v307
    %v1608 = vpop.f32.mrf.mxu0
    %v1609 = vadd.f32 %v1560, %v1608
    %v1610 = vpop.f32.mrf.mxu0
    %v1611 = vadd.f32 %v1562, %v1610
    %1612 = vdwg.mxu0
    %v1613 = vxor.u32 %v1574, 2147483648
    %v1614 = vxor.u32 %v1576, 2147483648
    %v1615 = vxor.u32 %v1579, 2147483648
    %v1616 = vxor.u32 %v1581, 2147483648
    %v1617 = vmul.f32 %v1613, 1.442695
    %v1618 = vpow.pop %v1617
    %v1619 = vmul.f32 %v1614, 1.442695
    %v1620 = vpow.pop %v1619
    %v1621 = vmul.f32 %v1615, 1.442695
    %v1622 = vpow.pop %v1621
    %v1623 = vmul.f32 %v1616, 1.442695
    %v1624 = vpow.pop %v1623
    %v1625 = vadd.f32 %v1618, 1.0
    %v1626 = vadd.f32 %v1620, 1.0
    %v1627 = vadd.f32 %v1622, 1.0
    %v1628 = vadd.f32 %v1624, 1.0
    %v1629 = vrcp.pop %v1625
    %v1630 = vmul.f32 %v1625, %v1629
    %v1631 = vsub.f32 1.0, %v1630
    %v1632 = vmul.f32 %v1629, %v1631
    %v1633 = vadd.f32 %v1629, %v1632
    %vm1634 = vweird.f32 %v1625
    %vm1635 = vweird.f32 %v1629
    %vm1636 = vmor %vm1634, %vm1635
    %v1637 = vsel %vm1636, %v1629, %v1633
    %v1638 = vand.u32 2147483647, %v1625
    %vm1639 = vcmp.eq.f32.partialorder %v1638, 8.507059e+37
    %v1640 = vand.u32 %v1625, 2147483648
    %v1641 = vor.u32 1.1754944e-38, %v1640
    %v1642 = vsel %vm1639, %v1641, %v1637
    %v1643 = vmul.f32 1.0, %v1642
    %v1644 = vrcp.pop %v1626
    %v1645 = vmul.f32 %v1626, %v1644
    %v1646 = vsub.f32 1.0, %v1645
    %v1647 = vmul.f32 %v1644, %v1646
    %v1648 = vadd.f32 %v1644, %v1647
    %vm1649 = vweird.f32 %v1626
    %vm1650 = vweird.f32 %v1644
    %vm1651 = vmor %vm1649, %vm1650
    %v1652 = vsel %vm1651, %v1644, %v1648
    %v1653 = vand.u32 2147483647, %v1626
    %vm1654 = vcmp.eq.f32.partialorder %v1653, 8.507059e+37
    %v1655 = vand.u32 %v1626, 2147483648
    %v1656 = vor.u32 1.1754944e-38, %v1655
    %v1657 = vsel %vm1654, %v1656, %v1652
    %v1658 = vmul.f32 1.0, %v1657
    %v1659 = vrcp.pop %v1627
    %v1660 = vmul.f32 %v1627, %v1659
    %v1661 = vsub.f32 1.0, %v1660
    %v1662 = vmul.f32 %v1659, %v1661
    %v1663 = vadd.f32 %v1659, %v1662
    %vm1664 = vweird.f32 %v1627
    %vm1665 = vweird.f32 %v1659
    %vm1666 = vmor %vm1664, %vm1665
    %v1667 = vsel %vm1666, %v1659, %v1663
    %v1668 = vand.u32 2147483647, %v1627
    %vm1669 = vcmp.eq.f32.partialorder %v1668, 8.507059e+37
    %v1670 = vand.u32 %v1627, 2147483648
    %v1671 = vor.u32 1.1754944e-38, %v1670
    %v1672 = vsel %vm1669, %v1671, %v1667
    %v1673 = vmul.f32 1.0, %v1672
    %v1674 = vrcp.pop %v1628
    %v1675 = vmul.f32 %v1628, %v1674
    %v1676 = vsub.f32 1.0, %v1675
    %v1677 = vmul.f32 %v1674, %v1676
    %v1678 = vadd.f32 %v1674, %v1677
    %vm1679 = vweird.f32 %v1628
    %vm1680 = vweird.f32 %v1674
    %vm1681 = vmor %vm1679, %vm1680
    %v1682 = vsel %vm1681, %v1674, %v1678
    %v1683 = vand.u32 2147483647, %v1628
    %vm1684 = vcmp.eq.f32.partialorder %v1683, 8.507059e+37
    %v1685 = vand.u32 %v1628, 2147483648
    %v1686 = vor.u32 1.1754944e-38, %v1685
    %v1687 = vsel %vm1684, %v1686, %v1682
    %v1688 = vmul.f32 1.0, %v1687
    %v1689 = vxor.u32 %v1584, 2147483648
    %v1690 = vxor.u32 %v1586, 2147483648
    %v1691 = vxor.u32 %v1589, 2147483648
    %v1692 = vxor.u32 %v1591, 2147483648
    %v1693 = vmul.f32 %v1689, 1.442695
    %v1694 = vpow.pop %v1693
    %v1695 = vmul.f32 %v1690, 1.442695
    %v1696 = vpow.pop %v1695
    %v1697 = vmul.f32 %v1691, 1.442695
    %v1698 = vpow.pop %v1697
    %v1699 = vmul.f32 %v1692, 1.442695
    %v1700 = vpow.pop %v1699
    %v1701 = vadd.f32 %v1694, 1.0
    %v1702 = vadd.f32 %v1696, 1.0
    %v1703 = vadd.f32 %v1698, 1.0
    %v1704 = vadd.f32 %v1700, 1.0
    %v1705 = vrcp.pop %v1701
    %v1706 = vmul.f32 %v1701, %v1705
    %v1707 = vsub.f32 1.0, %v1706
    %v1708 = vmul.f32 %v1705, %v1707
    %v1709 = vadd.f32 %v1705, %v1708
    %vm1710 = vweird.f32 %v1701
    %vm1711 = vweird.f32 %v1705
    %vm1712 = vmor %vm1710, %vm1711
    %v1713 = vsel %vm1712, %v1705, %v1709
    %v1714 = vand.u32 2147483647, %v1701
    %vm1715 = vcmp.eq.f32.partialorder %v1714, 8.507059e+37
    %v1716 = vand.u32 %v1701, 2147483648
    %v1717 = vor.u32 1.1754944e-38, %v1716
    %v1718 = vsel %vm1715, %v1717, %v1713
    %v1719 = vmul.f32 1.0, %v1718
    %v1720 = vrcp.pop %v1702
    %v1721 = vmul.f32 %v1702, %v1720
    %v1722 = vsub.f32 1.0, %v1721
    %v1723 = vmul.f32 %v1720, %v1722
    %v1724 = vadd.f32 %v1720, %v1723
    %vm1725 = vweird.f32 %v1702
    %vm1726 = vweird.f32 %v1720
    %vm1727 = vmor %vm1725, %vm1726
    %v1728 = vsel %vm1727, %v1720, %v1724
    %v1729 = vand.u32 2147483647, %v1702
    %vm1730 = vcmp.eq.f32.partialorder %v1729, 8.507059e+37
    %v1731 = vand.u32 %v1702, 2147483648
    %v1732 = vor.u32 1.1754944e-38, %v1731
    %v1733 = vsel %vm1730, %v1732, %v1728
    %v1734 = vmul.f32 1.0, %v1733
    %v1735 = vrcp.pop %v1703
    %v1736 = vmul.f32 %v1703, %v1735
    %v1737 = vsub.f32 1.0, %v1736
    %v1738 = vmul.f32 %v1735, %v1737
    %v1739 = vadd.f32 %v1735, %v1738
    %vm1740 = vweird.f32 %v1703
    %vm1741 = vweird.f32 %v1735
    %vm1742 = vmor %vm1740, %vm1741
    %v1743 = vsel %vm1742, %v1735, %v1739
    %v1744 = vand.u32 2147483647, %v1703
    %vm1745 = vcmp.eq.f32.partialorder %v1744, 8.507059e+37
    %v1746 = vand.u32 %v1703, 2147483648
    %v1747 = vor.u32 1.1754944e-38, %v1746
    %v1748 = vsel %vm1745, %v1747, %v1743
    %v1749 = vmul.f32 1.0, %v1748
    %v1750 = vrcp.pop %v1704
    %v1751 = vmul.f32 %v1704, %v1750
    %v1752 = vsub.f32 1.0, %v1751
    %v1753 = vmul.f32 %v1750, %v1752
    %v1754 = vadd.f32 %v1750, %v1753
    %vm1755 = vweird.f32 %v1704
    %vm1756 = vweird.f32 %v1750
    %vm1757 = vmor %vm1755, %vm1756
    %v1758 = vsel %vm1757, %v1750, %v1754
    %v1759 = vand.u32 2147483647, %v1704
    %vm1760 = vcmp.eq.f32.partialorder %v1759, 8.507059e+37
    %v1761 = vand.u32 %v1704, 2147483648
    %v1762 = vor.u32 1.1754944e-38, %v1761
    %v1763 = vsel %vm1760, %v1762, %v1758
    %v1764 = vmul.f32 1.0, %v1763
    %v1765 = vtanh.pop %v1594
    %v1766 = vtanh.pop %v1596
    %v1767 = vtanh.pop %v1599
    %v1768 = vtanh.pop %v1601
    %v1769 = vxor.u32 %v1604, 2147483648
    %v1770 = vxor.u32 %v1606, 2147483648
    %v1771 = vxor.u32 %v1609, 2147483648
    %v1772 = vxor.u32 %v1611, 2147483648
    %v1773 = vmul.f32 %v1769, 1.442695
    %v1774 = vpow.pop %v1773
    %v1775 = vmul.f32 %v1770, 1.442695
    %v1776 = vpow.pop %v1775
    %v1777 = vmul.f32 %v1771, 1.442695
    %v1778 = vpow.pop %v1777
    %v1779 = vmul.f32 %v1772, 1.442695
    %v1780 = vpow.pop %v1779
    %v1781 = vadd.f32 %v1774, 1.0
    %v1782 = vadd.f32 %v1776, 1.0
    %v1783 = vadd.f32 %v1778, 1.0
    %v1784 = vadd.f32 %v1780, 1.0
    %v1785 = vrcp.pop %v1781
    %v1786 = vmul.f32 %v1781, %v1785
    %v1787 = vsub.f32 1.0, %v1786
    %v1788 = vmul.f32 %v1785, %v1787
    %v1789 = vadd.f32 %v1785, %v1788
    %vm1790 = vweird.f32 %v1781
    %vm1791 = vweird.f32 %v1785
    %vm1792 = vmor %vm1790, %vm1791
    %v1793 = vsel %vm1792, %v1785, %v1789
    %v1794 = vand.u32 2147483647, %v1781
    %vm1795 = vcmp.eq.f32.partialorder %v1794, 8.507059e+37
    %v1796 = vand.u32 %v1781, 2147483648
    %v1797 = vor.u32 1.1754944e-38, %v1796
    %v1798 = vsel %vm1795, %v1797, %v1793
    %v1799 = vmul.f32 1.0, %v1798
    %v1800 = vrcp.pop %v1782
    %v1801 = vmul.f32 %v1782, %v1800
    %v1802 = vsub.f32 1.0, %v1801
    %v1803 = vmul.f32 %v1800, %v1802
    %v1804 = vadd.f32 %v1800, %v1803
    %vm1805 = vweird.f32 %v1782
    %vm1806 = vweird.f32 %v1800
    %vm1807 = vmor %vm1805, %vm1806
    %v1808 = vsel %vm1807, %v1800, %v1804
    %v1809 = vand.u32 2147483647, %v1782
    %vm1810 = vcmp.eq.f32.partialorder %v1809, 8.507059e+37
    %v1811 = vand.u32 %v1782, 2147483648
    %v1812 = vor.u32 1.1754944e-38, %v1811
    %v1813 = vsel %vm1810, %v1812, %v1808
    %v1814 = vmul.f32 1.0, %v1813
    %v1815 = vrcp.pop %v1783
    %v1816 = vmul.f32 %v1783, %v1815
    %v1817 = vsub.f32 1.0, %v1816
    %v1818 = vmul.f32 %v1815, %v1817
    %v1819 = vadd.f32 %v1815, %v1818
    %vm1820 = vweird.f32 %v1783
    %vm1821 = vweird.f32 %v1815
    %vm1822 = vmor %vm1820, %vm1821
    %v1823 = vsel %vm1822, %v1815, %v1819
    %v1824 = vand.u32 2147483647, %v1783
    %vm1825 = vcmp.eq.f32.partialorder %v1824, 8.507059e+37
    %v1826 = vand.u32 %v1783, 2147483648
    %v1827 = vor.u32 1.1754944e-38, %v1826
    %v1828 = vsel %vm1825, %v1827, %v1823
    %v1829 = vmul.f32 1.0, %v1828
    %v1830 = vrcp.pop %v1784
    %v1831 = vmul.f32 %v1784, %v1830
    %v1832 = vsub.f32 1.0, %v1831
    %v1833 = vmul.f32 %v1830, %v1832
    %v1834 = vadd.f32 %v1830, %v1833
    %vm1835 = vweird.f32 %v1784
    %vm1836 = vweird.f32 %v1830
    %vm1837 = vmor %vm1835, %vm1836
    %v1838 = vsel %vm1837, %v1830, %v1834
    %v1839 = vand.u32 2147483647, %v1784
    %vm1840 = vcmp.eq.f32.partialorder %v1839, 8.507059e+37
    %v1841 = vand.u32 %v1784, 2147483648
    %v1842 = vor.u32 1.1754944e-38, %v1841
    %v1843 = vsel %vm1840, %v1842, %v1838
    %v1844 = vmul.f32 1.0, %v1843
    %v1845 = vmul.f32 %v1719, %v1437
    %v1846 = vmul.f32 %v1734, %v1438
    %v1847 = vmul.f32 %v1749, %v1439
    %v1848 = vmul.f32 %v1764, %v1440
    %v1849 = vmul.f32 %v1643, %v1765
    %v1850 = vmul.f32 %v1658, %v1766
    %v1851 = vmul.f32 %v1673, %v1767
    %v1852 = vmul.f32 %v1688, %v1768
    %v1853 = vadd.f32 %v1845, %v1849
    %v1854 = vadd.f32 %v1846, %v1850
    %v1855 = vadd.f32 %v1847, %v1851
    %v1856 = vadd.f32 %v1848, %v1852
    %v1857 = vtanh.pop %v1853
    %v1858 = vtanh.pop %v1854
    %v1859 = vtanh.pop %v1855
    %v1860 = vtanh.pop %v1856
    %v1861 = vmul.f32 %v1799, %v1857
    %v1862 = vmul.f32 %v1814, %v1858
    %v1863 = vmul.f32 %v1829, %v1859
    %v1864 = vmul.f32 %v1844, %v1860
    %s1865 = scalar_lea.vmem [#allocation2], 96
    %1866 = vst.msk [vmem:[%s1865] sm:$0xff] %vm617, %v1861
    %1867 = vst.msk [vmem:[%s1865 + $0x8] sm:$0xff] %vm617, %v1862
    %1868 = vst.msk [vmem:[%s1865 + $0x10] sm:$0xff] %vm617, %v1863
    %1869 = vst.msk [vmem:[%s1865 + $0x18] sm:$0xff] %vm617, %v1864
    %s1870 = scalar_lea.vmem %s0, 4
    %v1871 = vld [vmem:[%s1870] sm:$0x1]
    %v1872 = vperm.slane %v1871, 0
    %vm1873 = vcmp.eq.s32.totalorder %v80, %v1872
    %vm1874 = vcmp.eq.s32.totalorder %v81, %v1872
    %vm1875 = vcmp.eq.s32.totalorder %v82, %v1872
    %vm1876 = vcmp.eq.s32.totalorder %v83, %v1872
    %vm1877 = vcmp.eq.s32.totalorder %v84, %v1872
    %vm1878 = vcmp.eq.s32.totalorder %v85, %v1872
    %vm1879 = vcmp.eq.s32.totalorder %v86, %v1872
    %vm1880 = vcmp.eq.s32.totalorder %v87, %v1872
    %vm1881 = vcmp.eq.s32.totalorder %v88, %v1872
    %vm1882 = vcmp.eq.s32.totalorder %v89, %v1872
    %vm1883 = vcmp.eq.s32.totalorder %v90, %v1872
    %vm1884 = vcmp.eq.s32.totalorder %v91, %v1872
    %vm1885 = vcmp.eq.s32.totalorder %v92, %v1872
    %vm1886 = vcmp.eq.s32.totalorder %v93, %v1872
    %vm1887 = vcmp.eq.s32.totalorder %v94, %v1872
    %vm1888 = vcmp.eq.s32.totalorder %v95, %v1872
    %v1889 = vsel %vm1873, 1, 0
    %v1890 = vsel %vm1874, 1, 0
    %v1891 = vsel %vm1875, 1, 0
    %v1892 = vsel %vm1876, 1, 0
    %v1893 = vsel %vm1877, 1, 0
    %v1894 = vsel %vm1878, 1, 0
    %v1895 = vsel %vm1879, 1, 0
    %v1896 = vsel %vm1880, 1, 0
    %v1897 = vsel %vm1881, 1, 0
    %v1898 = vsel %vm1882, 1, 0
    %v1899 = vsel %vm1883, 1, 0
    %v1900 = vsel %vm1884, 1, 0
    %v1901 = vsel %vm1885, 1, 0
    %v1902 = vsel %vm1886, 1, 0
    %v1903 = vsel %vm1887, 1, 0
    %v1904 = vsel %vm1888, 1, 0
    %v1905 = vcvt.s32.f32 %v1889
    %v1906 = vcvt.s32.f32 %v1890
    %v1907 = vcvt.s32.f32 %v1891
    %v1908 = vcvt.s32.f32 %v1892
    %v1909 = vcvt.s32.f32 %v1893
    %v1910 = vcvt.s32.f32 %v1894
    %v1911 = vcvt.s32.f32 %v1895
    %v1912 = vcvt.s32.f32 %v1896
    %v1913 = vcvt.s32.f32 %v1897
    %v1914 = vcvt.s32.f32 %v1898
    %v1915 = vcvt.s32.f32 %v1899
    %v1916 = vcvt.s32.f32 %v1900
    %v1917 = vcvt.s32.f32 %v1901
    %v1918 = vcvt.s32.f32 %v1902
    %v1919 = vcvt.s32.f32 %v1903
    %v1920 = vcvt.s32.f32 %v1904
    %v1921 = vpack.c.bf16 %v1906, %v1905
    %v1922 = vpack.c.bf16 %v1908, %v1907
    %v1923 = vpack.c.bf16 %v1910, %v1909
    %v1924 = vpack.c.bf16 %v1912, %v1911
    %v1925 = vpack.c.bf16 %v1914, %v1913
    %v1926 = vpack.c.bf16 %v1916, %v1915
    %v1927 = vpack.c.bf16 %v1918, %v1917
    %v1928 = vpack.c.bf16 %v1920, %v1919
    %v1929 = vpack.c.bf16 %v1862, %v1861
    %v1930 = vpack.c.bf16 %v1864, %v1863
    %1931 = vmatpush.bf16.msra.mxu0 0
    %1932 = vmatpush.bf16.msra.mxu0 0
    %1933 = vmatpush.bf16.msra.mxu0 0
    %1934 = vmatpush.bf16.msra.mxu0 0
    %1935 = vmatpush.bf16.msra.mxu0 0
    %1936 = vmatpush.bf16.msra.mxu0 0
    %1937 = vmatpush.bf16.msra.mxu0 %v1930
    %1938 = vmatpush.bf16.msra.mxu0 %v1929
    %1939 = vmatmul.bf16.gmra.mxu0 %v196
    %v1940 = vpop.f32.mrf.mxu0
    %v1941 = vadd.f32 0.0, %v1940
    %v1942 = vpop.f32.mrf.mxu0
    %v1943 = vadd.f32 0.0, %v1942
    %1944 = vmatmul.bf16.gmra.mxu0 %v199
    %v1945 = vpop.f32.mrf.mxu0
    %v1946 = vadd.f32 0.0, %v1945
    %v1947 = vpop.f32.mrf.mxu0
    %v1948 = vadd.f32 0.0, %v1947
    %1949 = vmatmul.bf16.gmra.mxu0 %v202
    %v1950 = vpop.f32.mrf.mxu0
    %v1951 = vadd.f32 0.0, %v1950
    %v1952 = vpop.f32.mrf.mxu0
    %v1953 = vadd.f32 0.0, %v1952
    %1954 = vmatmul.bf16.gmra.mxu0 %v205
    %v1955 = vpop.f32.mrf.mxu0
    %v1956 = vadd.f32 0.0, %v1955
    %v1957 = vpop.f32.mrf.mxu0
    %v1958 = vadd.f32 0.0, %v1957
    %1959 = vmatmul.bf16.gmra.mxu0 %v208
    %v1960 = vpop.f32.mrf.mxu0
    %v1961 = vadd.f32 0.0, %v1960
    %v1962 = vpop.f32.mrf.mxu0
    %v1963 = vadd.f32 0.0, %v1962
    %1964 = vmatmul.bf16.gmra.mxu0 %v211
    %v1965 = vpop.f32.mrf.mxu0
    %v1966 = vadd.f32 0.0, %v1965
    %v1967 = vpop.f32.mrf.mxu0
    %v1968 = vadd.f32 0.0, %v1967
    %1969 = vmatmul.bf16.gmra.mxu0 %v214
    %v1970 = vpop.f32.mrf.mxu0
    %v1971 = vadd.f32 0.0, %v1970
    %v1972 = vpop.f32.mrf.mxu0
    %v1973 = vadd.f32 0.0, %v1972
    %1974 = vmatmul.bf16.gmra.mxu0 %v217
    %v1975 = vpop.f32.mrf.mxu0
    %v1976 = vadd.f32 0.0, %v1975
    %v1977 = vpop.f32.mrf.mxu0
    %v1978 = vadd.f32 0.0, %v1977
    %1979 = vdwg.mxu0
    %1980 = vmatpush.bf16.msra.mxu0 %v1928
    %1981 = vmatpush.bf16.msra.mxu0 %v1927
    %1982 = vmatpush.bf16.msra.mxu0 %v1926
    %1983 = vmatpush.bf16.msra.mxu0 %v1925
    %1984 = vmatpush.bf16.msra.mxu0 %v1924
    %1985 = vmatpush.bf16.msra.mxu0 %v1923
    %1986 = vmatpush.bf16.msra.mxu0 %v1922
    %1987 = vmatpush.bf16.msra.mxu0 %v1921
    %1988 = vmatmul.bf16.gmra.mxu0 %v300
    %v1989 = vpop.f32.mrf.mxu0
    %v1990 = vadd.f32 %v1941, %v1989
    %v1991 = vpop.f32.mrf.mxu0
    %v1992 = vadd.f32 %v1943, %v1991
    %1993 = vmatmul.bf16.gmra.mxu0 %v301
    %v1994 = vpop.f32.mrf.mxu0
    %v1995 = vadd.f32 %v1946, %v1994
    %v1996 = vpop.f32.mrf.mxu0
    %v1997 = vadd.f32 %v1948, %v1996
    %1998 = vmatmul.bf16.gmra.mxu0 %v302
    %v1999 = vpop.f32.mrf.mxu0
    %v2000 = vadd.f32 %v1951, %v1999
    %v2001 = vpop.f32.mrf.mxu0
    %v2002 = vadd.f32 %v1953, %v2001
    %2003 = vmatmul.bf16.gmra.mxu0 %v303
    %v2004 = vpop.f32.mrf.mxu0
    %v2005 = vadd.f32 %v1956, %v2004
    %v2006 = vpop.f32.mrf.mxu0
    %v2007 = vadd.f32 %v1958, %v2006
    %2008 = vmatmul.bf16.gmra.mxu0 %v304
    %v2009 = vpop.f32.mrf.mxu0
    %v2010 = vadd.f32 %v1961, %v2009
    %v2011 = vpop.f32.mrf.mxu0
    %v2012 = vadd.f32 %v1963, %v2011
    %2013 = vmatmul.bf16.gmra.mxu0 %v305
    %v2014 = vpop.f32.mrf.mxu0
    %v2015 = vadd.f32 %v1966, %v2014
    %v2016 = vpop.f32.mrf.mxu0
    %v2017 = vadd.f32 %v1968, %v2016
    %2018 = vmatmul.bf16.gmra.mxu0 %v306
    %v2019 = vpop.f32.mrf.mxu0
    %v2020 = vadd.f32 %v1971, %v2019
    %v2021 = vpop.f32.mrf.mxu0
    %v2022 = vadd.f32 %v1973, %v2021
    %2023 = vmatmul.bf16.gmra.mxu0 %v307
    %v2024 = vpop.f32.mrf.mxu0
    %v2025 = vadd.f32 %v1976, %v2024
    %v2026 = vpop.f32.mrf.mxu0
    %v2027 = vadd.f32 %v1978, %v2026
    %2028 = vdwg.mxu0
    %v2029 = vxor.u32 %v1990, 2147483648
    %v2030 = vxor.u32 %v1992, 2147483648
    %v2031 = vxor.u32 %v1995, 2147483648
    %v2032 = vxor.u32 %v1997, 2147483648
    %v2033 = vmul.f32 %v2029, 1.442695
    %v2034 = vpow.pop %v2033
    %v2035 = vmul.f32 %v2030, 1.442695
    %v2036 = vpow.pop %v2035
    %v2037 = vmul.f32 %v2031, 1.442695
    %v2038 = vpow.pop %v2037
    %v2039 = vmul.f32 %v2032, 1.442695
    %v2040 = vpow.pop %v2039
    %v2041 = vadd.f32 %v2034, 1.0
    %v2042 = vadd.f32 %v2036, 1.0
    %v2043 = vadd.f32 %v2038, 1.0
    %v2044 = vadd.f32 %v2040, 1.0
    %v2045 = vrcp.pop %v2041
    %v2046 = vmul.f32 %v2041, %v2045
    %v2047 = vsub.f32 1.0, %v2046
    %v2048 = vmul.f32 %v2045, %v2047
    %v2049 = vadd.f32 %v2045, %v2048
    %vm2050 = vweird.f32 %v2041
    %vm2051 = vweird.f32 %v2045
    %vm2052 = vmor %vm2050, %vm2051
    %v2053 = vsel %vm2052, %v2045, %v2049
    %v2054 = vand.u32 2147483647, %v2041
    %vm2055 = vcmp.eq.f32.partialorder %v2054, 8.507059e+37
    %v2056 = vand.u32 %v2041, 2147483648
    %v2057 = vor.u32 1.1754944e-38, %v2056
    %v2058 = vsel %vm2055, %v2057, %v2053
    %v2059 = vmul.f32 1.0, %v2058
    %v2060 = vrcp.pop %v2042
    %v2061 = vmul.f32 %v2042, %v2060
    %v2062 = vsub.f32 1.0, %v2061
    %v2063 = vmul.f32 %v2060, %v2062
    %v2064 = vadd.f32 %v2060, %v2063
    %vm2065 = vweird.f32 %v2042
    %vm2066 = vweird.f32 %v2060
    %vm2067 = vmor %vm2065, %vm2066
    %v2068 = vsel %vm2067, %v2060, %v2064
    %v2069 = vand.u32 2147483647, %v2042
    %vm2070 = vcmp.eq.f32.partialorder %v2069, 8.507059e+37
    %v2071 = vand.u32 %v2042, 2147483648
    %v2072 = vor.u32 1.1754944e-38, %v2071
    %v2073 = vsel %vm2070, %v2072, %v2068
    %v2074 = vmul.f32 1.0, %v2073
    %v2075 = vrcp.pop %v2043
    %v2076 = vmul.f32 %v2043, %v2075
    %v2077 = vsub.f32 1.0, %v2076
    %v2078 = vmul.f32 %v2075, %v2077
    %v2079 = vadd.f32 %v2075, %v2078
    %vm2080 = vweird.f32 %v2043
    %vm2081 = vweird.f32 %v2075
    %vm2082 = vmor %vm2080, %vm2081
    %v2083 = vsel %vm2082, %v2075, %v2079
    %v2084 = vand.u32 2147483647, %v2043
    %vm2085 = vcmp.eq.f32.partialorder %v2084, 8.507059e+37
    %v2086 = vand.u32 %v2043, 2147483648
    %v2087 = vor.u32 1.1754944e-38, %v2086
    %v2088 = vsel %vm2085, %v2087, %v2083
    %v2089 = vmul.f32 1.0, %v2088
    %v2090 = vrcp.pop %v2044
    %v2091 = vmul.f32 %v2044, %v2090
    %v2092 = vsub.f32 1.0, %v2091
    %v2093 = vmul.f32 %v2090, %v2092
    %v2094 = vadd.f32 %v2090, %v2093
    %vm2095 = vweird.f32 %v2044
    %vm2096 = vweird.f32 %v2090
    %vm2097 = vmor %vm2095, %vm2096
    %v2098 = vsel %vm2097, %v2090, %v2094
    %v2099 = vand.u32 2147483647, %v2044
    %vm2100 = vcmp.eq.f32.partialorder %v2099, 8.507059e+37
    %v2101 = vand.u32 %v2044, 2147483648
    %v2102 = vor.u32 1.1754944e-38, %v2101
    %v2103 = vsel %vm2100, %v2102, %v2098
    %v2104 = vmul.f32 1.0, %v2103
    %v2105 = vxor.u32 %v2000, 2147483648
    %v2106 = vxor.u32 %v2002, 2147483648
    %v2107 = vxor.u32 %v2005, 2147483648
    %v2108 = vxor.u32 %v2007, 2147483648
    %v2109 = vmul.f32 %v2105, 1.442695
    %v2110 = vpow.pop %v2109
    %v2111 = vmul.f32 %v2106, 1.442695
    %v2112 = vpow.pop %v2111
    %v2113 = vmul.f32 %v2107, 1.442695
    %v2114 = vpow.pop %v2113
    %v2115 = vmul.f32 %v2108, 1.442695
    %v2116 = vpow.pop %v2115
    %v2117 = vadd.f32 %v2110, 1.0
    %v2118 = vadd.f32 %v2112, 1.0
    %v2119 = vadd.f32 %v2114, 1.0
    %v2120 = vadd.f32 %v2116, 1.0
    %v2121 = vrcp.pop %v2117
    %v2122 = vmul.f32 %v2117, %v2121
    %v2123 = vsub.f32 1.0, %v2122
    %v2124 = vmul.f32 %v2121, %v2123
    %v2125 = vadd.f32 %v2121, %v2124
    %vm2126 = vweird.f32 %v2117
    %vm2127 = vweird.f32 %v2121
    %vm2128 = vmor %vm2126, %vm2127
    %v2129 = vsel %vm2128, %v2121, %v2125
    %v2130 = vand.u32 2147483647, %v2117
    %vm2131 = vcmp.eq.f32.partialorder %v2130, 8.507059e+37
    %v2132 = vand.u32 %v2117, 2147483648
    %v2133 = vor.u32 1.1754944e-38, %v2132
    %v2134 = vsel %vm2131, %v2133, %v2129
    %v2135 = vmul.f32 1.0, %v2134
    %v2136 = vrcp.pop %v2118
    %v2137 = vmul.f32 %v2118, %v2136
    %v2138 = vsub.f32 1.0, %v2137
    %v2139 = vmul.f32 %v2136, %v2138
    %v2140 = vadd.f32 %v2136, %v2139
    %vm2141 = vweird.f32 %v2118
    %vm2142 = vweird.f32 %v2136
    %vm2143 = vmor %vm2141, %vm2142
    %v2144 = vsel %vm2143, %v2136, %v2140
    %v2145 = vand.u32 2147483647, %v2118
    %vm2146 = vcmp.eq.f32.partialorder %v2145, 8.507059e+37
    %v2147 = vand.u32 %v2118, 2147483648
    %v2148 = vor.u32 1.1754944e-38, %v2147
    %v2149 = vsel %vm2146, %v2148, %v2144
    %v2150 = vmul.f32 1.0, %v2149
    %v2151 = vrcp.pop %v2119
    %v2152 = vmul.f32 %v2119, %v2151
    %v2153 = vsub.f32 1.0, %v2152
    %v2154 = vmul.f32 %v2151, %v2153
    %v2155 = vadd.f32 %v2151, %v2154
    %vm2156 = vweird.f32 %v2119
    %vm2157 = vweird.f32 %v2151
    %vm2158 = vmor %vm2156, %vm2157
    %v2159 = vsel %vm2158, %v2151, %v2155
    %v2160 = vand.u32 2147483647, %v2119
    %vm2161 = vcmp.eq.f32.partialorder %v2160, 8.507059e+37
    %v2162 = vand.u32 %v2119, 2147483648
    %v2163 = vor.u32 1.1754944e-38, %v2162
    %v2164 = vsel %vm2161, %v2163, %v2159
    %v2165 = vmul.f32 1.0, %v2164
    %v2166 = vrcp.pop %v2120
    %v2167 = vmul.f32 %v2120, %v2166
    %v2168 = vsub.f32 1.0, %v2167
    %v2169 = vmul.f32 %v2166, %v2168
    %v2170 = vadd.f32 %v2166, %v2169
    %vm2171 = vweird.f32 %v2120
    %vm2172 = vweird.f32 %v2166
    %vm2173 = vmor %vm2171, %vm2172
    %v2174 = vsel %vm2173, %v2166, %v2170
    %v2175 = vand.u32 2147483647, %v2120
    %vm2176 = vcmp.eq.f32.partialorder %v2175, 8.507059e+37
    %v2177 = vand.u32 %v2120, 2147483648
    %v2178 = vor.u32 1.1754944e-38, %v2177
    %v2179 = vsel %vm2176, %v2178, %v2174
    %v2180 = vmul.f32 1.0, %v2179
    %v2181 = vtanh.pop %v2010
    %v2182 = vtanh.pop %v2012
    %v2183 = vtanh.pop %v2015
    %v2184 = vtanh.pop %v2017
    %v2185 = vxor.u32 %v2020, 2147483648
    %v2186 = vxor.u32 %v2022, 2147483648
    %v2187 = vxor.u32 %v2025, 2147483648
    %v2188 = vxor.u32 %v2027, 2147483648
    %v2189 = vmul.f32 %v2185, 1.442695
    %v2190 = vpow.pop %v2189
    %v2191 = vmul.f32 %v2186, 1.442695
    %v2192 = vpow.pop %v2191
    %v2193 = vmul.f32 %v2187, 1.442695
    %v2194 = vpow.pop %v2193
    %v2195 = vmul.f32 %v2188, 1.442695
    %v2196 = vpow.pop %v2195
    %v2197 = vadd.f32 %v2190, 1.0
    %v2198 = vadd.f32 %v2192, 1.0
    %v2199 = vadd.f32 %v2194, 1.0
    %v2200 = vadd.f32 %v2196, 1.0
    %v2201 = vrcp.pop %v2197
    %v2202 = vmul.f32 %v2197, %v2201
    %v2203 = vsub.f32 1.0, %v2202
    %v2204 = vmul.f32 %v2201, %v2203
    %v2205 = vadd.f32 %v2201, %v2204
    %vm2206 = vweird.f32 %v2197
    %vm2207 = vweird.f32 %v2201
    %vm2208 = vmor %vm2206, %vm2207
    %v2209 = vsel %vm2208, %v2201, %v2205
    %v2210 = vand.u32 2147483647, %v2197
    %vm2211 = vcmp.eq.f32.partialorder %v2210, 8.507059e+37
    %v2212 = vand.u32 %v2197, 2147483648
    %v2213 = vor.u32 1.1754944e-38, %v2212
    %v2214 = vsel %vm2211, %v2213, %v2209
    %v2215 = vmul.f32 1.0, %v2214
    %v2216 = vrcp.pop %v2198
    %v2217 = vmul.f32 %v2198, %v2216
    %v2218 = vsub.f32 1.0, %v2217
    %v2219 = vmul.f32 %v2216, %v2218
    %v2220 = vadd.f32 %v2216, %v2219
    %vm2221 = vweird.f32 %v2198
    %vm2222 = vweird.f32 %v2216
    %vm2223 = vmor %vm2221, %vm2222
    %v2224 = vsel %vm2223, %v2216, %v2220
    %v2225 = vand.u32 2147483647, %v2198
    %vm2226 = vcmp.eq.f32.partialorder %v2225, 8.507059e+37
    %v2227 = vand.u32 %v2198, 2147483648
    %v2228 = vor.u32 1.1754944e-38, %v2227
    %v2229 = vsel %vm2226, %v2228, %v2224
    %v2230 = vmul.f32 1.0, %v2229
    %v2231 = vrcp.pop %v2199
    %v2232 = vmul.f32 %v2199, %v2231
    %v2233 = vsub.f32 1.0, %v2232
    %v2234 = vmul.f32 %v2231, %v2233
    %v2235 = vadd.f32 %v2231, %v2234
    %vm2236 = vweird.f32 %v2199
    %vm2237 = vweird.f32 %v2231
    %vm2238 = vmor %vm2236, %vm2237
    %v2239 = vsel %vm2238, %v2231, %v2235
    %v2240 = vand.u32 2147483647, %v2199
    %vm2241 = vcmp.eq.f32.partialorder %v2240, 8.507059e+37
    %v2242 = vand.u32 %v2199, 2147483648
    %v2243 = vor.u32 1.1754944e-38, %v2242
    %v2244 = vsel %vm2241, %v2243, %v2239
    %v2245 = vmul.f32 1.0, %v2244
    %v2246 = vrcp.pop %v2200
    %v2247 = vmul.f32 %v2200, %v2246
    %v2248 = vsub.f32 1.0, %v2247
    %v2249 = vmul.f32 %v2246, %v2248
    %v2250 = vadd.f32 %v2246, %v2249
    %vm2251 = vweird.f32 %v2200
    %vm2252 = vweird.f32 %v2246
    %vm2253 = vmor %vm2251, %vm2252
    %v2254 = vsel %vm2253, %v2246, %v2250
    %v2255 = vand.u32 2147483647, %v2200
    %vm2256 = vcmp.eq.f32.partialorder %v2255, 8.507059e+37
    %v2257 = vand.u32 %v2200, 2147483648
    %v2258 = vor.u32 1.1754944e-38, %v2257
    %v2259 = vsel %vm2256, %v2258, %v2254
    %v2260 = vmul.f32 1.0, %v2259
    %v2261 = vmul.f32 %v2135, %v1853
    %v2262 = vmul.f32 %v2150, %v1854
    %v2263 = vmul.f32 %v2165, %v1855
    %v2264 = vmul.f32 %v2180, %v1856
    %v2265 = vmul.f32 %v2059, %v2181
    %v2266 = vmul.f32 %v2074, %v2182
    %v2267 = vmul.f32 %v2089, %v2183
    %v2268 = vmul.f32 %v2104, %v2184
    %v2269 = vadd.f32 %v2261, %v2265
    %v2270 = vadd.f32 %v2262, %v2266
    %v2271 = vadd.f32 %v2263, %v2267
    %v2272 = vadd.f32 %v2264, %v2268
    %v2273 = vtanh.pop %v2269
    %v2274 = vtanh.pop %v2270
    %v2275 = vtanh.pop %v2271
    %v2276 = vtanh.pop %v2272
    %v2277 = vmul.f32 %v2215, %v2273
    %v2278 = vmul.f32 %v2230, %v2274
    %v2279 = vmul.f32 %v2245, %v2275
    %v2280 = vmul.f32 %v2260, %v2276
    %s2281 = scalar_lea.vmem [#allocation2], 128
    %2282 = vst.msk [vmem:[%s2281] sm:$0xff] %vm617, %v2277
    %2283 = vst.msk [vmem:[%s2281 + $0x8] sm:$0xff] %vm617, %v2278
    %2284 = vst.msk [vmem:[%s2281 + $0x10] sm:$0xff] %vm617, %v2279
    %2285 = vst.msk [vmem:[%s2281 + $0x18] sm:$0xff] %vm617, %v2280
    %s2286 = scalar_lea.vmem %s0, 5
    %v2287 = vld [vmem:[%s2286] sm:$0x1]
    %v2288 = vperm.slane %v2287, 0
    %vm2289 = vcmp.eq.s32.totalorder %v80, %v2288
    %vm2290 = vcmp.eq.s32.totalorder %v81, %v2288
    %vm2291 = vcmp.eq.s32.totalorder %v82, %v2288
    %vm2292 = vcmp.eq.s32.totalorder %v83, %v2288
    %vm2293 = vcmp.eq.s32.totalorder %v84, %v2288
    %vm2294 = vcmp.eq.s32.totalorder %v85, %v2288
    %vm2295 = vcmp.eq.s32.totalorder %v86, %v2288
    %vm2296 = vcmp.eq.s32.totalorder %v87, %v2288
    %vm2297 = vcmp.eq.s32.totalorder %v88, %v2288
    %vm2298 = vcmp.eq.s32.totalorder %v89, %v2288
    %vm2299 = vcmp.eq.s32.totalorder %v90, %v2288
    %vm2300 = vcmp.eq.s32.totalorder %v91, %v2288
    %vm2301 = vcmp.eq.s32.totalorder %v92, %v2288
    %vm2302 = vcmp.eq.s32.totalorder %v93, %v2288
    %vm2303 = vcmp.eq.s32.totalorder %v94, %v2288
    %vm2304 = vcmp.eq.s32.totalorder %v95, %v2288
    %v2305 = vsel %vm2289, 1, 0
    %v2306 = vsel %vm2290, 1, 0
    %v2307 = vsel %vm2291, 1, 0
    %v2308 = vsel %vm2292, 1, 0
    %v2309 = vsel %vm2293, 1, 0
    %v2310 = vsel %vm2294, 1, 0
    %v2311 = vsel %vm2295, 1, 0
    %v2312 = vsel %vm2296, 1, 0
    %v2313 = vsel %vm2297, 1, 0
    %v2314 = vsel %vm2298, 1, 0
    %v2315 = vsel %vm2299, 1, 0
    %v2316 = vsel %vm2300, 1, 0
    %v2317 = vsel %vm2301, 1, 0
    %v2318 = vsel %vm2302, 1, 0
    %v2319 = vsel %vm2303, 1, 0
    %v2320 = vsel %vm2304, 1, 0
    %v2321 = vcvt.s32.f32 %v2305
    %v2322 = vcvt.s32.f32 %v2306
    %v2323 = vcvt.s32.f32 %v2307
    %v2324 = vcvt.s32.f32 %v2308
    %v2325 = vcvt.s32.f32 %v2309
    %v2326 = vcvt.s32.f32 %v2310
    %v2327 = vcvt.s32.f32 %v2311
    %v2328 = vcvt.s32.f32 %v2312
    %v2329 = vcvt.s32.f32 %v2313
    %v2330 = vcvt.s32.f32 %v2314
    %v2331 = vcvt.s32.f32 %v2315
    %v2332 = vcvt.s32.f32 %v2316
    %v2333 = vcvt.s32.f32 %v2317
    %v2334 = vcvt.s32.f32 %v2318
    %v2335 = vcvt.s32.f32 %v2319
    %v2336 = vcvt.s32.f32 %v2320
    %v2337 = vpack.c.bf16 %v2322, %v2321
    %v2338 = vpack.c.bf16 %v2324, %v2323
    %v2339 = vpack.c.bf16 %v2326, %v2325
    %v2340 = vpack.c.bf16 %v2328, %v2327
    %v2341 = vpack.c.bf16 %v2330, %v2329
    %v2342 = vpack.c.bf16 %v2332, %v2331
    %v2343 = vpack.c.bf16 %v2334, %v2333
    %v2344 = vpack.c.bf16 %v2336, %v2335
    %v2345 = vpack.c.bf16 %v2278, %v2277
    %v2346 = vpack.c.bf16 %v2280, %v2279
    %2347 = vmatpush.bf16.msra.mxu0 0
    %2348 = vmatpush.bf16.msra.mxu0 0
    %2349 = vmatpush.bf16.msra.mxu0 0
    %2350 = vmatpush.bf16.msra.mxu0 0
    %2351 = vmatpush.bf16.msra.mxu0 0
    %2352 = vmatpush.bf16.msra.mxu0 0
    %2353 = vmatpush.bf16.msra.mxu0 %v2346
    %2354 = vmatpush.bf16.msra.mxu0 %v2345
    %2355 = vmatmul.bf16.gmra.mxu0 %v196
    %v2356 = vpop.f32.mrf.mxu0
    %v2357 = vadd.f32 0.0, %v2356
    %v2358 = vpop.f32.mrf.mxu0
    %v2359 = vadd.f32 0.0, %v2358
    %2360 = vmatmul.bf16.gmra.mxu0 %v199
    %v2361 = vpop.f32.mrf.mxu0
    %v2362 = vadd.f32 0.0, %v2361
    %v2363 = vpop.f32.mrf.mxu0
    %v2364 = vadd.f32 0.0, %v2363
    %2365 = vmatmul.bf16.gmra.mxu0 %v202
    %v2366 = vpop.f32.mrf.mxu0
    %v2367 = vadd.f32 0.0, %v2366
    %v2368 = vpop.f32.mrf.mxu0
    %v2369 = vadd.f32 0.0, %v2368
    %2370 = vmatmul.bf16.gmra.mxu0 %v205
    %v2371 = vpop.f32.mrf.mxu0
    %v2372 = vadd.f32 0.0, %v2371
    %v2373 = vpop.f32.mrf.mxu0
    %v2374 = vadd.f32 0.0, %v2373
    %2375 = vmatmul.bf16.gmra.mxu0 %v208
    %v2376 = vpop.f32.mrf.mxu0
    %v2377 = vadd.f32 0.0, %v2376
    %v2378 = vpop.f32.mrf.mxu0
    %v2379 = vadd.f32 0.0, %v2378
    %2380 = vmatmul.bf16.gmra.mxu0 %v211
    %v2381 = vpop.f32.mrf.mxu0
    %v2382 = vadd.f32 0.0, %v2381
    %v2383 = vpop.f32.mrf.mxu0
    %v2384 = vadd.f32 0.0, %v2383
    %2385 = vmatmul.bf16.gmra.mxu0 %v214
    %v2386 = vpop.f32.mrf.mxu0
    %v2387 = vadd.f32 0.0, %v2386
    %v2388 = vpop.f32.mrf.mxu0
    %v2389 = vadd.f32 0.0, %v2388
    %2390 = vmatmul.bf16.gmra.mxu0 %v217
    %v2391 = vpop.f32.mrf.mxu0
    %v2392 = vadd.f32 0.0, %v2391
    %v2393 = vpop.f32.mrf.mxu0
    %v2394 = vadd.f32 0.0, %v2393
    %2395 = vdwg.mxu0
    %2396 = vmatpush.bf16.msra.mxu0 %v2344
    %2397 = vmatpush.bf16.msra.mxu0 %v2343
    %2398 = vmatpush.bf16.msra.mxu0 %v2342
    %2399 = vmatpush.bf16.msra.mxu0 %v2341
    %2400 = vmatpush.bf16.msra.mxu0 %v2340
    %2401 = vmatpush.bf16.msra.mxu0 %v2339
    %2402 = vmatpush.bf16.msra.mxu0 %v2338
    %2403 = vmatpush.bf16.msra.mxu0 %v2337
    %2404 = vmatmul.bf16.gmra.mxu0 %v300
    %v2405 = vpop.f32.mrf.mxu0
    %v2406 = vadd.f32 %v2357, %v2405
    %v2407 = vpop.f32.mrf.mxu0
    %v2408 = vadd.f32 %v2359, %v2407
    %2409 = vmatmul.bf16.gmra.mxu0 %v301
    %v2410 = vpop.f32.mrf.mxu0
    %v2411 = vadd.f32 %v2362, %v2410
    %v2412 = vpop.f32.mrf.mxu0
    %v2413 = vadd.f32 %v2364, %v2412
    %2414 = vmatmul.bf16.gmra.mxu0 %v302
    %v2415 = vpop.f32.mrf.mxu0
    %v2416 = vadd.f32 %v2367, %v2415
    %v2417 = vpop.f32.mrf.mxu0
    %v2418 = vadd.f32 %v2369, %v2417
    %2419 = vmatmul.bf16.gmra.mxu0 %v303
    %v2420 = vpop.f32.mrf.mxu0
    %v2421 = vadd.f32 %v2372, %v2420
    %v2422 = vpop.f32.mrf.mxu0
    %v2423 = vadd.f32 %v2374, %v2422
    %2424 = vmatmul.bf16.gmra.mxu0 %v304
    %v2425 = vpop.f32.mrf.mxu0
    %v2426 = vadd.f32 %v2377, %v2425
    %v2427 = vpop.f32.mrf.mxu0
    %v2428 = vadd.f32 %v2379, %v2427
    %2429 = vmatmul.bf16.gmra.mxu0 %v305
    %v2430 = vpop.f32.mrf.mxu0
    %v2431 = vadd.f32 %v2382, %v2430
    %v2432 = vpop.f32.mrf.mxu0
    %v2433 = vadd.f32 %v2384, %v2432
    %2434 = vmatmul.bf16.gmra.mxu0 %v306
    %v2435 = vpop.f32.mrf.mxu0
    %v2436 = vadd.f32 %v2387, %v2435
    %v2437 = vpop.f32.mrf.mxu0
    %v2438 = vadd.f32 %v2389, %v2437
    %2439 = vmatmul.bf16.gmra.mxu0 %v307
    %v2440 = vpop.f32.mrf.mxu0
    %v2441 = vadd.f32 %v2392, %v2440
    %v2442 = vpop.f32.mrf.mxu0
    %v2443 = vadd.f32 %v2394, %v2442
    %2444 = vdwg.mxu0
    %v2445 = vxor.u32 %v2406, 2147483648
    %v2446 = vxor.u32 %v2408, 2147483648
    %v2447 = vxor.u32 %v2411, 2147483648
    %v2448 = vxor.u32 %v2413, 2147483648
    %v2449 = vmul.f32 %v2445, 1.442695
    %v2450 = vpow.pop %v2449
    %v2451 = vmul.f32 %v2446, 1.442695
    %v2452 = vpow.pop %v2451
    %v2453 = vmul.f32 %v2447, 1.442695
    %v2454 = vpow.pop %v2453
    %v2455 = vmul.f32 %v2448, 1.442695
    %v2456 = vpow.pop %v2455
    %v2457 = vadd.f32 %v2450, 1.0
    %v2458 = vadd.f32 %v2452, 1.0
    %v2459 = vadd.f32 %v2454, 1.0
    %v2460 = vadd.f32 %v2456, 1.0
    %v2461 = vrcp.pop %v2457
    %v2462 = vmul.f32 %v2457, %v2461
    %v2463 = vsub.f32 1.0, %v2462
    %v2464 = vmul.f32 %v2461, %v2463
    %v2465 = vadd.f32 %v2461, %v2464
    %vm2466 = vweird.f32 %v2457
    %vm2467 = vweird.f32 %v2461
    %vm2468 = vmor %vm2466, %vm2467
    %v2469 = vsel %vm2468, %v2461, %v2465
    %v2470 = vand.u32 2147483647, %v2457
    %vm2471 = vcmp.eq.f32.partialorder %v2470, 8.507059e+37
    %v2472 = vand.u32 %v2457, 2147483648
    %v2473 = vor.u32 1.1754944e-38, %v2472
    %v2474 = vsel %vm2471, %v2473, %v2469
    %v2475 = vmul.f32 1.0, %v2474
    %v2476 = vrcp.pop %v2458
    %v2477 = vmul.f32 %v2458, %v2476
    %v2478 = vsub.f32 1.0, %v2477
    %v2479 = vmul.f32 %v2476, %v2478
    %v2480 = vadd.f32 %v2476, %v2479
    %vm2481 = vweird.f32 %v2458
    %vm2482 = vweird.f32 %v2476
    %vm2483 = vmor %vm2481, %vm2482
    %v2484 = vsel %vm2483, %v2476, %v2480
    %v2485 = vand.u32 2147483647, %v2458
    %vm2486 = vcmp.eq.f32.partialorder %v2485, 8.507059e+37
    %v2487 = vand.u32 %v2458, 2147483648
    %v2488 = vor.u32 1.1754944e-38, %v2487
    %v2489 = vsel %vm2486, %v2488, %v2484
    %v2490 = vmul.f32 1.0, %v2489
    %v2491 = vrcp.pop %v2459
    %v2492 = vmul.f32 %v2459, %v2491
    %v2493 = vsub.f32 1.0, %v2492
    %v2494 = vmul.f32 %v2491, %v2493
    %v2495 = vadd.f32 %v2491, %v2494
    %vm2496 = vweird.f32 %v2459
    %vm2497 = vweird.f32 %v2491
    %vm2498 = vmor %vm2496, %vm2497
    %v2499 = vsel %vm2498, %v2491, %v2495
    %v2500 = vand.u32 2147483647, %v2459
    %vm2501 = vcmp.eq.f32.partialorder %v2500, 8.507059e+37
    %v2502 = vand.u32 %v2459, 2147483648
    %v2503 = vor.u32 1.1754944e-38, %v2502
    %v2504 = vsel %vm2501, %v2503, %v2499
    %v2505 = vmul.f32 1.0, %v2504
    %v2506 = vrcp.pop %v2460
    %v2507 = vmul.f32 %v2460, %v2506
    %v2508 = vsub.f32 1.0, %v2507
    %v2509 = vmul.f32 %v2506, %v2508
    %v2510 = vadd.f32 %v2506, %v2509
    %vm2511 = vweird.f32 %v2460
    %vm2512 = vweird.f32 %v2506
    %vm2513 = vmor %vm2511, %vm2512
    %v2514 = vsel %vm2513, %v2506, %v2510
    %v2515 = vand.u32 2147483647, %v2460
    %vm2516 = vcmp.eq.f32.partialorder %v2515, 8.507059e+37
    %v2517 = vand.u32 %v2460, 2147483648
    %v2518 = vor.u32 1.1754944e-38, %v2517
    %v2519 = vsel %vm2516, %v2518, %v2514
    %v2520 = vmul.f32 1.0, %v2519
    %v2521 = vxor.u32 %v2416, 2147483648
    %v2522 = vxor.u32 %v2418, 2147483648
    %v2523 = vxor.u32 %v2421, 2147483648
    %v2524 = vxor.u32 %v2423, 2147483648
    %v2525 = vmul.f32 %v2521, 1.442695
    %v2526 = vpow.pop %v2525
    %v2527 = vmul.f32 %v2522, 1.442695
    %v2528 = vpow.pop %v2527
    %v2529 = vmul.f32 %v2523, 1.442695
    %v2530 = vpow.pop %v2529
    %v2531 = vmul.f32 %v2524, 1.442695
    %v2532 = vpow.pop %v2531
    %v2533 = vadd.f32 %v2526, 1.0
    %v2534 = vadd.f32 %v2528, 1.0
    %v2535 = vadd.f32 %v2530, 1.0
    %v2536 = vadd.f32 %v2532, 1.0
    %v2537 = vrcp.pop %v2533
    %v2538 = vmul.f32 %v2533, %v2537
    %v2539 = vsub.f32 1.0, %v2538
    %v2540 = vmul.f32 %v2537, %v2539
    %v2541 = vadd.f32 %v2537, %v2540
    %vm2542 = vweird.f32 %v2533
    %vm2543 = vweird.f32 %v2537
    %vm2544 = vmor %vm2542, %vm2543
    %v2545 = vsel %vm2544, %v2537, %v2541
    %v2546 = vand.u32 2147483647, %v2533
    %vm2547 = vcmp.eq.f32.partialorder %v2546, 8.507059e+37
    %v2548 = vand.u32 %v2533, 2147483648
    %v2549 = vor.u32 1.1754944e-38, %v2548
    %v2550 = vsel %vm2547, %v2549, %v2545
    %v2551 = vmul.f32 1.0, %v2550
    %v2552 = vrcp.pop %v2534
    %v2553 = vmul.f32 %v2534, %v2552
    %v2554 = vsub.f32 1.0, %v2553
    %v2555 = vmul.f32 %v2552, %v2554
    %v2556 = vadd.f32 %v2552, %v2555
    %vm2557 = vweird.f32 %v2534
    %vm2558 = vweird.f32 %v2552
    %vm2559 = vmor %vm2557, %vm2558
    %v2560 = vsel %vm2559, %v2552, %v2556
    %v2561 = vand.u32 2147483647, %v2534
    %vm2562 = vcmp.eq.f32.partialorder %v2561, 8.507059e+37
    %v2563 = vand.u32 %v2534, 2147483648
    %v2564 = vor.u32 1.1754944e-38, %v2563
    %v2565 = vsel %vm2562, %v2564, %v2560
    %v2566 = vmul.f32 1.0, %v2565
    %v2567 = vrcp.pop %v2535
    %v2568 = vmul.f32 %v2535, %v2567
    %v2569 = vsub.f32 1.0, %v2568
    %v2570 = vmul.f32 %v2567, %v2569
    %v2571 = vadd.f32 %v2567, %v2570
    %vm2572 = vweird.f32 %v2535
    %vm2573 = vweird.f32 %v2567
    %vm2574 = vmor %vm2572, %vm2573
    %v2575 = vsel %vm2574, %v2567, %v2571
    %v2576 = vand.u32 2147483647, %v2535
    %vm2577 = vcmp.eq.f32.partialorder %v2576, 8.507059e+37
    %v2578 = vand.u32 %v2535, 2147483648
    %v2579 = vor.u32 1.1754944e-38, %v2578
    %v2580 = vsel %vm2577, %v2579, %v2575
    %v2581 = vmul.f32 1.0, %v2580
    %v2582 = vrcp.pop %v2536
    %v2583 = vmul.f32 %v2536, %v2582
    %v2584 = vsub.f32 1.0, %v2583
    %v2585 = vmul.f32 %v2582, %v2584
    %v2586 = vadd.f32 %v2582, %v2585
    %vm2587 = vweird.f32 %v2536
    %vm2588 = vweird.f32 %v2582
    %vm2589 = vmor %vm2587, %vm2588
    %v2590 = vsel %vm2589, %v2582, %v2586
    %v2591 = vand.u32 2147483647, %v2536
    %vm2592 = vcmp.eq.f32.partialorder %v2591, 8.507059e+37
    %v2593 = vand.u32 %v2536, 2147483648
    %v2594 = vor.u32 1.1754944e-38, %v2593
    %v2595 = vsel %vm2592, %v2594, %v2590
    %v2596 = vmul.f32 1.0, %v2595
    %v2597 = vtanh.pop %v2426
    %v2598 = vtanh.pop %v2428
    %v2599 = vtanh.pop %v2431
    %v2600 = vtanh.pop %v2433
    %v2601 = vxor.u32 %v2436, 2147483648
    %v2602 = vxor.u32 %v2438, 2147483648
    %v2603 = vxor.u32 %v2441, 2147483648
    %v2604 = vxor.u32 %v2443, 2147483648
    %v2605 = vmul.f32 %v2601, 1.442695
    %v2606 = vpow.pop %v2605
    %v2607 = vmul.f32 %v2602, 1.442695
    %v2608 = vpow.pop %v2607
    %v2609 = vmul.f32 %v2603, 1.442695
    %v2610 = vpow.pop %v2609
    %v2611 = vmul.f32 %v2604, 1.442695
    %v2612 = vpow.pop %v2611
    %v2613 = vadd.f32 %v2606, 1.0
    %v2614 = vadd.f32 %v2608, 1.0
    %v2615 = vadd.f32 %v2610, 1.0
    %v2616 = vadd.f32 %v2612, 1.0
    %v2617 = vrcp.pop %v2613
    %v2618 = vmul.f32 %v2613, %v2617
    %v2619 = vsub.f32 1.0, %v2618
    %v2620 = vmul.f32 %v2617, %v2619
    %v2621 = vadd.f32 %v2617, %v2620
    %vm2622 = vweird.f32 %v2613
    %vm2623 = vweird.f32 %v2617
    %vm2624 = vmor %vm2622, %vm2623
    %v2625 = vsel %vm2624, %v2617, %v2621
    %v2626 = vand.u32 2147483647, %v2613
    %vm2627 = vcmp.eq.f32.partialorder %v2626, 8.507059e+37
    %v2628 = vand.u32 %v2613, 2147483648
    %v2629 = vor.u32 1.1754944e-38, %v2628
    %v2630 = vsel %vm2627, %v2629, %v2625
    %v2631 = vmul.f32 1.0, %v2630
    %v2632 = vrcp.pop %v2614
    %v2633 = vmul.f32 %v2614, %v2632
    %v2634 = vsub.f32 1.0, %v2633
    %v2635 = vmul.f32 %v2632, %v2634
    %v2636 = vadd.f32 %v2632, %v2635
    %vm2637 = vweird.f32 %v2614
    %vm2638 = vweird.f32 %v2632
    %vm2639 = vmor %vm2637, %vm2638
    %v2640 = vsel %vm2639, %v2632, %v2636
    %v2641 = vand.u32 2147483647, %v2614
    %vm2642 = vcmp.eq.f32.partialorder %v2641, 8.507059e+37
    %v2643 = vand.u32 %v2614, 2147483648
    %v2644 = vor.u32 1.1754944e-38, %v2643
    %v2645 = vsel %vm2642, %v2644, %v2640
    %v2646 = vmul.f32 1.0, %v2645
    %v2647 = vrcp.pop %v2615
    %v2648 = vmul.f32 %v2615, %v2647
    %v2649 = vsub.f32 1.0, %v2648
    %v2650 = vmul.f32 %v2647, %v2649
    %v2651 = vadd.f32 %v2647, %v2650
    %vm2652 = vweird.f32 %v2615
    %vm2653 = vweird.f32 %v2647
    %vm2654 = vmor %vm2652, %vm2653
    %v2655 = vsel %vm2654, %v2647, %v2651
    %v2656 = vand.u32 2147483647, %v2615
    %vm2657 = vcmp.eq.f32.partialorder %v2656, 8.507059e+37
    %v2658 = vand.u32 %v2615, 2147483648
    %v2659 = vor.u32 1.1754944e-38, %v2658
    %v2660 = vsel %vm2657, %v2659, %v2655
    %v2661 = vmul.f32 1.0, %v2660
    %v2662 = vrcp.pop %v2616
    %v2663 = vmul.f32 %v2616, %v2662
    %v2664 = vsub.f32 1.0, %v2663
    %v2665 = vmul.f32 %v2662, %v2664
    %v2666 = vadd.f32 %v2662, %v2665
    %vm2667 = vweird.f32 %v2616
    %vm2668 = vweird.f32 %v2662
    %vm2669 = vmor %vm2667, %vm2668
    %v2670 = vsel %vm2669, %v2662, %v2666
    %v2671 = vand.u32 2147483647, %v2616
    %vm2672 = vcmp.eq.f32.partialorder %v2671, 8.507059e+37
    %v2673 = vand.u32 %v2616, 2147483648
    %v2674 = vor.u32 1.1754944e-38, %v2673
    %v2675 = vsel %vm2672, %v2674, %v2670
    %v2676 = vmul.f32 1.0, %v2675
    %v2677 = vmul.f32 %v2551, %v2269
    %v2678 = vmul.f32 %v2566, %v2270
    %v2679 = vmul.f32 %v2581, %v2271
    %v2680 = vmul.f32 %v2596, %v2272
    %v2681 = vmul.f32 %v2475, %v2597
    %v2682 = vmul.f32 %v2490, %v2598
    %v2683 = vmul.f32 %v2505, %v2599
    %v2684 = vmul.f32 %v2520, %v2600
    %v2685 = vadd.f32 %v2677, %v2681
    %v2686 = vadd.f32 %v2678, %v2682
    %v2687 = vadd.f32 %v2679, %v2683
    %v2688 = vadd.f32 %v2680, %v2684
    %v2689 = vtanh.pop %v2685
    %v2690 = vtanh.pop %v2686
    %v2691 = vtanh.pop %v2687
    %v2692 = vtanh.pop %v2688
    %v2693 = vmul.f32 %v2631, %v2689
    %v2694 = vmul.f32 %v2646, %v2690
    %v2695 = vmul.f32 %v2661, %v2691
    %v2696 = vmul.f32 %v2676, %v2692
    %s2697 = scalar_lea.vmem [#allocation2], 160
    %2698 = vst.msk [vmem:[%s2697] sm:$0xff] %vm617, %v2693
    %2699 = vst.msk [vmem:[%s2697 + $0x8] sm:$0xff] %vm617, %v2694
    %2700 = vst.msk [vmem:[%s2697 + $0x10] sm:$0xff] %vm617, %v2695
    %2701 = vst.msk [vmem:[%s2697 + $0x18] sm:$0xff] %vm617, %v2696
    %s2702 = scalar_lea.vmem %s0, 6
    %v2703 = vld [vmem:[%s2702] sm:$0x1]
    %v2704 = vperm.slane %v2703, 0
    %vm2705 = vcmp.eq.s32.totalorder %v80, %v2704
    %vm2706 = vcmp.eq.s32.totalorder %v81, %v2704
    %vm2707 = vcmp.eq.s32.totalorder %v82, %v2704
    %vm2708 = vcmp.eq.s32.totalorder %v83, %v2704
    %vm2709 = vcmp.eq.s32.totalorder %v84, %v2704
    %vm2710 = vcmp.eq.s32.totalorder %v85, %v2704
    %vm2711 = vcmp.eq.s32.totalorder %v86, %v2704
    %vm2712 = vcmp.eq.s32.totalorder %v87, %v2704
    %vm2713 = vcmp.eq.s32.totalorder %v88, %v2704
    %vm2714 = vcmp.eq.s32.totalorder %v89, %v2704
    %vm2715 = vcmp.eq.s32.totalorder %v90, %v2704
    %vm2716 = vcmp.eq.s32.totalorder %v91, %v2704
    %vm2717 = vcmp.eq.s32.totalorder %v92, %v2704
    %vm2718 = vcmp.eq.s32.totalorder %v93, %v2704
    %vm2719 = vcmp.eq.s32.totalorder %v94, %v2704
    %vm2720 = vcmp.eq.s32.totalorder %v95, %v2704
    %v2721 = vsel %vm2705, 1, 0
    %v2722 = vsel %vm2706, 1, 0
    %v2723 = vsel %vm2707, 1, 0
    %v2724 = vsel %vm2708, 1, 0
    %v2725 = vsel %vm2709, 1, 0
    %v2726 = vsel %vm2710, 1, 0
    %v2727 = vsel %vm2711, 1, 0
    %v2728 = vsel %vm2712, 1, 0
    %v2729 = vsel %vm2713, 1, 0
    %v2730 = vsel %vm2714, 1, 0
    %v2731 = vsel %vm2715, 1, 0
    %v2732 = vsel %vm2716, 1, 0
    %v2733 = vsel %vm2717, 1, 0
    %v2734 = vsel %vm2718, 1, 0
    %v2735 = vsel %vm2719, 1, 0
    %v2736 = vsel %vm2720, 1, 0
    %v2737 = vcvt.s32.f32 %v2721
    %v2738 = vcvt.s32.f32 %v2722
    %v2739 = vcvt.s32.f32 %v2723
    %v2740 = vcvt.s32.f32 %v2724
    %v2741 = vcvt.s32.f32 %v2725
    %v2742 = vcvt.s32.f32 %v2726
    %v2743 = vcvt.s32.f32 %v2727
    %v2744 = vcvt.s32.f32 %v2728
    %v2745 = vcvt.s32.f32 %v2729
    %v2746 = vcvt.s32.f32 %v2730
    %v2747 = vcvt.s32.f32 %v2731
    %v2748 = vcvt.s32.f32 %v2732
    %v2749 = vcvt.s32.f32 %v2733
    %v2750 = vcvt.s32.f32 %v2734
    %v2751 = vcvt.s32.f32 %v2735
    %v2752 = vcvt.s32.f32 %v2736
    %v2753 = vpack.c.bf16 %v2738, %v2737
    %v2754 = vpack.c.bf16 %v2740, %v2739
    %v2755 = vpack.c.bf16 %v2742, %v2741
    %v2756 = vpack.c.bf16 %v2744, %v2743
    %v2757 = vpack.c.bf16 %v2746, %v2745
    %v2758 = vpack.c.bf16 %v2748, %v2747
    %v2759 = vpack.c.bf16 %v2750, %v2749
    %v2760 = vpack.c.bf16 %v2752, %v2751
    %v2761 = vpack.c.bf16 %v2694, %v2693
    %v2762 = vpack.c.bf16 %v2696, %v2695
    %2763 = vmatpush.bf16.msra.mxu0 0
    %2764 = vmatpush.bf16.msra.mxu0 0
    %2765 = vmatpush.bf16.msra.mxu0 0
    %2766 = vmatpush.bf16.msra.mxu0 0
    %2767 = vmatpush.bf16.msra.mxu0 0
    %2768 = vmatpush.bf16.msra.mxu0 0
    %2769 = vmatpush.bf16.msra.mxu0 %v2762
    %2770 = vmatpush.bf16.msra.mxu0 %v2761
    %2771 = vmatmul.bf16.gmra.mxu0 %v196
    %v2772 = vpop.f32.mrf.mxu0
    %v2773 = vadd.f32 0.0, %v2772
    %v2774 = vpop.f32.mrf.mxu0
    %v2775 = vadd.f32 0.0, %v2774
    %2776 = vmatmul.bf16.gmra.mxu0 %v199
    %v2777 = vpop.f32.mrf.mxu0
    %v2778 = vadd.f32 0.0, %v2777
    %v2779 = vpop.f32.mrf.mxu0
    %v2780 = vadd.f32 0.0, %v2779
    %2781 = vmatmul.bf16.gmra.mxu0 %v202
    %v2782 = vpop.f32.mrf.mxu0
    %v2783 = vadd.f32 0.0, %v2782
    %v2784 = vpop.f32.mrf.mxu0
    %v2785 = vadd.f32 0.0, %v2784
    %2786 = vmatmul.bf16.gmra.mxu0 %v205
    %v2787 = vpop.f32.mrf.mxu0
    %v2788 = vadd.f32 0.0, %v2787
    %v2789 = vpop.f32.mrf.mxu0
    %v2790 = vadd.f32 0.0, %v2789
    %2791 = vmatmul.bf16.gmra.mxu0 %v208
    %v2792 = vpop.f32.mrf.mxu0
    %v2793 = vadd.f32 0.0, %v2792
    %v2794 = vpop.f32.mrf.mxu0
    %v2795 = vadd.f32 0.0, %v2794
    %2796 = vmatmul.bf16.gmra.mxu0 %v211
    %v2797 = vpop.f32.mrf.mxu0
    %v2798 = vadd.f32 0.0, %v2797
    %v2799 = vpop.f32.mrf.mxu0
    %v2800 = vadd.f32 0.0, %v2799
    %2801 = vmatmul.bf16.gmra.mxu0 %v214
    %v2802 = vpop.f32.mrf.mxu0
    %v2803 = vadd.f32 0.0, %v2802
    %v2804 = vpop.f32.mrf.mxu0
    %v2805 = vadd.f32 0.0, %v2804
    %2806 = vmatmul.bf16.gmra.mxu0 %v217
    %v2807 = vpop.f32.mrf.mxu0
    %v2808 = vadd.f32 0.0, %v2807
    %v2809 = vpop.f32.mrf.mxu0
    %v2810 = vadd.f32 0.0, %v2809
    %2811 = vdwg.mxu0
    %2812 = vmatpush.bf16.msra.mxu0 %v2760
    %2813 = vmatpush.bf16.msra.mxu0 %v2759
    %2814 = vmatpush.bf16.msra.mxu0 %v2758
    %2815 = vmatpush.bf16.msra.mxu0 %v2757
    %2816 = vmatpush.bf16.msra.mxu0 %v2756
    %2817 = vmatpush.bf16.msra.mxu0 %v2755
    %2818 = vmatpush.bf16.msra.mxu0 %v2754
    %2819 = vmatpush.bf16.msra.mxu0 %v2753
    %2820 = vmatmul.bf16.gmra.mxu0 %v300
    %v2821 = vpop.f32.mrf.mxu0
    %v2822 = vadd.f32 %v2773, %v2821
    %v2823 = vpop.f32.mrf.mxu0
    %v2824 = vadd.f32 %v2775, %v2823
    %2825 = vmatmul.bf16.gmra.mxu0 %v301
    %v2826 = vpop.f32.mrf.mxu0
    %v2827 = vadd.f32 %v2778, %v2826
    %v2828 = vpop.f32.mrf.mxu0
    %v2829 = vadd.f32 %v2780, %v2828
    %2830 = vmatmul.bf16.gmra.mxu0 %v302
    %v2831 = vpop.f32.mrf.mxu0
    %v2832 = vadd.f32 %v2783, %v2831
    %v2833 = vpop.f32.mrf.mxu0
    %v2834 = vadd.f32 %v2785, %v2833
    %2835 = vmatmul.bf16.gmra.mxu0 %v303
    %v2836 = vpop.f32.mrf.mxu0
    %v2837 = vadd.f32 %v2788, %v2836
    %v2838 = vpop.f32.mrf.mxu0
    %v2839 = vadd.f32 %v2790, %v2838
    %2840 = vmatmul.bf16.gmra.mxu0 %v304
    %v2841 = vpop.f32.mrf.mxu0
    %v2842 = vadd.f32 %v2793, %v2841
    %v2843 = vpop.f32.mrf.mxu0
    %v2844 = vadd.f32 %v2795, %v2843
    %2845 = vmatmul.bf16.gmra.mxu0 %v305
    %v2846 = vpop.f32.mrf.mxu0
    %v2847 = vadd.f32 %v2798, %v2846
    %v2848 = vpop.f32.mrf.mxu0
    %v2849 = vadd.f32 %v2800, %v2848
    %2850 = vmatmul.bf16.gmra.mxu0 %v306
    %v2851 = vpop.f32.mrf.mxu0
    %v2852 = vadd.f32 %v2803, %v2851
    %v2853 = vpop.f32.mrf.mxu0
    %v2854 = vadd.f32 %v2805, %v2853
    %2855 = vmatmul.bf16.gmra.mxu0 %v307
    %v2856 = vpop.f32.mrf.mxu0
    %v2857 = vadd.f32 %v2808, %v2856
    %v2858 = vpop.f32.mrf.mxu0
    %v2859 = vadd.f32 %v2810, %v2858
    %2860 = vdwg.mxu0
    %v2861 = vxor.u32 %v2822, 2147483648
    %v2862 = vxor.u32 %v2824, 2147483648
    %v2863 = vxor.u32 %v2827, 2147483648
    %v2864 = vxor.u32 %v2829, 2147483648
    %v2865 = vmul.f32 %v2861, 1.442695
    %v2866 = vpow.pop %v2865
    %v2867 = vmul.f32 %v2862, 1.442695
    %v2868 = vpow.pop %v2867
    %v2869 = vmul.f32 %v2863, 1.442695
    %v2870 = vpow.pop %v2869
    %v2871 = vmul.f32 %v2864, 1.442695
    %v2872 = vpow.pop %v2871
    %v2873 = vadd.f32 %v2866, 1.0
    %v2874 = vadd.f32 %v2868, 1.0
    %v2875 = vadd.f32 %v2870, 1.0
    %v2876 = vadd.f32 %v2872, 1.0
    %v2877 = vrcp.pop %v2873
    %v2878 = vmul.f32 %v2873, %v2877
    %v2879 = vsub.f32 1.0, %v2878
    %v2880 = vmul.f32 %v2877, %v2879
    %v2881 = vadd.f32 %v2877, %v2880
    %vm2882 = vweird.f32 %v2873
    %vm2883 = vweird.f32 %v2877
    %vm2884 = vmor %vm2882, %vm2883
    %v2885 = vsel %vm2884, %v2877, %v2881
    %v2886 = vand.u32 2147483647, %v2873
    %vm2887 = vcmp.eq.f32.partialorder %v2886, 8.507059e+37
    %v2888 = vand.u32 %v2873, 2147483648
    %v2889 = vor.u32 1.1754944e-38, %v2888
    %v2890 = vsel %vm2887, %v2889, %v2885
    %v2891 = vmul.f32 1.0, %v2890
    %v2892 = vrcp.pop %v2874
    %v2893 = vmul.f32 %v2874, %v2892
    %v2894 = vsub.f32 1.0, %v2893
    %v2895 = vmul.f32 %v2892, %v2894
    %v2896 = vadd.f32 %v2892, %v2895
    %vm2897 = vweird.f32 %v2874
    %vm2898 = vweird.f32 %v2892
    %vm2899 = vmor %vm2897, %vm2898
    %v2900 = vsel %vm2899, %v2892, %v2896
    %v2901 = vand.u32 2147483647, %v2874
    %vm2902 = vcmp.eq.f32.partialorder %v2901, 8.507059e+37
    %v2903 = vand.u32 %v2874, 2147483648
    %v2904 = vor.u32 1.1754944e-38, %v2903
    %v2905 = vsel %vm2902, %v2904, %v2900
    %v2906 = vmul.f32 1.0, %v2905
    %v2907 = vrcp.pop %v2875
    %v2908 = vmul.f32 %v2875, %v2907
    %v2909 = vsub.f32 1.0, %v2908
    %v2910 = vmul.f32 %v2907, %v2909
    %v2911 = vadd.f32 %v2907, %v2910
    %vm2912 = vweird.f32 %v2875
    %vm2913 = vweird.f32 %v2907
    %vm2914 = vmor %vm2912, %vm2913
    %v2915 = vsel %vm2914, %v2907, %v2911
    %v2916 = vand.u32 2147483647, %v2875
    %vm2917 = vcmp.eq.f32.partialorder %v2916, 8.507059e+37
    %v2918 = vand.u32 %v2875, 2147483648
    %v2919 = vor.u32 1.1754944e-38, %v2918
    %v2920 = vsel %vm2917, %v2919, %v2915
    %v2921 = vmul.f32 1.0, %v2920
    %v2922 = vrcp.pop %v2876
    %v2923 = vmul.f32 %v2876, %v2922
    %v2924 = vsub.f32 1.0, %v2923
    %v2925 = vmul.f32 %v2922, %v2924
    %v2926 = vadd.f32 %v2922, %v2925
    %vm2927 = vweird.f32 %v2876
    %vm2928 = vweird.f32 %v2922
    %vm2929 = vmor %vm2927, %vm2928
    %v2930 = vsel %vm2929, %v2922, %v2926
    %v2931 = vand.u32 2147483647, %v2876
    %vm2932 = vcmp.eq.f32.partialorder %v2931, 8.507059e+37
    %v2933 = vand.u32 %v2876, 2147483648
    %v2934 = vor.u32 1.1754944e-38, %v2933
    %v2935 = vsel %vm2932, %v2934, %v2930
    %v2936 = vmul.f32 1.0, %v2935
    %v2937 = vxor.u32 %v2832, 2147483648
    %v2938 = vxor.u32 %v2834, 2147483648
    %v2939 = vxor.u32 %v2837, 2147483648
    %v2940 = vxor.u32 %v2839, 2147483648
    %v2941 = vmul.f32 %v2937, 1.442695
    %v2942 = vpow.pop %v2941
    %v2943 = vmul.f32 %v2938, 1.442695
    %v2944 = vpow.pop %v2943
    %v2945 = vmul.f32 %v2939, 1.442695
    %v2946 = vpow.pop %v2945
    %v2947 = vmul.f32 %v2940, 1.442695
    %v2948 = vpow.pop %v2947
    %v2949 = vadd.f32 %v2942, 1.0
    %v2950 = vadd.f32 %v2944, 1.0
    %v2951 = vadd.f32 %v2946, 1.0
    %v2952 = vadd.f32 %v2948, 1.0
    %v2953 = vrcp.pop %v2949
    %v2954 = vmul.f32 %v2949, %v2953
    %v2955 = vsub.f32 1.0, %v2954
    %v2956 = vmul.f32 %v2953, %v2955
    %v2957 = vadd.f32 %v2953, %v2956
    %vm2958 = vweird.f32 %v2949
    %vm2959 = vweird.f32 %v2953
    %vm2960 = vmor %vm2958, %vm2959
    %v2961 = vsel %vm2960, %v2953, %v2957
    %v2962 = vand.u32 2147483647, %v2949
    %vm2963 = vcmp.eq.f32.partialorder %v2962, 8.507059e+37
    %v2964 = vand.u32 %v2949, 2147483648
    %v2965 = vor.u32 1.1754944e-38, %v2964
    %v2966 = vsel %vm2963, %v2965, %v2961
    %v2967 = vmul.f32 1.0, %v2966
    %v2968 = vrcp.pop %v2950
    %v2969 = vmul.f32 %v2950, %v2968
    %v2970 = vsub.f32 1.0, %v2969
    %v2971 = vmul.f32 %v2968, %v2970
    %v2972 = vadd.f32 %v2968, %v2971
    %vm2973 = vweird.f32 %v2950
    %vm2974 = vweird.f32 %v2968
    %vm2975 = vmor %vm2973, %vm2974
    %v2976 = vsel %vm2975, %v2968, %v2972
    %v2977 = vand.u32 2147483647, %v2950
    %vm2978 = vcmp.eq.f32.partialorder %v2977, 8.507059e+37
    %v2979 = vand.u32 %v2950, 2147483648
    %v2980 = vor.u32 1.1754944e-38, %v2979
    %v2981 = vsel %vm2978, %v2980, %v2976
    %v2982 = vmul.f32 1.0, %v2981
    %v2983 = vrcp.pop %v2951
    %v2984 = vmul.f32 %v2951, %v2983
    %v2985 = vsub.f32 1.0, %v2984
    %v2986 = vmul.f32 %v2983, %v2985
    %v2987 = vadd.f32 %v2983, %v2986
    %vm2988 = vweird.f32 %v2951
    %vm2989 = vweird.f32 %v2983
    %vm2990 = vmor %vm2988, %vm2989
    %v2991 = vsel %vm2990, %v2983, %v2987
    %v2992 = vand.u32 2147483647, %v2951
    %vm2993 = vcmp.eq.f32.partialorder %v2992, 8.507059e+37
    %v2994 = vand.u32 %v2951, 2147483648
    %v2995 = vor.u32 1.1754944e-38, %v2994
    %v2996 = vsel %vm2993, %v2995, %v2991
    %v2997 = vmul.f32 1.0, %v2996
    %v2998 = vrcp.pop %v2952
    %v2999 = vmul.f32 %v2952, %v2998
    %v3000 = vsub.f32 1.0, %v2999
    %v3001 = vmul.f32 %v2998, %v3000
    %v3002 = vadd.f32 %v2998, %v3001
    %vm3003 = vweird.f32 %v2952
    %vm3004 = vweird.f32 %v2998
    %vm3005 = vmor %vm3003, %vm3004
    %v3006 = vsel %vm3005, %v2998, %v3002
    %v3007 = vand.u32 2147483647, %v2952
    %vm3008 = vcmp.eq.f32.partialorder %v3007, 8.507059e+37
    %v3009 = vand.u32 %v2952, 2147483648
    %v3010 = vor.u32 1.1754944e-38, %v3009
    %v3011 = vsel %vm3008, %v3010, %v3006
    %v3012 = vmul.f32 1.0, %v3011
    %v3013 = vtanh.pop %v2842
    %v3014 = vtanh.pop %v2844
    %v3015 = vtanh.pop %v2847
    %v3016 = vtanh.pop %v2849
    %v3017 = vxor.u32 %v2852, 2147483648
    %v3018 = vxor.u32 %v2854, 2147483648
    %v3019 = vxor.u32 %v2857, 2147483648
    %v3020 = vxor.u32 %v2859, 2147483648
    %v3021 = vmul.f32 %v3017, 1.442695
    %v3022 = vpow.pop %v3021
    %v3023 = vmul.f32 %v3018, 1.442695
    %v3024 = vpow.pop %v3023
    %v3025 = vmul.f32 %v3019, 1.442695
    %v3026 = vpow.pop %v3025
    %v3027 = vmul.f32 %v3020, 1.442695
    %v3028 = vpow.pop %v3027
    %v3029 = vadd.f32 %v3022, 1.0
    %v3030 = vadd.f32 %v3024, 1.0
    %v3031 = vadd.f32 %v3026, 1.0
    %v3032 = vadd.f32 %v3028, 1.0
    %v3033 = vrcp.pop %v3029
    %v3034 = vmul.f32 %v3029, %v3033
    %v3035 = vsub.f32 1.0, %v3034
    %v3036 = vmul.f32 %v3033, %v3035
    %v3037 = vadd.f32 %v3033, %v3036
    %vm3038 = vweird.f32 %v3029
    %vm3039 = vweird.f32 %v3033
    %vm3040 = vmor %vm3038, %vm3039
    %v3041 = vsel %vm3040, %v3033, %v3037
    %v3042 = vand.u32 2147483647, %v3029
    %vm3043 = vcmp.eq.f32.partialorder %v3042, 8.507059e+37
    %v3044 = vand.u32 %v3029, 2147483648
    %v3045 = vor.u32 1.1754944e-38, %v3044
    %v3046 = vsel %vm3043, %v3045, %v3041
    %v3047 = vmul.f32 1.0, %v3046
    %v3048 = vrcp.pop %v3030
    %v3049 = vmul.f32 %v3030, %v3048
    %v3050 = vsub.f32 1.0, %v3049
    %v3051 = vmul.f32 %v3048, %v3050
    %v3052 = vadd.f32 %v3048, %v3051
    %vm3053 = vweird.f32 %v3030
    %vm3054 = vweird.f32 %v3048
    %vm3055 = vmor %vm3053, %vm3054
    %v3056 = vsel %vm3055, %v3048, %v3052
    %v3057 = vand.u32 2147483647, %v3030
    %vm3058 = vcmp.eq.f32.partialorder %v3057, 8.507059e+37
    %v3059 = vand.u32 %v3030, 2147483648
    %v3060 = vor.u32 1.1754944e-38, %v3059
    %v3061 = vsel %vm3058, %v3060, %v3056
    %v3062 = vmul.f32 1.0, %v3061
    %v3063 = vrcp.pop %v3031
    %v3064 = vmul.f32 %v3031, %v3063
    %v3065 = vsub.f32 1.0, %v3064
    %v3066 = vmul.f32 %v3063, %v3065
    %v3067 = vadd.f32 %v3063, %v3066
    %vm3068 = vweird.f32 %v3031
    %vm3069 = vweird.f32 %v3063
    %vm3070 = vmor %vm3068, %vm3069
    %v3071 = vsel %vm3070, %v3063, %v3067
    %v3072 = vand.u32 2147483647, %v3031
    %vm3073 = vcmp.eq.f32.partialorder %v3072, 8.507059e+37
    %v3074 = vand.u32 %v3031, 2147483648
    %v3075 = vor.u32 1.1754944e-38, %v3074
    %v3076 = vsel %vm3073, %v3075, %v3071
    %v3077 = vmul.f32 1.0, %v3076
    %v3078 = vrcp.pop %v3032
    %v3079 = vmul.f32 %v3032, %v3078
    %v3080 = vsub.f32 1.0, %v3079
    %v3081 = vmul.f32 %v3078, %v3080
    %v3082 = vadd.f32 %v3078, %v3081
    %vm3083 = vweird.f32 %v3032
    %vm3084 = vweird.f32 %v3078
    %vm3085 = vmor %vm3083, %vm3084
    %v3086 = vsel %vm3085, %v3078, %v3082
    %v3087 = vand.u32 2147483647, %v3032
    %vm3088 = vcmp.eq.f32.partialorder %v3087, 8.507059e+37
    %v3089 = vand.u32 %v3032, 2147483648
    %v3090 = vor.u32 1.1754944e-38, %v3089
    %v3091 = vsel %vm3088, %v3090, %v3086
    %v3092 = vmul.f32 1.0, %v3091
    %v3093 = vmul.f32 %v2967, %v2685
    %v3094 = vmul.f32 %v2982, %v2686
    %v3095 = vmul.f32 %v2997, %v2687
    %v3096 = vmul.f32 %v3012, %v2688
    %v3097 = vmul.f32 %v2891, %v3013
    %v3098 = vmul.f32 %v2906, %v3014
    %v3099 = vmul.f32 %v2921, %v3015
    %v3100 = vmul.f32 %v2936, %v3016
    %v3101 = vadd.f32 %v3093, %v3097
    %v3102 = vadd.f32 %v3094, %v3098
    %v3103 = vadd.f32 %v3095, %v3099
    %v3104 = vadd.f32 %v3096, %v3100
    %v3105 = vtanh.pop %v3101
    %v3106 = vtanh.pop %v3102
    %v3107 = vtanh.pop %v3103
    %v3108 = vtanh.pop %v3104
    %v3109 = vmul.f32 %v3047, %v3105
    %v3110 = vmul.f32 %v3062, %v3106
    %v3111 = vmul.f32 %v3077, %v3107
    %v3112 = vmul.f32 %v3092, %v3108
    %s3113 = scalar_lea.vmem [#allocation2], 192
    %3114 = vst.msk [vmem:[%s3113] sm:$0xff] %vm617, %v3109
    %3115 = vst.msk [vmem:[%s3113 + $0x8] sm:$0xff] %vm617, %v3110
    %3116 = vst.msk [vmem:[%s3113 + $0x10] sm:$0xff] %vm617, %v3111
    %3117 = vst.msk [vmem:[%s3113 + $0x18] sm:$0xff] %vm617, %v3112
    %s3118 = scalar_lea.vmem %s0, 7
    %v3119 = vld [vmem:[%s3118] sm:$0x1]
    %v3120 = vperm.slane %v3119, 0
    %vm3121 = vcmp.eq.s32.totalorder %v80, %v3120
    %vm3122 = vcmp.eq.s32.totalorder %v81, %v3120
    %vm3123 = vcmp.eq.s32.totalorder %v82, %v3120
    %vm3124 = vcmp.eq.s32.totalorder %v83, %v3120
    %vm3125 = vcmp.eq.s32.totalorder %v84, %v3120
    %vm3126 = vcmp.eq.s32.totalorder %v85, %v3120
    %vm3127 = vcmp.eq.s32.totalorder %v86, %v3120
    %vm3128 = vcmp.eq.s32.totalorder %v87, %v3120
    %vm3129 = vcmp.eq.s32.totalorder %v88, %v3120
    %vm3130 = vcmp.eq.s32.totalorder %v89, %v3120
    %vm3131 = vcmp.eq.s32.totalorder %v90, %v3120
    %vm3132 = vcmp.eq.s32.totalorder %v91, %v3120
    %vm3133 = vcmp.eq.s32.totalorder %v92, %v3120
    %vm3134 = vcmp.eq.s32.totalorder %v93, %v3120
    %vm3135 = vcmp.eq.s32.totalorder %v94, %v3120
    %vm3136 = vcmp.eq.s32.totalorder %v95, %v3120
    %v3137 = vsel %vm3121, 1, 0
    %v3138 = vsel %vm3122, 1, 0
    %v3139 = vsel %vm3123, 1, 0
    %v3140 = vsel %vm3124, 1, 0
    %v3141 = vsel %vm3125, 1, 0
    %v3142 = vsel %vm3126, 1, 0
    %v3143 = vsel %vm3127, 1, 0
    %v3144 = vsel %vm3128, 1, 0
    %v3145 = vsel %vm3129, 1, 0
    %v3146 = vsel %vm3130, 1, 0
    %v3147 = vsel %vm3131, 1, 0
    %v3148 = vsel %vm3132, 1, 0
    %v3149 = vsel %vm3133, 1, 0
    %v3150 = vsel %vm3134, 1, 0
    %v3151 = vsel %vm3135, 1, 0
    %v3152 = vsel %vm3136, 1, 0
    %v3153 = vcvt.s32.f32 %v3137
    %v3154 = vcvt.s32.f32 %v3138
    %v3155 = vcvt.s32.f32 %v3139
    %v3156 = vcvt.s32.f32 %v3140
    %v3157 = vcvt.s32.f32 %v3141
    %v3158 = vcvt.s32.f32 %v3142
    %v3159 = vcvt.s32.f32 %v3143
    %v3160 = vcvt.s32.f32 %v3144
    %v3161 = vcvt.s32.f32 %v3145
    %v3162 = vcvt.s32.f32 %v3146
    %v3163 = vcvt.s32.f32 %v3147
    %v3164 = vcvt.s32.f32 %v3148
    %v3165 = vcvt.s32.f32 %v3149
    %v3166 = vcvt.s32.f32 %v3150
    %v3167 = vcvt.s32.f32 %v3151
    %v3168 = vcvt.s32.f32 %v3152
    %v3169 = vpack.c.bf16 %v3154, %v3153
    %v3170 = vpack.c.bf16 %v3156, %v3155
    %v3171 = vpack.c.bf16 %v3158, %v3157
    %v3172 = vpack.c.bf16 %v3160, %v3159
    %v3173 = vpack.c.bf16 %v3162, %v3161
    %v3174 = vpack.c.bf16 %v3164, %v3163
    %v3175 = vpack.c.bf16 %v3166, %v3165
    %v3176 = vpack.c.bf16 %v3168, %v3167
    %v3177 = vpack.c.bf16 %v3110, %v3109
    %v3178 = vpack.c.bf16 %v3112, %v3111
    %3179 = vmatpush.bf16.msra.mxu0 0
    %3180 = vmatpush.bf16.msra.mxu0 0
    %3181 = vmatpush.bf16.msra.mxu0 0
    %3182 = vmatpush.bf16.msra.mxu0 0
    %3183 = vmatpush.bf16.msra.mxu0 0
    %3184 = vmatpush.bf16.msra.mxu0 0
    %3185 = vmatpush.bf16.msra.mxu0 %v3178
    %3186 = vmatpush.bf16.msra.mxu0 %v3177
    %3187 = vmatmul.bf16.gmra.mxu0 %v196
    %v3188 = vpop.f32.mrf.mxu0
    %v3189 = vadd.f32 0.0, %v3188
    %v3190 = vpop.f32.mrf.mxu0
    %v3191 = vadd.f32 0.0, %v3190
    %3192 = vmatmul.bf16.gmra.mxu0 %v199
    %v3193 = vpop.f32.mrf.mxu0
    %v3194 = vadd.f32 0.0, %v3193
    %v3195 = vpop.f32.mrf.mxu0
    %v3196 = vadd.f32 0.0, %v3195
    %3197 = vmatmul.bf16.gmra.mxu0 %v202
    %v3198 = vpop.f32.mrf.mxu0
    %v3199 = vadd.f32 0.0, %v3198
    %v3200 = vpop.f32.mrf.mxu0
    %v3201 = vadd.f32 0.0, %v3200
    %3202 = vmatmul.bf16.gmra.mxu0 %v205
    %v3203 = vpop.f32.mrf.mxu0
    %v3204 = vadd.f32 0.0, %v3203
    %v3205 = vpop.f32.mrf.mxu0
    %v3206 = vadd.f32 0.0, %v3205
    %3207 = vmatmul.bf16.gmra.mxu0 %v208
    %v3208 = vpop.f32.mrf.mxu0
    %v3209 = vadd.f32 0.0, %v3208
    %v3210 = vpop.f32.mrf.mxu0
    %v3211 = vadd.f32 0.0, %v3210
    %3212 = vmatmul.bf16.gmra.mxu0 %v211
    %v3213 = vpop.f32.mrf.mxu0
    %v3214 = vadd.f32 0.0, %v3213
    %v3215 = vpop.f32.mrf.mxu0
    %v3216 = vadd.f32 0.0, %v3215
    %3217 = vmatmul.bf16.gmra.mxu0 %v214
    %v3218 = vpop.f32.mrf.mxu0
    %v3219 = vadd.f32 0.0, %v3218
    %v3220 = vpop.f32.mrf.mxu0
    %v3221 = vadd.f32 0.0, %v3220
    %3222 = vmatmul.bf16.gmra.mxu0 %v217
    %v3223 = vpop.f32.mrf.mxu0
    %v3224 = vadd.f32 0.0, %v3223
    %v3225 = vpop.f32.mrf.mxu0
    %v3226 = vadd.f32 0.0, %v3225
    %3227 = vdwg.mxu0
    %3228 = vmatpush.bf16.msra.mxu0 %v3176
    %3229 = vmatpush.bf16.msra.mxu0 %v3175
    %3230 = vmatpush.bf16.msra.mxu0 %v3174
    %3231 = vmatpush.bf16.msra.mxu0 %v3173
    %3232 = vmatpush.bf16.msra.mxu0 %v3172
    %3233 = vmatpush.bf16.msra.mxu0 %v3171
    %3234 = vmatpush.bf16.msra.mxu0 %v3170
    %3235 = vmatpush.bf16.msra.mxu0 %v3169
    %3236 = vmatmul.bf16.gmra.mxu0 %v300
    %v3237 = vpop.f32.mrf.mxu0
    %v3238 = vadd.f32 %v3189, %v3237
    %v3239 = vpop.f32.mrf.mxu0
    %v3240 = vadd.f32 %v3191, %v3239
    %3241 = vmatmul.bf16.gmra.mxu0 %v301
    %v3242 = vpop.f32.mrf.mxu0
    %v3243 = vadd.f32 %v3194, %v3242
    %v3244 = vpop.f32.mrf.mxu0
    %v3245 = vadd.f32 %v3196, %v3244
    %3246 = vmatmul.bf16.gmra.mxu0 %v302
    %v3247 = vpop.f32.mrf.mxu0
    %v3248 = vadd.f32 %v3199, %v3247
    %v3249 = vpop.f32.mrf.mxu0
    %v3250 = vadd.f32 %v3201, %v3249
    %3251 = vmatmul.bf16.gmra.mxu0 %v303
    %v3252 = vpop.f32.mrf.mxu0
    %v3253 = vadd.f32 %v3204, %v3252
    %v3254 = vpop.f32.mrf.mxu0
    %v3255 = vadd.f32 %v3206, %v3254
    %3256 = vmatmul.bf16.gmra.mxu0 %v304
    %v3257 = vpop.f32.mrf.mxu0
    %v3258 = vadd.f32 %v3209, %v3257
    %v3259 = vpop.f32.mrf.mxu0
    %v3260 = vadd.f32 %v3211, %v3259
    %3261 = vmatmul.bf16.gmra.mxu0 %v305
    %v3262 = vpop.f32.mrf.mxu0
    %v3263 = vadd.f32 %v3214, %v3262
    %v3264 = vpop.f32.mrf.mxu0
    %v3265 = vadd.f32 %v3216, %v3264
    %3266 = vmatmul.bf16.gmra.mxu0 %v306
    %v3267 = vpop.f32.mrf.mxu0
    %v3268 = vadd.f32 %v3219, %v3267
    %v3269 = vpop.f32.mrf.mxu0
    %v3270 = vadd.f32 %v3221, %v3269
    %3271 = vmatmul.bf16.gmra.mxu0 %v307
    %v3272 = vpop.f32.mrf.mxu0
    %v3273 = vadd.f32 %v3224, %v3272
    %v3274 = vpop.f32.mrf.mxu0
    %v3275 = vadd.f32 %v3226, %v3274
    %3276 = vdwg.mxu0
    %v3277 = vxor.u32 %v3238, 2147483648
    %v3278 = vxor.u32 %v3240, 2147483648
    %v3279 = vxor.u32 %v3243, 2147483648
    %v3280 = vxor.u32 %v3245, 2147483648
    %v3281 = vmul.f32 %v3277, 1.442695
    %v3282 = vpow.pop %v3281
    %v3283 = vmul.f32 %v3278, 1.442695
    %v3284 = vpow.pop %v3283
    %v3285 = vmul.f32 %v3279, 1.442695
    %v3286 = vpow.pop %v3285
    %v3287 = vmul.f32 %v3280, 1.442695
    %v3288 = vpow.pop %v3287
    %v3289 = vadd.f32 %v3282, 1.0
    %v3290 = vadd.f32 %v3284, 1.0
    %v3291 = vadd.f32 %v3286, 1.0
    %v3292 = vadd.f32 %v3288, 1.0
    %v3293 = vrcp.pop %v3289
    %v3294 = vmul.f32 %v3289, %v3293
    %v3295 = vsub.f32 1.0, %v3294
    %v3296 = vmul.f32 %v3293, %v3295
    %v3297 = vadd.f32 %v3293, %v3296
    %vm3298 = vweird.f32 %v3289
    %vm3299 = vweird.f32 %v3293
    %vm3300 = vmor %vm3298, %vm3299
    %v3301 = vsel %vm3300, %v3293, %v3297
    %v3302 = vand.u32 2147483647, %v3289
    %vm3303 = vcmp.eq.f32.partialorder %v3302, 8.507059e+37
    %v3304 = vand.u32 %v3289, 2147483648
    %v3305 = vor.u32 1.1754944e-38, %v3304
    %v3306 = vsel %vm3303, %v3305, %v3301
    %v3307 = vmul.f32 1.0, %v3306
    %v3308 = vrcp.pop %v3290
    %v3309 = vmul.f32 %v3290, %v3308
    %v3310 = vsub.f32 1.0, %v3309
    %v3311 = vmul.f32 %v3308, %v3310
    %v3312 = vadd.f32 %v3308, %v3311
    %vm3313 = vweird.f32 %v3290
    %vm3314 = vweird.f32 %v3308
    %vm3315 = vmor %vm3313, %vm3314
    %v3316 = vsel %vm3315, %v3308, %v3312
    %v3317 = vand.u32 2147483647, %v3290
    %vm3318 = vcmp.eq.f32.partialorder %v3317, 8.507059e+37
    %v3319 = vand.u32 %v3290, 2147483648
    %v3320 = vor.u32 1.1754944e-38, %v3319
    %v3321 = vsel %vm3318, %v3320, %v3316
    %v3322 = vmul.f32 1.0, %v3321
    %v3323 = vrcp.pop %v3291
    %v3324 = vmul.f32 %v3291, %v3323
    %v3325 = vsub.f32 1.0, %v3324
    %v3326 = vmul.f32 %v3323, %v3325
    %v3327 = vadd.f32 %v3323, %v3326
    %vm3328 = vweird.f32 %v3291
    %vm3329 = vweird.f32 %v3323
    %vm3330 = vmor %vm3328, %vm3329
    %v3331 = vsel %vm3330, %v3323, %v3327
    %v3332 = vand.u32 2147483647, %v3291
    %vm3333 = vcmp.eq.f32.partialorder %v3332, 8.507059e+37
    %v3334 = vand.u32 %v3291, 2147483648
    %v3335 = vor.u32 1.1754944e-38, %v3334
    %v3336 = vsel %vm3333, %v3335, %v3331
    %v3337 = vmul.f32 1.0, %v3336
    %v3338 = vrcp.pop %v3292
    %v3339 = vmul.f32 %v3292, %v3338
    %v3340 = vsub.f32 1.0, %v3339
    %v3341 = vmul.f32 %v3338, %v3340
    %v3342 = vadd.f32 %v3338, %v3341
    %vm3343 = vweird.f32 %v3292
    %vm3344 = vweird.f32 %v3338
    %vm3345 = vmor %vm3343, %vm3344
    %v3346 = vsel %vm3345, %v3338, %v3342
    %v3347 = vand.u32 2147483647, %v3292
    %vm3348 = vcmp.eq.f32.partialorder %v3347, 8.507059e+37
    %v3349 = vand.u32 %v3292, 2147483648
    %v3350 = vor.u32 1.1754944e-38, %v3349
    %v3351 = vsel %vm3348, %v3350, %v3346
    %v3352 = vmul.f32 1.0, %v3351
    %v3353 = vxor.u32 %v3248, 2147483648
    %v3354 = vxor.u32 %v3250, 2147483648
    %v3355 = vxor.u32 %v3253, 2147483648
    %v3356 = vxor.u32 %v3255, 2147483648
    %v3357 = vmul.f32 %v3353, 1.442695
    %v3358 = vpow.pop %v3357
    %v3359 = vmul.f32 %v3354, 1.442695
    %v3360 = vpow.pop %v3359
    %v3361 = vmul.f32 %v3355, 1.442695
    %v3362 = vpow.pop %v3361
    %v3363 = vmul.f32 %v3356, 1.442695
    %v3364 = vpow.pop %v3363
    %v3365 = vadd.f32 %v3358, 1.0
    %v3366 = vadd.f32 %v3360, 1.0
    %v3367 = vadd.f32 %v3362, 1.0
    %v3368 = vadd.f32 %v3364, 1.0
    %v3369 = vrcp.pop %v3365
    %v3370 = vmul.f32 %v3365, %v3369
    %v3371 = vsub.f32 1.0, %v3370
    %v3372 = vmul.f32 %v3369, %v3371
    %v3373 = vadd.f32 %v3369, %v3372
    %vm3374 = vweird.f32 %v3365
    %vm3375 = vweird.f32 %v3369
    %vm3376 = vmor %vm3374, %vm3375
    %v3377 = vsel %vm3376, %v3369, %v3373
    %v3378 = vand.u32 2147483647, %v3365
    %vm3379 = vcmp.eq.f32.partialorder %v3378, 8.507059e+37
    %v3380 = vand.u32 %v3365, 2147483648
    %v3381 = vor.u32 1.1754944e-38, %v3380
    %v3382 = vsel %vm3379, %v3381, %v3377
    %v3383 = vmul.f32 1.0, %v3382
    %v3384 = vrcp.pop %v3366
    %v3385 = vmul.f32 %v3366, %v3384
    %v3386 = vsub.f32 1.0, %v3385
    %v3387 = vmul.f32 %v3384, %v3386
    %v3388 = vadd.f32 %v3384, %v3387
    %vm3389 = vweird.f32 %v3366
    %vm3390 = vweird.f32 %v3384
    %vm3391 = vmor %vm3389, %vm3390
    %v3392 = vsel %vm3391, %v3384, %v3388
    %v3393 = vand.u32 2147483647, %v3366
    %vm3394 = vcmp.eq.f32.partialorder %v3393, 8.507059e+37
    %v3395 = vand.u32 %v3366, 2147483648
    %v3396 = vor.u32 1.1754944e-38, %v3395
    %v3397 = vsel %vm3394, %v3396, %v3392
    %v3398 = vmul.f32 1.0, %v3397
    %v3399 = vrcp.pop %v3367
    %v3400 = vmul.f32 %v3367, %v3399
    %v3401 = vsub.f32 1.0, %v3400
    %v3402 = vmul.f32 %v3399, %v3401
    %v3403 = vadd.f32 %v3399, %v3402
    %vm3404 = vweird.f32 %v3367
    %vm3405 = vweird.f32 %v3399
    %vm3406 = vmor %vm3404, %vm3405
    %v3407 = vsel %vm3406, %v3399, %v3403
    %v3408 = vand.u32 2147483647, %v3367
    %vm3409 = vcmp.eq.f32.partialorder %v3408, 8.507059e+37
    %v3410 = vand.u32 %v3367, 2147483648
    %v3411 = vor.u32 1.1754944e-38, %v3410
    %v3412 = vsel %vm3409, %v3411, %v3407
    %v3413 = vmul.f32 1.0, %v3412
    %v3414 = vrcp.pop %v3368
    %v3415 = vmul.f32 %v3368, %v3414
    %v3416 = vsub.f32 1.0, %v3415
    %v3417 = vmul.f32 %v3414, %v3416
    %v3418 = vadd.f32 %v3414, %v3417
    %vm3419 = vweird.f32 %v3368
    %vm3420 = vweird.f32 %v3414
    %vm3421 = vmor %vm3419, %vm3420
    %v3422 = vsel %vm3421, %v3414, %v3418
    %v3423 = vand.u32 2147483647, %v3368
    %vm3424 = vcmp.eq.f32.partialorder %v3423, 8.507059e+37
    %v3425 = vand.u32 %v3368, 2147483648
    %v3426 = vor.u32 1.1754944e-38, %v3425
    %v3427 = vsel %vm3424, %v3426, %v3422
    %v3428 = vmul.f32 1.0, %v3427
    %v3429 = vtanh.pop %v3258
    %v3430 = vtanh.pop %v3260
    %v3431 = vtanh.pop %v3263
    %v3432 = vtanh.pop %v3265
    %v3433 = vxor.u32 %v3268, 2147483648
    %v3434 = vxor.u32 %v3270, 2147483648
    %v3435 = vxor.u32 %v3273, 2147483648
    %v3436 = vxor.u32 %v3275, 2147483648
    %v3437 = vmul.f32 %v3433, 1.442695
    %v3438 = vpow.pop %v3437
    %v3439 = vmul.f32 %v3434, 1.442695
    %v3440 = vpow.pop %v3439
    %v3441 = vmul.f32 %v3435, 1.442695
    %v3442 = vpow.pop %v3441
    %v3443 = vmul.f32 %v3436, 1.442695
    %v3444 = vpow.pop %v3443
    %v3445 = vadd.f32 %v3438, 1.0
    %v3446 = vadd.f32 %v3440, 1.0
    %v3447 = vadd.f32 %v3442, 1.0
    %v3448 = vadd.f32 %v3444, 1.0
    %v3449 = vrcp.pop %v3445
    %v3450 = vmul.f32 %v3445, %v3449
    %v3451 = vsub.f32 1.0, %v3450
    %v3452 = vmul.f32 %v3449, %v3451
    %v3453 = vadd.f32 %v3449, %v3452
    %vm3454 = vweird.f32 %v3445
    %vm3455 = vweird.f32 %v3449
    %vm3456 = vmor %vm3454, %vm3455
    %v3457 = vsel %vm3456, %v3449, %v3453
    %v3458 = vand.u32 2147483647, %v3445
    %vm3459 = vcmp.eq.f32.partialorder %v3458, 8.507059e+37
    %v3460 = vand.u32 %v3445, 2147483648
    %v3461 = vor.u32 1.1754944e-38, %v3460
    %v3462 = vsel %vm3459, %v3461, %v3457
    %v3463 = vmul.f32 1.0, %v3462
    %v3464 = vrcp.pop %v3446
    %v3465 = vmul.f32 %v3446, %v3464
    %v3466 = vsub.f32 1.0, %v3465
    %v3467 = vmul.f32 %v3464, %v3466
    %v3468 = vadd.f32 %v3464, %v3467
    %vm3469 = vweird.f32 %v3446
    %vm3470 = vweird.f32 %v3464
    %vm3471 = vmor %vm3469, %vm3470
    %v3472 = vsel %vm3471, %v3464, %v3468
    %v3473 = vand.u32 2147483647, %v3446
    %vm3474 = vcmp.eq.f32.partialorder %v3473, 8.507059e+37
    %v3475 = vand.u32 %v3446, 2147483648
    %v3476 = vor.u32 1.1754944e-38, %v3475
    %v3477 = vsel %vm3474, %v3476, %v3472
    %v3478 = vmul.f32 1.0, %v3477
    %v3479 = vrcp.pop %v3447
    %v3480 = vmul.f32 %v3447, %v3479
    %v3481 = vsub.f32 1.0, %v3480
    %v3482 = vmul.f32 %v3479, %v3481
    %v3483 = vadd.f32 %v3479, %v3482
    %vm3484 = vweird.f32 %v3447
    %vm3485 = vweird.f32 %v3479
    %vm3486 = vmor %vm3484, %vm3485
    %v3487 = vsel %vm3486, %v3479, %v3483
    %v3488 = vand.u32 2147483647, %v3447
    %vm3489 = vcmp.eq.f32.partialorder %v3488, 8.507059e+37
    %v3490 = vand.u32 %v3447, 2147483648
    %v3491 = vor.u32 1.1754944e-38, %v3490
    %v3492 = vsel %vm3489, %v3491, %v3487
    %v3493 = vmul.f32 1.0, %v3492
    %v3494 = vrcp.pop %v3448
    %v3495 = vmul.f32 %v3448, %v3494
    %v3496 = vsub.f32 1.0, %v3495
    %v3497 = vmul.f32 %v3494, %v3496
    %v3498 = vadd.f32 %v3494, %v3497
    %vm3499 = vweird.f32 %v3448
    %vm3500 = vweird.f32 %v3494
    %vm3501 = vmor %vm3499, %vm3500
    %v3502 = vsel %vm3501, %v3494, %v3498
    %v3503 = vand.u32 2147483647, %v3448
    %vm3504 = vcmp.eq.f32.partialorder %v3503, 8.507059e+37
    %v3505 = vand.u32 %v3448, 2147483648
    %v3506 = vor.u32 1.1754944e-38, %v3505
    %v3507 = vsel %vm3504, %v3506, %v3502
    %v3508 = vmul.f32 1.0, %v3507
    %v3509 = vmul.f32 %v3383, %v3101
    %v3510 = vmul.f32 %v3398, %v3102
    %v3511 = vmul.f32 %v3413, %v3103
    %v3512 = vmul.f32 %v3428, %v3104
    %v3513 = vmul.f32 %v3307, %v3429
    %v3514 = vmul.f32 %v3322, %v3430
    %v3515 = vmul.f32 %v3337, %v3431
    %v3516 = vmul.f32 %v3352, %v3432
    %v3517 = vadd.f32 %v3509, %v3513
    %v3518 = vadd.f32 %v3510, %v3514
    %v3519 = vadd.f32 %v3511, %v3515
    %v3520 = vadd.f32 %v3512, %v3516
    %v3521 = vtanh.pop %v3517
    %v3522 = vtanh.pop %v3518
    %v3523 = vtanh.pop %v3519
    %v3524 = vtanh.pop %v3520
    %v3525 = vmul.f32 %v3463, %v3521
    %v3526 = vmul.f32 %v3478, %v3522
    %v3527 = vmul.f32 %v3493, %v3523
    %v3528 = vmul.f32 %v3508, %v3524
    %s3529 = scalar_lea.vmem [#allocation2], 224
    %3530 = vst.msk [vmem:[%s3529] sm:$0xff] %vm617, %v3525
    %3531 = vst.msk [vmem:[%s3529 + $0x8] sm:$0xff] %vm617, %v3526
    %3532 = vst.msk [vmem:[%s3529 + $0x10] sm:$0xff] %vm617, %v3527
    %3533 = vst.msk [vmem:[%s3529 + $0x18] sm:$0xff] %vm617, %v3528
    %v3534 = vld [vmem:[#allocation2] sm:$0xff]
    %v3535 = vld [vmem:[#allocation2 + $0x8] sm:$0xff]
    %v3536 = vld [vmem:[#allocation2 + $0x10] sm:$0xff]
    %v3537 = vld [vmem:[#allocation2 + $0x18] sm:$0xff]
    %v3538 = vld [vmem:[#allocation2 + $0x20] sm:$0xff]
    %v3539 = vld [vmem:[#allocation2 + $0x28] sm:$0xff]
    %v3540 = vld [vmem:[#allocation2 + $0x30] sm:$0xff]
    %v3541 = vld [vmem:[#allocation2 + $0x38] sm:$0xff]
    %v3542 = vld [vmem:[#allocation2 + $0x40] sm:$0xff]
    %v3543 = vld [vmem:[#allocation2 + $0x48] sm:$0xff]
    %v3544 = vld [vmem:[#allocation2 + $0x50] sm:$0xff]
    %v3545 = vld [vmem:[#allocation2 + $0x58] sm:$0xff]
    %v3546 = vld [vmem:[#allocation2 + $0x60] sm:$0xff]
    %v3547 = vld [vmem:[#allocation2 + $0x68] sm:$0xff]
    %v3548 = vld [vmem:[#allocation2 + $0x70] sm:$0xff]
    %v3549 = vld [vmem:[#allocation2 + $0x78] sm:$0xff]
    %v3550 = vld [vmem:[#allocation2 + $0x80] sm:$0xff]
    %v3551 = vld [vmem:[#allocation2 + $0x88] sm:$0xff]
    %v3552 = vld [vmem:[#allocation2 + $0x90] sm:$0xff]
    %v3553 = vld [vmem:[#allocation2 + $0x98] sm:$0xff]
    %v3554 = vld [vmem:[#allocation2 + $0xa0] sm:$0xff]
    %v3555 = vld [vmem:[#allocation2 + $0xa8] sm:$0xff]
    %v3556 = vld [vmem:[#allocation2 + $0xb0] sm:$0xff]
    %v3557 = vld [vmem:[#allocation2 + $0xb8] sm:$0xff]
    %v3558 = vld [vmem:[#allocation2 + $0xc0] sm:$0xff]
    %v3559 = vld [vmem:[#allocation2 + $0xc8] sm:$0xff]
    %v3560 = vld [vmem:[#allocation2 + $0xd0] sm:$0xff]
    %v3561 = vld [vmem:[#allocation2 + $0xd8] sm:$0xff]
    %v3562 = vld [vmem:[#allocation2 + $0xe0] sm:$0xff]
    %v3563 = vld [vmem:[#allocation2 + $0xe8] sm:$0xff]
    %v3564 = vld [vmem:[#allocation2 + $0xf0] sm:$0xff]
    %v3565 = vld [vmem:[#allocation2 + $0xf8] sm:$0xff]
    %v3566 = vld [vmem:[%s3] sm:$0xf]
    %v3567 = vld [vmem:[%s3 + $0x4] sm:$0xf]
    %v3568 = vld [vmem:[%s3 + $0x8] sm:$0xf]
    %v3569 = vld [vmem:[%s3 + $0xc] sm:$0xf]
    %v3570 = vpack.c.bf16 %v3526, %v3525
    %v3571 = vpack.c.bf16 %v3528, %v3527
    %v3576 = vunpack.c.l.b16 %v3566
    %v3577 = vunpack.c.l.b16 %v3567
    %v3578 = vunpack.c.l.b16 %v3568
    %v3579 = vunpack.c.l.b16 %v3569
    %v3580 = vpack.c.b16 %v3577, %v3576
    %v3581 = vpack.c.b16 %v3579, %v3578
    %v3583 = vsel %vm194, %v3580, 0
    %v3586 = vsel %vm194, %v3581, 0
    %3588 = vmatpush.bf16.msra.mxu0 0
    %3589 = vmatpush.bf16.msra.mxu0 0
    %3590 = vmatpush.bf16.msra.mxu0 0
    %3591 = vmatpush.bf16.msra.mxu0 0
    %3592 = vmatpush.bf16.msra.mxu0 0
    %3593 = vmatpush.bf16.msra.mxu0 0
    %3594 = vmatpush.bf16.msra.mxu0 %v3571
    %3595 = vmatpush.bf16.msra.mxu0 %v3570
    %3596 = vmatmul.bf16.gmra.mxu0 %v3583
    %v3597 = vpop.f32.mrf.mxu0
    %v3598 = vadd.f32 0.0, %v3597
    %v3599 = vpop.f32.mrf.mxu0
    %v3600 = vadd.f32 0.0, %v3599
    %3601 = vmatmul.bf16.gmra.mxu0 %v3586
    %v3602 = vpop.f32.mrf.mxu0
    %v3603 = vadd.f32 0.0, %v3602
    %v3604 = vpop.f32.mrf.mxu0
    %v3605 = vadd.f32 0.0, %v3604
    %3606 = vdwg.mxu0
    %v3607 = vld [vmem:[%s4] sm:$0xff]
    %v3608 = vld [vmem:[%s4 + $0x8] sm:$0xff]
    %v3609 = vld [vmem:[%s4 + $0x10] sm:$0xff]
    %v3610 = vld [vmem:[%s4 + $0x18] sm:$0xff]
    %3612 = vset.pattern.permute.xlu0 0
    %3613 = vperm.xlu0 %3612, %v3607
    %v3614 = vpop.permute.xlu0 %3613
    %3617 = vset.pattern.permute.xlu0 0
    %3618 = vperm.xlu0 %3617, %v3608
    %v3619 = vpop.permute.xlu0 %3618
    %3622 = vset.pattern.permute.xlu0 0
    %3623 = vperm.xlu0 %3622, %v3609
    %v3624 = vpop.permute.xlu0 %3623
    %3627 = vset.pattern.permute.xlu0 0
    %3628 = vperm.xlu0 %3627, %v3610
    %v3629 = vpop.permute.xlu0 %3628
    %v3631 = vmul.f32 %v3614, %v3525
    %v3632 = vmul.f32 %v3619, %v3526
    %v3633 = vmul.f32 %v3624, %v3527
    %v3634 = vmul.f32 %v3629, %v3528
    %v3635 = vsel %vm617, %v3631, 0.0
    %v3636 = vsel %vm617, %v3632, 0.0
    %v3637 = vadd.f32 %v3635, %v3636
    %v3638 = vsel %vm617, %v3633, 0.0
    %v3639 = vadd.f32 %v3637, %v3638
    %v3640 = vsel %vm617, %v3634, 0.0
    %v3641 = vadd.f32 %v3639, %v3640
    %v3642 = vrot.slane %v3641, 4
    %v3643 = vadd.f32 %v3641, %v3642
    %v3644 = vrot.slane %v3643, 2
    %v3645 = vadd.f32 %v3643, %v3644
    %v3646 = vrot.slane %v3645, 1
    %v3647 = vadd.f32 %v3645, %v3646
    %v3648 = vmul.f32 %v3534, %v3598
    %v3649 = vmul.f32 %v3535, %v3600
    %v3650 = vmul.f32 %v3536, %v3603
    %v3651 = vmul.f32 %v3537, %v3605
    %v3652 = vmul.f32 %v3538, %v3598
    %v3653 = vmul.f32 %v3539, %v3600
    %v3654 = vmul.f32 %v3540, %v3603
    %v3655 = vmul.f32 %v3541, %v3605
    %v3656 = vmul.f32 %v3542, %v3598
    %v3657 = vmul.f32 %v3543, %v3600
    %v3658 = vmul.f32 %v3544, %v3603
    %v3659 = vmul.f32 %v3545, %v3605
    %v3660 = vmul.f32 %v3546, %v3598
    %v3661 = vmul.f32 %v3547, %v3600
    %v3662 = vmul.f32 %v3548, %v3603
    %v3663 = vmul.f32 %v3549, %v3605
    %v3664 = vmul.f32 %v3550, %v3598
    %v3665 = vmul.f32 %v3551, %v3600
    %v3666 = vmul.f32 %v3552, %v3603
    %v3667 = vmul.f32 %v3553, %v3605
    %v3668 = vmul.f32 %v3554, %v3598
    %v3669 = vmul.f32 %v3555, %v3600
    %v3670 = vmul.f32 %v3556, %v3603
    %v3671 = vmul.f32 %v3557, %v3605
    %v3672 = vmul.f32 %v3558, %v3598
    %v3673 = vmul.f32 %v3559, %v3600
    %v3674 = vmul.f32 %v3560, %v3603
    %v3675 = vmul.f32 %v3561, %v3605
    %v3676 = vmul.f32 %v3562, %v3598
    %v3677 = vmul.f32 %v3563, %v3600
    %v3678 = vmul.f32 %v3564, %v3603
    %v3679 = vmul.f32 %v3565, %v3605
    %v3680 = vsel %vm617, %v3648, 0.0
    %v3681 = vsel %vm617, %v3649, 0.0
    %v3682 = vadd.f32 %v3680, %v3681
    %v3683 = vsel %vm617, %v3650, 0.0
    %v3684 = vadd.f32 %v3682, %v3683
    %v3685 = vsel %vm617, %v3651, 0.0
    %v3686 = vadd.f32 %v3684, %v3685
    %v3687 = vrot.slane %v3686, 4
    %v3688 = vadd.f32 %v3686, %v3687
    %v3689 = vrot.slane %v3688, 2
    %v3690 = vadd.f32 %v3688, %v3689
    %v3691 = vrot.slane %v3690, 1
    %v3692 = vadd.f32 %v3690, %v3691
    %v3693 = vsel %vm617, %v3652, 0.0
    %v3694 = vsel %vm617, %v3653, 0.0
    %v3695 = vadd.f32 %v3693, %v3694
    %v3696 = vsel %vm617, %v3654, 0.0
    %v3697 = vadd.f32 %v3695, %v3696
    %v3698 = vsel %vm617, %v3655, 0.0
    %v3699 = vadd.f32 %v3697, %v3698
    %v3700 = vrot.slane %v3699, 4
    %v3701 = vadd.f32 %v3699, %v3700
    %v3702 = vrot.slane %v3701, 2
    %v3703 = vadd.f32 %v3701, %v3702
    %v3704 = vrot.slane %v3703, 1
    %v3705 = vadd.f32 %v3703, %v3704
    %v3706 = vsel %vm617, %v3656, 0.0
    %v3707 = vsel %vm617, %v3657, 0.0
    %v3708 = vadd.f32 %v3706, %v3707
    %v3709 = vsel %vm617, %v3658, 0.0
    %v3710 = vadd.f32 %v3708, %v3709
    %v3711 = vsel %vm617, %v3659, 0.0
    %v3712 = vadd.f32 %v3710, %v3711
    %v3713 = vrot.slane %v3712, 4
    %v3714 = vadd.f32 %v3712, %v3713
    %v3715 = vrot.slane %v3714, 2
    %v3716 = vadd.f32 %v3714, %v3715
    %v3717 = vrot.slane %v3716, 1
    %v3718 = vadd.f32 %v3716, %v3717
    %v3719 = vsel %vm617, %v3660, 0.0
    %v3720 = vsel %vm617, %v3661, 0.0
    %v3721 = vadd.f32 %v3719, %v3720
    %v3722 = vsel %vm617, %v3662, 0.0
    %v3723 = vadd.f32 %v3721, %v3722
    %v3724 = vsel %vm617, %v3663, 0.0
    %v3725 = vadd.f32 %v3723, %v3724
    %v3726 = vrot.slane %v3725, 4
    %v3727 = vadd.f32 %v3725, %v3726
    %v3728 = vrot.slane %v3727, 2
    %v3729 = vadd.f32 %v3727, %v3728
    %v3730 = vrot.slane %v3729, 1
    %v3731 = vadd.f32 %v3729, %v3730
    %v3732 = vsel %vm617, %v3664, 0.0
    %v3733 = vsel %vm617, %v3665, 0.0
    %v3734 = vadd.f32 %v3732, %v3733
    %v3735 = vsel %vm617, %v3666, 0.0
    %v3736 = vadd.f32 %v3734, %v3735
    %v3737 = vsel %vm617, %v3667, 0.0
    %v3738 = vadd.f32 %v3736, %v3737
    %v3739 = vrot.slane %v3738, 4
    %v3740 = vadd.f32 %v3738, %v3739
    %v3741 = vrot.slane %v3740, 2
    %v3742 = vadd.f32 %v3740, %v3741
    %v3743 = vrot.slane %v3742, 1
    %v3744 = vadd.f32 %v3742, %v3743
    %v3745 = vsel %vm617, %v3668, 0.0
    %v3746 = vsel %vm617, %v3669, 0.0
    %v3747 = vadd.f32 %v3745, %v3746
    %v3748 = vsel %vm617, %v3670, 0.0
    %v3749 = vadd.f32 %v3747, %v3748
    %v3750 = vsel %vm617, %v3671, 0.0
    %v3751 = vadd.f32 %v3749, %v3750
    %v3752 = vrot.slane %v3751, 4
    %v3753 = vadd.f32 %v3751, %v3752
    %v3754 = vrot.slane %v3753, 2
    %v3755 = vadd.f32 %v3753, %v3754
    %v3756 = vrot.slane %v3755, 1
    %v3757 = vadd.f32 %v3755, %v3756
    %v3758 = vsel %vm617, %v3672, 0.0
    %v3759 = vsel %vm617, %v3673, 0.0
    %v3760 = vadd.f32 %v3758, %v3759
    %v3761 = vsel %vm617, %v3674, 0.0
    %v3762 = vadd.f32 %v3760, %v3761
    %v3763 = vsel %vm617, %v3675, 0.0
    %v3764 = vadd.f32 %v3762, %v3763
    %v3765 = vrot.slane %v3764, 4
    %v3766 = vadd.f32 %v3764, %v3765
    %v3767 = vrot.slane %v3766, 2
    %v3768 = vadd.f32 %v3766, %v3767
    %v3769 = vrot.slane %v3768, 1
    %v3770 = vadd.f32 %v3768, %v3769
    %v3771 = vsel %vm617, %v3676, 0.0
    %v3772 = vsel %vm617, %v3677, 0.0
    %v3773 = vadd.f32 %v3771, %v3772
    %v3774 = vsel %vm617, %v3678, 0.0
    %v3775 = vadd.f32 %v3773, %v3774
    %v3776 = vsel %vm617, %v3679, 0.0
    %v3777 = vadd.f32 %v3775, %v3776
    %v3778 = vrot.slane %v3777, 4
    %v3779 = vadd.f32 %v3777, %v3778
    %v3780 = vrot.slane %v3779, 2
    %v3781 = vadd.f32 %v3779, %v3780
    %v3782 = vrot.slane %v3781, 1
    %v3783 = vadd.f32 %v3781, %v3782
    %v3784 = vadd.f32 %v3692, %v3647
    %v3785 = vadd.f32 %v3705, %v3647
    %v3786 = vadd.f32 %v3718, %v3647
    %v3787 = vadd.f32 %v3731, %v3647
    %v3788 = vadd.f32 %v3744, %v3647
    %v3789 = vadd.f32 %v3757, %v3647
    %v3790 = vadd.f32 %v3770, %v3647
    %v3791 = vadd.f32 %v3783, %v3647
    %vm3792 = vcmask 8192
    %v3793 = vsel %vm3792, %v3784, -inf
    %v3794 = vsel %vm3792, %v3785, -inf
    %v3795 = vsel %vm3792, %v3786, -inf
    %v3796 = vsel %vm3792, %v3787, -inf
    %v3797 = vsel %vm3792, %v3788, -inf
    %v3798 = vmax.f32 %v3793, %v3797
    %v3799 = vsel %vm3792, %v3789, -inf
    %v3800 = vmax.f32 %v3794, %v3799
    %v3801 = vsel %vm3792, %v3790, -inf
    %v3802 = vmax.f32 %v3795, %v3801
    %v3803 = vsel %vm3792, %v3791, -inf
    %v3804 = vmax.f32 %v3796, %v3803
    %v3805 = vmax.f32 %v3798, %v3800
    %v3806 = vmax.f32 %v3802, %v3804
    %v3807 = vmax.f32 %v3805, %v3806
    %v3808 = vperm.slane %v3807, 0
    %v3809 = vsub.f32 %v3784, %v3808
    %v3810 = vsub.f32 %v3785, %v3808
    %v3811 = vsub.f32 %v3786, %v3808
    %v3812 = vsub.f32 %v3787, %v3808
    %v3813 = vsub.f32 %v3788, %v3808
    %v3814 = vsub.f32 %v3789, %v3808
    %v3815 = vsub.f32 %v3790, %v3808
    %v3816 = vsub.f32 %v3791, %v3808
    %v3817 = vmul.f32 %v3809, 1.442695
    %v3818 = vpow.pop %v3817
    %v3819 = vmul.f32 %v3810, 1.442695
    %v3820 = vpow.pop %v3819
    %v3821 = vmul.f32 %v3811, 1.442695
    %v3822 = vpow.pop %v3821
    %v3823 = vmul.f32 %v3812, 1.442695
    %v3824 = vpow.pop %v3823
    %v3825 = vmul.f32 %v3813, 1.442695
    %v3826 = vpow.pop %v3825
    %v3827 = vmul.f32 %v3814, 1.442695
    %v3828 = vpow.pop %v3827
    %v3829 = vmul.f32 %v3815, 1.442695
    %v3830 = vpow.pop %v3829
    %v3831 = vmul.f32 %v3816, 1.442695
    %v3832 = vpow.pop %v3831
    %v3841 = vrot.slane %v3820, 7
    %vm3842 = vcmask 1041409
    %v3843 = vsel %vm3842, %v3841, %v3818
    %v3844 = vrot.slane %v3822, 6
    %vm3845 = vcmask 1042434
    %v3846 = vsel %vm3845, %v3844, %v3843
    %v3847 = vrot.slane %v3824, 5
    %vm3848 = vcmask 1043459
    %v3849 = vsel %vm3848, %v3847, %v3846
    %v3850 = vrot.slane %v3826, 4
    %vm3851 = vcmask 1044484
    %v3852 = vsel %vm3851, %v3850, %v3849
    %v3853 = vrot.slane %v3828, 3
    %vm3854 = vcmask 1045509
    %v3855 = vsel %vm3854, %v3853, %v3852
    %v3856 = vrot.slane %v3830, 2
    %vm3857 = vcmask 1046534
    %v3858 = vsel %vm3857, %v3856, %v3855
    %v3859 = vrot.slane %v3832, 1
    %vm3860 = vcmask 1047559
    %v3861 = vsel %vm3860, %v3859, %v3858
    %v3863 = vsel %vm617, %v3861, 0.0
    %v3864 = vrot.slane %v3863, 4
    %v3865 = vadd.f32 %v3863, %v3864
    %v3866 = vrot.slane %v3865, 2
    %v3867 = vadd.f32 %v3865, %v3866
    %v3868 = vrot.slane %v3867, 1
    %v3869 = vadd.f32 %v3867, %v3868
    %v3870 = vrcp.pop %v3869
    %v3871 = vperm.slane %v3870, 0
    %v3872 = vmul.f32 %v3818, %v3871
    %v3873 = vmul.f32 %v3820, %v3871
    %v3874 = vmul.f32 %v3822, %v3871
    %v3875 = vmul.f32 %v3824, %v3871
    %v3876 = vmul.f32 %v3826, %v3871
    %v3877 = vmul.f32 %v3828, %v3871
    %v3878 = vmul.f32 %v3830, %v3871
    %v3879 = vmul.f32 %v3832, %v3871
    %v3880 = vperm.slane %v3872, 0
    %v3881 = vperm.slane %v3873, 0
    %v3882 = vperm.slane %v3874, 0
    %v3883 = vperm.slane %v3875, 0
    %v3884 = vperm.slane %v3876, 0
    %v3885 = vperm.slane %v3877, 0
    %v3886 = vperm.slane %v3878, 0
    %v3887 = vperm.slane %v3879, 0
    %v3888 = vmul.f32 %v3534, %v3880
    %v3889 = vmul.f32 %v3535, %v3880
    %v3890 = vmul.f32 %v3536, %v3880
    %v3891 = vmul.f32 %v3537, %v3880
    %v3892 = vmul.f32 %v3538, %v3881
    %v3893 = vmul.f32 %v3539, %v3881
    %v3894 = vmul.f32 %v3540, %v3881
    %v3895 = vmul.f32 %v3541, %v3881
    %v3896 = vmul.f32 %v3542, %v3882
    %v3897 = vmul.f32 %v3543, %v3882
    %v3898 = vmul.f32 %v3544, %v3882
    %v3899 = vmul.f32 %v3545, %v3882
    %v3900 = vmul.f32 %v3546, %v3883
    %v3901 = vmul.f32 %v3547, %v3883
    %v3902 = vmul.f32 %v3548, %v3883
    %v3903 = vmul.f32 %v3549, %v3883
    %v3904 = vmul.f32 %v3550, %v3884
    %v3905 = vmul.f32 %v3551, %v3884
    %v3906 = vmul.f32 %v3552, %v3884
    %v3907 = vmul.f32 %v3553, %v3884
    %v3908 = vmul.f32 %v3554, %v3885
    %v3909 = vmul.f32 %v3555, %v3885
    %v3910 = vmul.f32 %v3556, %v3885
    %v3911 = vmul.f32 %v3557, %v3885
    %v3912 = vmul.f32 %v3558, %v3886
    %v3913 = vmul.f32 %v3559, %v3886
    %v3914 = vmul.f32 %v3560, %v3886
    %v3915 = vmul.f32 %v3561, %v3886
    %v3916 = vmul.f32 %v3562, %v3887
    %v3917 = vmul.f32 %v3563, %v3887
    %v3918 = vmul.f32 %v3564, %v3887
    %v3919 = vmul.f32 %v3565, %v3887
    %v3920 = vsel %vm617, %v3888, 0.0
    %v3921 = vsel %vm617, %v3892, 0.0
    %v3922 = vadd.f32 %v3920, %v3921
    %v3923 = vsel %vm617, %v3896, 0.0
    %v3924 = vadd.f32 %v3922, %v3923
    %v3925 = vsel %vm617, %v3900, 0.0
    %v3926 = vadd.f32 %v3924, %v3925
    %v3927 = vsel %vm617, %v3904, 0.0
    %v3928 = vadd.f32 %v3926, %v3927
    %v3929 = vsel %vm617, %v3908, 0.0
    %v3930 = vadd.f32 %v3928, %v3929
    %v3931 = vsel %vm617, %v3912, 0.0
    %v3932 = vadd.f32 %v3930, %v3931
    %v3933 = vsel %vm617, %v3916, 0.0
    %v3934 = vadd.f32 %v3932, %v3933
    %v3935 = vsel %vm617, %v3889, 0.0
    %v3936 = vsel %vm617, %v3893, 0.0
    %v3937 = vadd.f32 %v3935, %v3936
    %v3938 = vsel %vm617, %v3897, 0.0
    %v3939 = vadd.f32 %v3937, %v3938
    %v3940 = vsel %vm617, %v3901, 0.0
    %v3941 = vadd.f32 %v3939, %v3940
    %v3942 = vsel %vm617, %v3905, 0.0
    %v3943 = vadd.f32 %v3941, %v3942
    %v3944 = vsel %vm617, %v3909, 0.0
    %v3945 = vadd.f32 %v3943, %v3944
    %v3946 = vsel %vm617, %v3913, 0.0
    %v3947 = vadd.f32 %v3945, %v3946
    %v3948 = vsel %vm617, %v3917, 0.0
    %v3949 = vadd.f32 %v3947, %v3948
    %v3950 = vsel %vm617, %v3890, 0.0
    %v3951 = vsel %vm617, %v3894, 0.0
    %v3952 = vadd.f32 %v3950, %v3951
    %v3953 = vsel %vm617, %v3898, 0.0
    %v3954 = vadd.f32 %v3952, %v3953
    %v3955 = vsel %vm617, %v3902, 0.0
    %v3956 = vadd.f32 %v3954, %v3955
    %v3957 = vsel %vm617, %v3906, 0.0
    %v3958 = vadd.f32 %v3956, %v3957
    %v3959 = vsel %vm617, %v3910, 0.0
    %v3960 = vadd.f32 %v3958, %v3959
    %v3961 = vsel %vm617, %v3914, 0.0
    %v3962 = vadd.f32 %v3960, %v3961
    %v3963 = vsel %vm617, %v3918, 0.0
    %v3964 = vadd.f32 %v3962, %v3963
    %v3965 = vsel %vm617, %v3891, 0.0
    %v3966 = vsel %vm617, %v3895, 0.0
    %v3967 = vadd.f32 %v3965, %v3966
    %v3968 = vsel %vm617, %v3899, 0.0
    %v3969 = vadd.f32 %v3967, %v3968
    %v3970 = vsel %vm617, %v3903, 0.0
    %v3971 = vadd.f32 %v3969, %v3970
    %v3972 = vsel %vm617, %v3907, 0.0
    %v3973 = vadd.f32 %v3971, %v3972
    %v3974 = vsel %vm617, %v3911, 0.0
    %v3975 = vadd.f32 %v3973, %v3974
    %v3976 = vsel %vm617, %v3915, 0.0
    %v3977 = vadd.f32 %v3975, %v3976
    %v3978 = vsel %vm617, %v3919, 0.0
    %v3979 = vadd.f32 %v3977, %v3978
    %v3980 = vld [vmem:[%s5] sm:$0xf]
    %v3981 = vld [vmem:[%s5 + $0x4] sm:$0xf]
    %v3982 = vld [vmem:[%s5 + $0x8] sm:$0xf]
    %v3983 = vld [vmem:[%s5 + $0xc] sm:$0xf]
    %v3984 = vpack.c.bf16 %v3949, %v3934
    %v3985 = vpack.c.bf16 %v3979, %v3964
    %v3986 = vld [vmem:[%s6] sm:$0xf]
    %v3987 = vld [vmem:[%s6 + $0x4] sm:$0xf]
    %v3988 = vld [vmem:[%s6 + $0x8] sm:$0xf]
    %v3989 = vld [vmem:[%s6 + $0xc] sm:$0xf]
    %v3994 = vunpack.c.l.b16 %v3986
    %v3995 = vunpack.c.l.b16 %v3987
    %v3996 = vunpack.c.l.b16 %v3988
    %v3997 = vunpack.c.l.b16 %v3989
    %v3998 = vpack.c.b16 %v3995, %v3994
    %v3999 = vpack.c.b16 %v3997, %v3996
    %v4001 = vsel %vm194, %v3998, 0
    %v4004 = vsel %vm194, %v3999, 0
    %4006 = vmatpush.bf16.msra.mxu0 0
    %4007 = vmatpush.bf16.msra.mxu0 0
    %4008 = vmatpush.bf16.msra.mxu0 0
    %4009 = vmatpush.bf16.msra.mxu0 0
    %4010 = vmatpush.bf16.msra.mxu0 0
    %4011 = vmatpush.bf16.msra.mxu0 0
    %4012 = vmatpush.bf16.msra.mxu0 %v3571
    %4013 = vmatpush.bf16.msra.mxu0 %v3570
    %4014 = vmatmul.bf16.gmra.mxu0 %v4001
    %v4015 = vpop.f32.mrf.mxu0
    %v4016 = vadd.f32 0.0, %v4015
    %v4017 = vpop.f32.mrf.mxu0
    %v4018 = vadd.f32 0.0, %v4017
    %4019 = vmatmul.bf16.gmra.mxu0 %v4004
    %v4020 = vpop.f32.mrf.mxu0
    %v4021 = vadd.f32 0.0, %v4020
    %v4022 = vpop.f32.mrf.mxu0
    %v4023 = vadd.f32 0.0, %v4022
    %4024 = vdwg.mxu0
    %v4029 = vunpack.c.l.b16 %v3980
    %v4030 = vunpack.c.l.b16 %v3981
    %v4031 = vunpack.c.l.b16 %v3982
    %v4032 = vunpack.c.l.b16 %v3983
    %v4033 = vpack.c.b16 %v4030, %v4029
    %v4034 = vpack.c.b16 %v4032, %v4031
    %v4036 = vsel %vm194, %v4033, 0
    %v4039 = vsel %vm194, %v4034, 0
    %4041 = vmatpush.bf16.msra.mxu0 0
    %4042 = vmatpush.bf16.msra.mxu0 0
    %4043 = vmatpush.bf16.msra.mxu0 0
    %4044 = vmatpush.bf16.msra.mxu0 0
    %4045 = vmatpush.bf16.msra.mxu0 0
    %4046 = vmatpush.bf16.msra.mxu0 0
    %4047 = vmatpush.bf16.msra.mxu0 %v3985
    %4048 = vmatpush.bf16.msra.mxu0 %v3984
    %4049 = vmatmul.bf16.gmra.mxu0 %v4036
    %v4050 = vpop.f32.mrf.mxu0
    %v4051 = vadd.f32 %v4016, %v4050
    %v4052 = vpop.f32.mrf.mxu0
    %v4053 = vadd.f32 %v4018, %v4052
    %4054 = vmatmul.bf16.gmra.mxu0 %v4039
    %v4055 = vpop.f32.mrf.mxu0
    %v4056 = vadd.f32 %v4021, %v4055
    %v4057 = vpop.f32.mrf.mxu0
    %v4058 = vadd.f32 %v4023, %v4057
    %4059 = vdwg.mxu0
    %v4060 = vld [vmem:[%s7] sm:$0xff]
    %v4061 = vld [vmem:[%s7 + $0x8] sm:$0xff]
    %v4062 = vld [vmem:[%s7 + $0x10] sm:$0xff]
    %v4063 = vld [vmem:[%s7 + $0x18] sm:$0xff]
    %4065 = vset.pattern.permute.xlu0 0
    %4066 = vperm.xlu0 %4065, %v4060
    %v4067 = vpop.permute.xlu0 %4066
    %4070 = vset.pattern.permute.xlu0 0
    %4071 = vperm.xlu0 %4070, %v4061
    %v4072 = vpop.permute.xlu0 %4071
    %4075 = vset.pattern.permute.xlu0 0
    %4076 = vperm.xlu0 %4075, %v4062
    %v4077 = vpop.permute.xlu0 %4076
    %4080 = vset.pattern.permute.xlu0 0
    %4081 = vperm.xlu0 %4080, %v4063
    %v4082 = vpop.permute.xlu0 %4081
    %v4084 = vadd.f32 %v4051, %v4067
    %v4085 = vadd.f32 %v4053, %v4072
    %v4086 = vadd.f32 %v4056, %v4077
    %v4087 = vadd.f32 %v4058, %v4082
    %v4088 = vtanh.pop %v4084
    %v4089 = vtanh.pop %v4085
    %v4090 = vtanh.pop %v4086
    %v4091 = vtanh.pop %v4087
    %v4092 = vld [vmem:[%s8] sm:$0xf]
    %v4093 = vld [vmem:[%s8 + $0x4] sm:$0xf]
    %v4094 = vld [vmem:[%s8 + $0x8] sm:$0xf]
    %v4095 = vld [vmem:[%s8 + $0xc] sm:$0xf]
    %v4096 = vld [vmem:[%s8 + $0x10] sm:$0xf]
    %v4097 = vld [vmem:[%s8 + $0x14] sm:$0xf]
    %v4098 = vld [vmem:[%s8 + $0x18] sm:$0xf]
    %v4099 = vld [vmem:[%s8 + $0x1c] sm:$0xf]
    %v4100 = vld [vmem:[%s8 + $0x20] sm:$0xf]
    %v4101 = vld [vmem:[%s8 + $0x24] sm:$0xf]
    %v4102 = vld [vmem:[%s8 + $0x28] sm:$0xf]
    %v4103 = vld [vmem:[%s8 + $0x2c] sm:$0xf]
    %v4104 = vld [vmem:[%s8 + $0x30] sm:$0xf]
    %v4105 = vld [vmem:[%s8 + $0x34] sm:$0xf]
    %v4106 = vld [vmem:[%s8 + $0x38] sm:$0xf]
    %v4107 = vld [vmem:[%s8 + $0x3c] sm:$0xf]
    %v4108 = vpack.c.bf16 %v4089, %v4088
    %v4109 = vpack.c.bf16 %v4091, %v4090
    %v4110 = vld [vmem:[%s9] sm:$0xff]
    %v4111 = vld [vmem:[%s9 + $0x8] sm:$0xff]
    %v4112 = vld [vmem:[%s9 + $0x10] sm:$0xff]
    %v4113 = vld [vmem:[%s9 + $0x18] sm:$0xff]
    %v4114 = vld [vmem:[%s9 + $0x20] sm:$0xff]
    %v4115 = vld [vmem:[%s9 + $0x28] sm:$0xff]
    %v4116 = vld [vmem:[%s9 + $0x30] sm:$0xff]
    %v4117 = vld [vmem:[%s9 + $0x38] sm:$0xff]
    %v4118 = vld [vmem:[%s9 + $0x40] sm:$0xff]
    %v4119 = vld [vmem:[%s9 + $0x48] sm:$0xff]
    %v4120 = vld [vmem:[%s9 + $0x50] sm:$0xff]
    %v4121 = vld [vmem:[%s9 + $0x58] sm:$0xff]
    %v4122 = vld [vmem:[%s9 + $0x60] sm:$0xff]
    %v4123 = vld [vmem:[%s9 + $0x68] sm:$0xff]
    %v4124 = vld [vmem:[%s9 + $0x70] sm:$0xff]
    %v4125 = vld [vmem:[%s9 + $0x78] sm:$0xff]
    %4127 = vset.pattern.permute.xlu0 0
    %4128 = vperm.xlu0 %4127, %v4110
    %v4129 = vpop.permute.xlu0 %4128
    %4132 = vset.pattern.permute.xlu0 0
    %4133 = vperm.xlu0 %4132, %v4111
    %v4134 = vpop.permute.xlu0 %4133
    %4137 = vset.pattern.permute.xlu0 0
    %4138 = vperm.xlu0 %4137, %v4112
    %v4139 = vpop.permute.xlu0 %4138
    %4142 = vset.pattern.permute.xlu0 0
    %4143 = vperm.xlu0 %4142, %v4113
    %v4144 = vpop.permute.xlu0 %4143
    %4147 = vset.pattern.permute.xlu0 0
    %4148 = vperm.xlu0 %4147, %v4114
    %v4149 = vpop.permute.xlu0 %4148
    %4152 = vset.pattern.permute.xlu0 0
    %4153 = vperm.xlu0 %4152, %v4115
    %v4154 = vpop.permute.xlu0 %4153
    %4157 = vset.pattern.permute.xlu0 0
    %4158 = vperm.xlu0 %4157, %v4116
    %v4159 = vpop.permute.xlu0 %4158
    %4162 = vset.pattern.permute.xlu0 0
    %4163 = vperm.xlu0 %4162, %v4117
    %v4164 = vpop.permute.xlu0 %4163
    %4167 = vset.pattern.permute.xlu0 0
    %4168 = vperm.xlu0 %4167, %v4118
    %v4169 = vpop.permute.xlu0 %4168
    %4172 = vset.pattern.permute.xlu0 0
    %4173 = vperm.xlu0 %4172, %v4119
    %v4174 = vpop.permute.xlu0 %4173
    %4177 = vset.pattern.permute.xlu0 0
    %4178 = vperm.xlu0 %4177, %v4120
    %v4179 = vpop.permute.xlu0 %4178
    %4182 = vset.pattern.permute.xlu0 0
    %4183 = vperm.xlu0 %4182, %v4121
    %v4184 = vpop.permute.xlu0 %4183
    %4187 = vset.pattern.permute.xlu0 0
    %4188 = vperm.xlu0 %4187, %v4122
    %v4189 = vpop.permute.xlu0 %4188
    %4192 = vset.pattern.permute.xlu0 0
    %4193 = vperm.xlu0 %4192, %v4123
    %v4194 = vpop.permute.xlu0 %4193
    %4197 = vset.pattern.permute.xlu0 0
    %4198 = vperm.xlu0 %4197, %v4124
    %v4199 = vpop.permute.xlu0 %4198
    %4202 = vset.pattern.permute.xlu0 0
    %4203 = vperm.xlu0 %4202, %v4125
    %v4204 = vpop.permute.xlu0 %4203
    %v4222 = vunpack.c.l.b16 %v4092
    %v4223 = vunpack.c.l.b16 %v4093
    %v4224 = vunpack.c.l.b16 %v4094
    %v4225 = vunpack.c.l.b16 %v4095
    %v4226 = vunpack.c.l.b16 %v4096
    %v4227 = vunpack.c.l.b16 %v4097
    %v4228 = vunpack.c.l.b16 %v4098
    %v4229 = vunpack.c.l.b16 %v4099
    %v4230 = vunpack.c.l.b16 %v4100
    %v4231 = vunpack.c.l.b16 %v4101
    %v4232 = vunpack.c.l.b16 %v4102
    %v4233 = vunpack.c.l.b16 %v4103
    %v4234 = vunpack.c.l.b16 %v4104
    %v4235 = vunpack.c.l.b16 %v4105
    %v4236 = vunpack.c.l.b16 %v4106
    %v4237 = vunpack.c.l.b16 %v4107
    %v4238 = vpack.c.b16 %v4223, %v4222
    %v4239 = vpack.c.b16 %v4225, %v4224
    %v4240 = vpack.c.b16 %v4227, %v4226
    %v4241 = vpack.c.b16 %v4229, %v4228
    %v4242 = vpack.c.b16 %v4231, %v4230
    %v4243 = vpack.c.b16 %v4233, %v4232
    %v4244 = vpack.c.b16 %v4235, %v4234
    %v4245 = vpack.c.b16 %v4237, %v4236
    %v4247 = vsel %vm194, %v4238, 0
    %v4250 = vsel %vm194, %v4239, 0
    %v4253 = vsel %vm194, %v4240, 0
    %v4256 = vsel %vm194, %v4241, 0
    %v4259 = vsel %vm194, %v4242, 0
    %v4262 = vsel %vm194, %v4243, 0
    %v4265 = vsel %vm194, %v4244, 0
    %v4268 = vsel %vm194, %v4245, 0
    %4270 = vmatpush.bf16.msra.mxu0 0
    %4271 = vmatpush.bf16.msra.mxu0 0
    %4272 = vmatpush.bf16.msra.mxu0 0
    %4273 = vmatpush.bf16.msra.mxu0 0
    %4274 = vmatpush.bf16.msra.mxu0 0
    %4275 = vmatpush.bf16.msra.mxu0 0
    %4276 = vmatpush.bf16.msra.mxu0 %v4109
    %4277 = vmatpush.bf16.msra.mxu0 %v4108
    %4278 = vmatmul.bf16.gmra.mxu0 %v4247
    %v4279 = vpop.f32.mrf.mxu0
    %v4280 = vadd.f32 %v4129, %v4279
    %v4281 = vpop.f32.mrf.mxu0
    %v4282 = vadd.f32 %v4134, %v4281
    %4283 = vmatmul.bf16.gmra.mxu0 %v4250
    %v4284 = vpop.f32.mrf.mxu0
    %v4285 = vadd.f32 %v4139, %v4284
    %v4286 = vpop.f32.mrf.mxu0
    %v4287 = vadd.f32 %v4144, %v4286
    %4288 = vmatmul.bf16.gmra.mxu0 %v4253
    %v4289 = vpop.f32.mrf.mxu0
    %v4290 = vadd.f32 %v4149, %v4289
    %v4291 = vpop.f32.mrf.mxu0
    %v4292 = vadd.f32 %v4154, %v4291
    %4293 = vmatmul.bf16.gmra.mxu0 %v4256
    %v4294 = vpop.f32.mrf.mxu0
    %v4295 = vadd.f32 %v4159, %v4294
    %v4296 = vpop.f32.mrf.mxu0
    %v4297 = vadd.f32 %v4164, %v4296
    %4298 = vmatmul.bf16.gmra.mxu0 %v4259
    %v4299 = vpop.f32.mrf.mxu0
    %v4300 = vadd.f32 %v4169, %v4299
    %v4301 = vpop.f32.mrf.mxu0
    %v4302 = vadd.f32 %v4174, %v4301
    %4303 = vmatmul.bf16.gmra.mxu0 %v4262
    %v4304 = vpop.f32.mrf.mxu0
    %v4305 = vadd.f32 %v4179, %v4304
    %v4306 = vpop.f32.mrf.mxu0
    %v4307 = vadd.f32 %v4184, %v4306
    %4308 = vmatmul.bf16.gmra.mxu0 %v4265
    %v4309 = vpop.f32.mrf.mxu0
    %v4310 = vadd.f32 %v4189, %v4309
    %v4311 = vpop.f32.mrf.mxu0
    %v4312 = vadd.f32 %v4194, %v4311
    %4313 = vmatmul.bf16.gmra.mxu0 %v4268
    %v4314 = vpop.f32.mrf.mxu0
    %v4315 = vadd.f32 %v4199, %v4314
    %v4316 = vpop.f32.mrf.mxu0
    %v4317 = vadd.f32 %v4204, %v4316
    %4318 = vdwg.mxu0
    %v4319 = vtanh.pop %v4280
    %v4320 = vtanh.pop %v4282
    %v4321 = vtanh.pop %v4285
    %v4322 = vtanh.pop %v4287
    %v4323 = vtanh.pop %v4290
    %v4324 = vtanh.pop %v4292
    %v4325 = vtanh.pop %v4295
    %v4326 = vtanh.pop %v4297
    %v4327 = vtanh.pop %v4300
    %v4328 = vtanh.pop %v4302
    %v4329 = vtanh.pop %v4305
    %v4330 = vtanh.pop %v4307
    %v4331 = vtanh.pop %v4310
    %v4332 = vtanh.pop %v4312
    %v4333 = vtanh.pop %v4315
    %v4334 = vtanh.pop %v4317
    %v4335 = vld [vmem:[%s10] sm:$0xff]
    %v4336 = vld [vmem:[%s10 + $0x8] sm:$0xff]
    %v4337 = vld [vmem:[%s10 + $0x10] sm:$0xff]
    %v4338 = vld [vmem:[%s10 + $0x18] sm:$0xff]
    %v4339 = vld [vmem:[%s10 + $0x20] sm:$0xff]
    %v4340 = vld [vmem:[%s10 + $0x28] sm:$0xff]
    %v4341 = vld [vmem:[%s10 + $0x30] sm:$0xff]
    %v4342 = vld [vmem:[%s10 + $0x38] sm:$0xff]
    %v4343 = vld [vmem:[%s10 + $0x40] sm:$0xff]
    %v4344 = vld [vmem:[%s10 + $0x48] sm:$0xff]
    %v4345 = vld [vmem:[%s10 + $0x50] sm:$0xff]
    %v4346 = vld [vmem:[%s10 + $0x58] sm:$0xff]
    %v4347 = vld [vmem:[%s10 + $0x60] sm:$0xff]
    %v4348 = vld [vmem:[%s10 + $0x68] sm:$0xff]
    %v4349 = vld [vmem:[%s10 + $0x70] sm:$0xff]
    %v4350 = vld [vmem:[%s10 + $0x78] sm:$0xff]
    %4352 = vset.pattern.permute.xlu0 0
    %4353 = vperm.xlu0 %4352, %v4335
    %v4354 = vpop.permute.xlu0 %4353
    %4357 = vset.pattern.permute.xlu0 0
    %4358 = vperm.xlu0 %4357, %v4336
    %v4359 = vpop.permute.xlu0 %4358
    %4362 = vset.pattern.permute.xlu0 0
    %4363 = vperm.xlu0 %4362, %v4337
    %v4364 = vpop.permute.xlu0 %4363
    %4367 = vset.pattern.permute.xlu0 0
    %4368 = vperm.xlu0 %4367, %v4338
    %v4369 = vpop.permute.xlu0 %4368
    %4372 = vset.pattern.permute.xlu0 0
    %4373 = vperm.xlu0 %4372, %v4339
    %v4374 = vpop.permute.xlu0 %4373
    %4377 = vset.pattern.permute.xlu0 0
    %4378 = vperm.xlu0 %4377, %v4340
    %v4379 = vpop.permute.xlu0 %4378
    %4382 = vset.pattern.permute.xlu0 0
    %4383 = vperm.xlu0 %4382, %v4341
    %v4384 = vpop.permute.xlu0 %4383
    %4387 = vset.pattern.permute.xlu0 0
    %4388 = vperm.xlu0 %4387, %v4342
    %v4389 = vpop.permute.xlu0 %4388
    %4392 = vset.pattern.permute.xlu0 0
    %4393 = vperm.xlu0 %4392, %v4343
    %v4394 = vpop.permute.xlu0 %4393
    %4397 = vset.pattern.permute.xlu0 0
    %4398 = vperm.xlu0 %4397, %v4344
    %v4399 = vpop.permute.xlu0 %4398
    %4402 = vset.pattern.permute.xlu0 0
    %4403 = vperm.xlu0 %4402, %v4345
    %v4404 = vpop.permute.xlu0 %4403
    %4407 = vset.pattern.permute.xlu0 0
    %4408 = vperm.xlu0 %4407, %v4346
    %v4409 = vpop.permute.xlu0 %4408
    %4412 = vset.pattern.permute.xlu0 0
    %4413 = vperm.xlu0 %4412, %v4347
    %v4414 = vpop.permute.xlu0 %4413
    %4417 = vset.pattern.permute.xlu0 0
    %4418 = vperm.xlu0 %4417, %v4348
    %v4419 = vpop.permute.xlu0 %4418
    %4422 = vset.pattern.permute.xlu0 0
    %4423 = vperm.xlu0 %4422, %v4349
    %v4424 = vpop.permute.xlu0 %4423
    %4427 = vset.pattern.permute.xlu0 0
    %4428 = vperm.xlu0 %4427, %v4350
    %v4429 = vpop.permute.xlu0 %4428
    %v4431 = vmul.f32 %v4319, %v4354
    %v4432 = vmul.f32 %v4320, %v4359
    %v4433 = vmul.f32 %v4321, %v4364
    %v4434 = vmul.f32 %v4322, %v4369
    %v4435 = vmul.f32 %v4323, %v4374
    %v4436 = vmul.f32 %v4324, %v4379
    %v4437 = vmul.f32 %v4325, %v4384
    %v4438 = vmul.f32 %v4326, %v4389
    %v4439 = vmul.f32 %v4327, %v4394
    %v4440 = vmul.f32 %v4328, %v4399
    %v4441 = vmul.f32 %v4329, %v4404
    %v4442 = vmul.f32 %v4330, %v4409
    %v4443 = vmul.f32 %v4331, %v4414
    %v4444 = vmul.f32 %v4332, %v4419
    %v4445 = vmul.f32 %v4333, %v4424
    %v4446 = vmul.f32 %v4334, %v4429
    %v4447 = vsel %vm617, %v4431, 0.0
    %v4448 = vsel %vm617, %v4432, 0.0
    %v4449 = vadd.f32 %v4447, %v4448
    %v4450 = vsel %vm617, %v4433, 0.0
    %v4451 = vadd.f32 %v4449, %v4450
    %v4452 = vsel %vm617, %v4434, 0.0
    %v4453 = vadd.f32 %v4451, %v4452
    %v4454 = vsel %vm617, %v4435, 0.0
    %v4455 = vadd.f32 %v4453, %v4454
    %v4456 = vsel %vm617, %v4436, 0.0
    %v4457 = vadd.f32 %v4455, %v4456
    %v4458 = vsel %vm617, %v4437, 0.0
    %v4459 = vadd.f32 %v4457, %v4458
    %v4460 = vsel %vm617, %v4438, 0.0
    %v4461 = vadd.f32 %v4459, %v4460
    %v4462 = vsel %vm617, %v4439, 0.0
    %v4463 = vadd.f32 %v4461, %v4462
    %v4464 = vsel %vm617, %v4440, 0.0
    %v4465 = vadd.f32 %v4463, %v4464
    %v4466 = vsel %vm617, %v4441, 0.0
    %v4467 = vadd.f32 %v4465, %v4466
    %v4468 = vsel %vm617, %v4442, 0.0
    %v4469 = vadd.f32 %v4467, %v4468
    %v4470 = vsel %vm617, %v4443, 0.0
    %v4471 = vadd.f32 %v4469, %v4470
    %v4472 = vsel %vm617, %v4444, 0.0
    %v4473 = vadd.f32 %v4471, %v4472
    %v4474 = vsel %vm617, %v4445, 0.0
    %v4475 = vadd.f32 %v4473, %v4474
    %v4476 = vsel %vm617, %v4446, 0.0
    %v4477 = vadd.f32 %v4475, %v4476
    %v4478 = vrot.slane %v4477, 4
    %v4479 = vadd.f32 %v4477, %v4478
    %v4480 = vrot.slane %v4479, 2
    %v4481 = vadd.f32 %v4479, %v4480
    %v4482 = vrot.slane %v4481, 1
    %v4483 = vadd.f32 %v4481, %v4482
    %v4484 = vld [vmem:[#allocation3] sm:$0x1]
    %4486 = vset.pattern.permute.xlu0 0
    %4487 = vperm.xlu0 %4486, %v4484
    %v4488 = vpop.permute.xlu0 %4487
    %v4490 = vperm.slane %v4488, 0
    %v4491 = vadd.f32 %v4483, %v4490
    %4492 = vst.msk [vmem:[#allocation4] sm:$0x1] %vm3792, %v4491
    %v4501 = vrot.slane %v3873, 7
    %v4502 = vsel %vm3842, %v4501, %v3872
    %v4503 = vrot.slane %v3874, 6
    %v4504 = vsel %vm3845, %v4503, %v4502
    %v4505 = vrot.slane %v3875, 5
    %v4506 = vsel %vm3848, %v4505, %v4504
    %v4507 = vrot.slane %v3876, 4
    %v4508 = vsel %vm3851, %v4507, %v4506
    %v4509 = vrot.slane %v3877, 3
    %v4510 = vsel %vm3854, %v4509, %v4508
    %v4511 = vrot.slane %v3878, 2
    %v4512 = vsel %vm3857, %v4511, %v4510
    %v4513 = vrot.slane %v3879, 1
    %v4514 = vsel %vm3860, %v4513, %v4512
    %4516 = vst.msk [vmem:[%s13] sm:$0xff] %vm617, %v4514
    // Predicated region
    $region50: #{tpu_custom_call.1} parent=1 // pred_check
      _
    $region51: #{tpu_custom_call.1} parent=1 // pred_check_branch
      %4518 = sbr.rel (0) target = $region53
    $region52: #{tpu_custom_call.1} parent=1 // pred_region
      %4520 = vsyncadd [#allocation5], 0
      %s4522 = sshll.u32 [#allocation4], 4
      %s4523 = int_to_ptr.vmem [resolvable:$true] %s4522
      %s4524 = sshll.u32 %s12, 4
      %s4525 = int_to_ptr.hbm [resolvable:$true] %s4524
      %4527 = dma.vmem_to_hbm [thread:$0]  %s4523, 16, %s4525, [#allocation5]
    $region53: #{tpu_custom_call.1} parent=1 // pred_fallthru
      _
    // Predicated region
    $region54: #{tpu_custom_call.1} parent=1 // pred_check
      _
    $region55: #{tpu_custom_call.1} parent=1 // pred_check_branch
      %4529 = sbr.rel (0) target = $region57
    $region56: #{tpu_custom_call.1} parent=1 // pred_region
      _
    $region57: #{tpu_custom_call.1} parent=1 // pred_fallthru
      _
    // Predicated region
    $region58: #{tpu_custom_call.1} parent=1 // pred_check
      _
    $region59: #{tpu_custom_call.1} parent=1 // pred_check_branch
      %4531 = sbr.rel (0) target = $region61
    $region60: #{tpu_custom_call.1} parent=1 // pred_region
      %4533 = dma.done [#allocation5], 16
    $region61: #{tpu_custom_call.1} parent=1 // pred_fallthru
      _
    // Predicated region
    $region62: #{tpu_custom_call.1} parent=1 // pred_check
      _
    $region63: #{tpu_custom_call.1} parent=1 // pred_check_branch
      %4535 = sbr.rel (0) target = $region65
    $region64: #{tpu_custom_call.1} parent=1 // pred_region
      _
    $region65: #{tpu_custom_call.1} parent=1 // pred_fallthru
      _
    %4536 = vsyncpa [#allocation5], 1

</llo_original>
